<compile_context>
chip_gen: v6e
topology: v6e:2x2x1
jax: 0.10.0
libtpu: 0.0.40
codegen_flags: <defaults>
</compile_context>

<pallas_src>
import functools

import jax
import jax.numpy as jnp
import numpy as np
from jax.experimental import pallas as pl
from jax.experimental.pallas import tpu as pltpu

_VMEM = functools.partial(pl.BlockSpec, memory_space=pltpu.MemorySpace.VMEM)
_BN_EPS = 1e-5
_LANE = 128
_SUB = 8
_NUM_LAYERS = 2


def _round_up(v, m):
    return ((v + m - 1) // m) * m


def _head_layout(Bp, H, H1, SZ):
    """Row offsets inside the MLP-head slab (all 8-aligned blocks)."""
    o_w1t = 4 * Bp              # after 4 (Bp,Bp) selection matrices
    o_w1b = o_w1t + H
    o_w2 = o_w1b + H
    o_w3 = o_w2 + H1
    o_mb = _round_up(o_w3 + SZ, _SUB)
    rows = o_mb + 3 * Bp        # 3 pre-broadcast bias blocks
    return o_w1t, o_w1b, o_w2, o_w3, o_mb, rows


# ----------------------------------------------------------------------------
# Fused Pallas kernel: wavefront 2-layer GRU -> h_n flatten quirk -> MLP head
# ----------------------------------------------------------------------------
def birnn_fused_kernel(x_ref, gw_ref, gb_ref, hd_ref, out_ref,
                       *, T, Bp, Cp, H, H1, SZ):
    G1, G2 = _LANE, 2 * _LANE

    # ---- hoisted weight loads (fused per-layer gate slabs, 128 lanes/gate) ---
    w0 = gw_ref[0:Cp, :]                      # (Cp, 384) layer-0 input weights
    u0 = gw_ref[Cp:Cp + H, :]                 # (H,  384) layer-0 hidden weights
    w1 = gw_ref[Cp + H:Cp + 2 * H, :]         # (H,  384) layer-1 input weights
    u1 = gw_ref[Cp + 2 * H:Cp + 3 * H, :]     # (H,  384) layer-1 hidden weights

    # ---- biases (pre-broadcast in wrapper -> aligned block loads, no bcasts) -
    bi0 = gb_ref[0:1, :]                                 # (1, 384) folded into GI0
    bh0n = gb_ref[_SUB:_SUB + Bp, 0:H]                   # (Bp, H)  layer-0 hidden n-bias
    bi1 = gb_ref[_SUB + Bp:_SUB + 2 * Bp, :]             # (Bp, 384) layer-1 input-side bias
    bh1n = gb_ref[_SUB + 2 * Bp:_SUB + 3 * Bp, 0:H]      # (Bp, H)  layer-1 hidden n-bias

    # ---- layer-0 input projection hoisted out of the recurrence -------------
    gi0_all = jnp.dot(x_ref[...], w0,
                      preferred_element_type=jnp.float32) + bi0   # (T*Bp, 384)

    h0 = jnp.zeros((Bp, H), jnp.float32)
    h1 = jnp.zeros((Bp, H), jnp.float32)

    # Wavefront schedule: layer-1 step t issues right after layer-0's h0_t, so
    # the dependence chain is ~T+1 GRU steps (layer-1 work overlaps layer-0's
    # next step).  T is small & static -> fully unrolled, all slices static.
    # NOTE: padded batch rows B..Bp-1 accumulate bias-driven values here; the
    # zero rows of the selection matrices below keep them out of the logits.
    for t in range(T):
        # layer 0
        gi0 = gi0_all[t * Bp:(t + 1) * Bp]
        gh0 = jnp.dot(h0, u0, preferred_element_type=jnp.float32)
        r0 = jax.nn.sigmoid(gi0[:, 0:H] + gh0[:, 0:H])
        z0 = jax.nn.sigmoid(gi0[:, G1:G1 + H] + gh0[:, G1:G1 + H])
        n0 = jnp.tanh(gi0[:, G2:G2 + H] + r0 * (gh0[:, G2:G2 + H] + bh0n))
        h0 = n0 + z0 * (h0 - n0)
        # layer 1 (consumes h0_t just produced)
        gi1 = jnp.dot(h0, w1, preferred_element_type=jnp.float32) + bi1
        gh1 = jnp.dot(h1, u1, preferred_element_type=jnp.float32)
        r1 = jax.nn.sigmoid(gi1[:, 0:H] + gh1[:, 0:H])
        z1 = jax.nn.sigmoid(gi1[:, G1:G1 + H] + gh1[:, G1:G1 + H])
        n1 = jnp.tanh(gi1[:, G2:G2 + H] + r1 * (gh1[:, G2:G2 + H] + bh1n))
        h1 = n1 + z1 * (h1 - n1)

    # ---- torch quirk feat = h_n.view(B, 2H) via 0/1 selection matmuls -------
    # feat @ W1 == left @ W1[:H] + right @ W1[H:], with left/right assembled
    # from (h0_fin, h1_fin) by compile-time selection matrices (pure MXU, no
    # per-row slices / concatenates / sublane shuffles).
    o_w1t, o_w1b, o_w2, o_w3, o_mb, _ = _head_layout(Bp, H, H1, SZ)
    selL0 = hd_ref[0:Bp, 0:Bp]
    selL1 = hd_ref[Bp:2 * Bp, 0:Bp]
    selR0 = hd_ref[2 * Bp:3 * Bp, 0:Bp]
    selR1 = hd_ref[3 * Bp:4 * Bp, 0:Bp]
    mw1t = hd_ref[o_w1t:o_w1t + H, :]
    mw1b = hd_ref[o_w1b:o_w1b + H, :]
    mw2 = hd_ref[o_w2:o_w2 + H1, :]
    mw3 = hd_ref[o_w3:o_w3 + SZ, :]
    mb1 = hd_ref[o_mb:o_mb + Bp, :]
    mb2 = hd_ref[o_mb + Bp:o_mb + 2 * Bp, :]
    mb3 = hd_ref[o_mb + 2 * Bp:o_mb + 3 * Bp, :]

    left = (jnp.dot(selL0, h0, preferred_element_type=jnp.float32) +
            jnp.dot(selL1, h1, preferred_element_type=jnp.float32))
    right = (jnp.dot(selR0, h0, preferred_element_type=jnp.float32) +
             jnp.dot(selR1, h1, preferred_element_type=jnp.float32))

    a1 = jnp.maximum(
        jnp.dot(left, mw1t, preferred_element_type=jnp.float32) +
        jnp.dot(right, mw1b, preferred_element_type=jnp.float32) + mb1, 0.0)
    a2 = jnp.maximum(
        jnp.dot(a1[:, 0:H1], mw2, preferred_element_type=jnp.float32) + mb2, 0.0)
    out_ref[...] = (jnp.dot(a2[:, 0:SZ], mw3,
                            preferred_element_type=jnp.float32) + mb3)


# ----------------------------------------------------------------------------
# Wrapper: weight/bias slab packing + single pallas_call
# ----------------------------------------------------------------------------
def _gru_gate_parts(layer, H):
    """Per-gate (r, z, n) weights, fused input-side biases, hidden n-bias."""
    w_ih, w_hh = layer["w_ih"], layer["w_hh"]       # (in, 3H), (H, 3H)
    b_ih, b_hh = layer["b_ih"], layer["b_hh"]       # (1, 3H)
    r, z, n = slice(0, H), slice(H, 2 * H), slice(2 * H, 3 * H)
    w_parts = (w_ih[:, r], w_ih[:, z], w_ih[:, n])
    u_parts = (w_hh[:, r], w_hh[:, z], w_hh[:, n])
    bi_parts = (b_ih[:, r] + b_hh[:, r],            # r: biases always summed
                b_ih[:, z] + b_hh[:, z],            # z: biases always summed
                b_ih[:, n])                         # n: input-side bias only
    bhn = b_hh[:, n]                                # n: hidden-side bias (inside r*(.))
    return w_parts, u_parts, bi_parts, bhn


def _gate_block(parts, rows_out, H):
    """(rows_out, 3*128) slab: r at lanes 0:H, z at 128:128+H, n at 256:256+H."""
    rows_in = parts[0].shape[0]
    blk = jnp.zeros((rows_out, 3 * _LANE), jnp.float32)
    blk = blk.at[:rows_in, 0:H].set(parts[0])
    blk = blk.at[:rows_in, _LANE:_LANE + H].set(parts[1])
    blk = blk.at[:rows_in, 2 * _LANE:2 * _LANE + H].set(parts[2])
    return blk


def _fold_bn(w, b, gamma, beta, mean, var):
    """Fold an inference-mode BatchNorm1d into the preceding Linear."""
    s = gamma * jax.lax.rsqrt(var + _BN_EPS)        # (1, out)
    return w * s, b * s + beta - mean * s


def _lane_pad(a):
    return jnp.pad(a, ((0, 0), (0, _LANE - a.shape[1])))


@jax.jit
def birnn_forward(x_bct, params):
    """x_bct: (B, num_in, T) — same call convention as the PyTorch module."""
    B, C, T = x_bct.shape
    H = params["gru"][0]["w_hh"].shape[0]
    Bp = _round_up(B, _SUB)
    Cp = _round_up(C, _SUB)

    # ---- x: permute + pad + flatten to (T*Bp, Cp) in one tiny fused XLA op --
    x_tbc = jnp.transpose(x_bct, (2, 0, 1)).astype(jnp.float32)   # (T, B, C)
    x_tbc = jnp.pad(x_tbc, ((0, 0), (0, Bp - B), (0, Cp - C)))    # (T, Bp, Cp)
    x2d = x_tbc.reshape(T * Bp, Cp)

    # ---- GRU gate-weight slab (one DMA) -------------------------------------
    w0p, u0p, bi0p, bh0n = _gru_gate_parts(params["gru"][0], H)
    w1p, u1p, bi1p, bh1n = _gru_gate_parts(params["gru"][1], H)
    gw = jnp.concatenate([_gate_block(w0p, Cp, H),
                          _gate_block(u0p, H, H),
                          _gate_block(w1p, H, H),
                          _gate_block(u1p, H, H)], axis=0)        # (Cp+3H, 384)

    # ---- GRU bias slab (pre-broadcast to Bp rows; one DMA) ------------------
    gb = jnp.zeros((_SUB + 3 * Bp, 3 * _LANE), jnp.float32)
    gb = gb.at[0:1, :].set(_gate_block(bi0p, 1, H))
    gb = gb.at[_SUB:_SUB + Bp, 0:H].set(jnp.broadcast_to(bh0n, (Bp, H)))
    gb = gb.at[_SUB + Bp:_SUB + 2 * Bp, :].set(
        jnp.broadcast_to(_gate_block(bi1p, 1, H), (Bp, 3 * _LANE)))
    gb = gb.at[_SUB + 2 * Bp:_SUB + 3 * Bp, 0:H].set(
        jnp.broadcast_to(bh1n, (Bp, H)))

    # ---- MLP head slab: selection matrices + BN-folded Linears (one DMA) ----
    e = params["embed"]
    w1f, b1f = _fold_bn(e["w1"], e["b1"], e["bn1_g"], e["bn1_b"], e["bn1_m"], e["bn1_v"])
    w2f, b2f = _fold_bn(e["w2"], e["b2"], e["bn2_g"], e["bn2_b"], e["bn2_m"], e["bn2_v"])
    w3, b3 = e["w3"], e["b3"]
    H1, SZ, NOUT = w1f.shape[1], w2f.shape[1], w3.shape[1]

    # Compile-time 0/1 selection matrices reproducing h_n.view(B, 2H)
    # (layer-major flattening): feat[i] = [block(2i) | block(2i+1)],
    # block(j) = finals[j // B][j % B].  Rows i >= B are zero (mask padding).
    selL = [np.zeros((Bp, Bp), np.float32) for _ in range(_NUM_LAYERS)]
    selR = [np.zeros((Bp, Bp), np.float32) for _ in range(_NUM_LAYERS)]
    for i in range(B):
        l, b = divmod(2 * i, B)
        selL[l][i, b] = 1.0
        l, b = divmod(2 * i + 1, B)
        selR[l][i, b] = 1.0

    o_w1t, o_w1b, o_w2, o_w3, o_mb, _ = _head_layout(Bp, H, H1, SZ)
    hd = jnp.concatenate(
        [_lane_pad(jnp.asarray(s)) for s in (selL[0], selL[1], selR[0], selR[1])]
        + [_lane_pad(w1f[:H, :]),
           _lane_pad(w1f[H:, :]),
           _lane_pad(w2f),
           _lane_pad(w3),
           jnp.zeros((o_mb - (o_w3 + SZ), _LANE), jnp.float32),
           jnp.broadcast_to(_lane_pad(b1f), (Bp, _LANE)),
           jnp.broadcast_to(_lane_pad(b2f), (Bp, _LANE)),
           jnp.broadcast_to(_lane_pad(b3), (Bp, _LANE))],
        axis=0)                                                   # (rows, 128)

    kernel = functools.partial(birnn_fused_kernel,
                               T=T, Bp=Bp, Cp=Cp, H=H, H1=H1, SZ=SZ)
    # TODO(synk): at realistic batch sizes, add a batch-block grid with
    # dimension_semantics=("parallel",) (v7x megacore; size blocks against the
    # 64 MiB/TC v7x VMEM) and bf16 MXU operands; f32 is right while
    # latency-bound at these shapes.
    out_pad = pl.pallas_call(
        kernel,
        out_shape=jax.ShapeDtypeStruct((Bp, _LANE), jnp.float32),
        in_specs=[_VMEM(), _VMEM(), _VMEM(), _VMEM()],
        out_specs=_VMEM(),
    )(x2d, gw, gb, hd)
    # Padded batch rows B..Bp-1 are garbage (bias-driven) and never reach the
    # real logits (selection matrices have zero rows there); slice them away.
    return out_pad[:B, :NOUT]


# ----------------------------------------------------------------------------
# Pure-JAX reference (correctness check against the fused kernel)
# ----------------------------------------------------------------------------
def _gru_layer_ref(x_tbi, w_ih, w_hh, b_ih, b_hh):
    H = w_hh.shape[0]

    def step(h, x_t):
        gi = x_t @ w_ih + b_ih
        gh = h @ w_hh + b_hh
        r = jax.nn.sigmoid(gi[:, :H] + gh[:, :H])
        z = jax.nn.sigmoid(gi[:, H:2 * H] + gh[:, H:2 * H])
        n = jnp.tanh(gi[:, 2 * H:] + r * gh[:, 2 * H:])
        h_new = (1.0 - z) * n + z * h
        return h_new, h_new

    h0 = jnp.zeros((x_tbi.shape[1], H), jnp.float32)
    h_last, seq = jax.lax.scan(step, h0, x_tbi)
    return seq, h_last


def birnn_ref(x_bct, params):
    x_tbi = jnp.transpose(x_bct, (2, 0, 1)).astype(jnp.float32)
    B = x_bct.shape[0]
    H = params["gru"][0]["w_hh"].shape[0]
    seq = x_tbi
    finals = []
    for layer in params["gru"]:
        seq, h_fin = _gru_layer_ref(seq, layer["w_ih"], layer["w_hh"],
                                    layer["b_ih"], layer["b_hh"])
        finals.append(h_fin)
    feat = jnp.reshape(jnp.stack(finals, axis=0), (B, 2 * H))

    p = params["embed"]
    h = feat @ p["w1"] + p["b1"]
    h = (h - p["bn1_m"]) / jnp.sqrt(p["bn1_v"] + _BN_EPS) * p["bn1_g"] + p["bn1_b"]
    h = jnp.maximum(h, 0.0)
    h = h @ p["w2"] + p["b2"]
    h = (h - p["bn2_m"]) / jnp.sqrt(p["bn2_v"] + _BN_EPS) * p["bn2_g"] + p["bn2_b"]
    h = jnp.maximum(h, 0.0)
    return h @ p["w3"] + p["b3"]


# ----------------------------------------------------------------------------
# Deterministic parameter init (shapes follow BiRNN.__init__ with defaults)
# ----------------------------------------------------------------------------
def init_params(key, num_in, num_hidden):
    H = num_hidden
    sz = 18                      # large=True, lstm=False
    hidden1 = sz + 14            # 32
    embed_sz = 2 * H             # layers > 1

    keys = iter(jax.random.split(key, 32))

    def unif(k, shape, scale):
        return jax.random.uniform(k, shape, jnp.float32, -scale, scale)

    gru = []
    in_sizes = [num_in, H]       # layer 0 input = num_in, layer 1 input = H
    k_gru = 1.0 / jnp.sqrt(jnp.float32(H))
    for in_sz in in_sizes:
        gru.append({
            "w_ih": unif(next(keys), (in_sz, 3 * H), k_gru),   # torch (3H,in).T
            "w_hh": unif(next(keys), (H, 3 * H), k_gru),       # torch (3H,H).T
            "b_ih": unif(next(keys), (1, 3 * H), k_gru),
            "b_hh": unif(next(keys), (1, 3 * H), k_gru),
        })

    def linear(in_f, out_f):
        k_lin = 1.0 / jnp.sqrt(jnp.float32(in_f))
        return (unif(next(keys), (in_f, out_f), k_lin),
                unif(next(keys), (1, out_f), k_lin))

    w1, b1 = linear(embed_sz, hidden1)
    w2, b2 = linear(hidden1, sz)
    w3, b3 = linear(sz, 2)

    embed = {
        "w1": w1, "b1": b1,
        "bn1_g": jnp.ones((1, hidden1), jnp.float32),
        "bn1_b": jnp.zeros((1, hidden1), jnp.float32),
        "bn1_m": jnp.zeros((1, hidden1), jnp.float32),
        "bn1_v": jnp.ones((1, hidden1), jnp.float32),
        "w2": w2, "b2": b2,
        "bn2_g": jnp.ones((1, sz), jnp.float32),
        "bn2_b": jnp.zeros((1, sz), jnp.float32),
        "bn2_m": jnp.zeros((1, sz), jnp.float32),
        "bn2_v": jnp.ones((1, sz), jnp.float32),
        "w3": w3, "b3": b3,
    }
    return {"gru": gru, "embed": embed}


# ----------------------------------------------------------------------------
if __name__ == "__main__":
    B, NUM_IN, T, H = 2, 4, 8, 32

    key = jax.random.PRNGKey(0)
    k_x, k_p = jax.random.split(key)
    x = jax.random.normal(k_x, (B, NUM_IN, T), jnp.float32)   # (batch, num_in, seq)
    params = init_params(k_p, NUM_IN, H)

    out = birnn_forward(x, params)
    out = jax.block_until_ready(out)

    ref = birnn_ref(x, params)
    assert out.shape == (B, 2), out.shape
    assert jnp.allclose(out, ref, atol=1e-4, rtol=1e-4), (out, ref)

    print("KERNEL_OK")
</pallas_src>

<mosaic_0001>
module attributes {stable_mosaic.version = 11 : i64} {
  func.func @birnn_fused_kernel(%arg0: memref<64x8xf32, #tpu.memory_space<vmem>>, %arg1: memref<104x384xf32, #tpu.memory_space<vmem>>, %arg2: memref<32x384xf32, #tpu.memory_space<vmem>>, %arg3: memref<176x128xf32, #tpu.memory_space<vmem>>, %arg4: memref<8x128xf32, #tpu.memory_space<vmem>>) attributes {dimension_semantics = [], scalar_prefetch = 0 : i64, scratch_operands = 0 : i64, tpu.core_type = #tpu.core_type<tc>} {
    %c0 = arith.constant 0 : index
    %c0_0 = arith.constant 0 : index
    %0 = vector.load %arg1[%c0, %c0_0] : memref<104x384xf32, #tpu.memory_space<vmem>>, vector<8x384xf32>
    %c8 = arith.constant 8 : index
    %c0_1 = arith.constant 0 : index
    %1 = vector.load %arg1[%c8, %c0_1] : memref<104x384xf32, #tpu.memory_space<vmem>>, vector<32x384xf32>
    %c40 = arith.constant 40 : index
    %c0_2 = arith.constant 0 : index
    %2 = vector.load %arg1[%c40, %c0_2] : memref<104x384xf32, #tpu.memory_space<vmem>>, vector<32x384xf32>
    %c72 = arith.constant 72 : index
    %c0_3 = arith.constant 0 : index
    %3 = vector.load %arg1[%c72, %c0_3] : memref<104x384xf32, #tpu.memory_space<vmem>>, vector<32x384xf32>
    %c0_4 = arith.constant 0 : index
    %c0_5 = arith.constant 0 : index
    %4 = vector.load %arg2[%c0_4, %c0_5] : memref<32x384xf32, #tpu.memory_space<vmem>>, vector<1x384xf32>
    %c8_6 = arith.constant 8 : index
    %c0_7 = arith.constant 0 : index
    %5 = vector.load %arg2[%c8_6, %c0_7] : memref<32x384xf32, #tpu.memory_space<vmem>>, vector<8x32xf32>
    %c16 = arith.constant 16 : index
    %c0_8 = arith.constant 0 : index
    %6 = vector.load %arg2[%c16, %c0_8] : memref<32x384xf32, #tpu.memory_space<vmem>>, vector<8x384xf32>
    %c24 = arith.constant 24 : index
    %c0_9 = arith.constant 0 : index
    %7 = vector.load %arg2[%c24, %c0_9] : memref<32x384xf32, #tpu.memory_space<vmem>>, vector<8x32xf32>
    %c0_10 = arith.constant 0 : index
    %c0_11 = arith.constant 0 : index
    %8 = vector.load %arg0[%c0_10, %c0_11] : memref<64x8xf32, #tpu.memory_space<vmem>>, vector<64x8xf32>
    %cst = arith.constant dense<0.000000e+00> : vector<64x384xf32>
    %9 = tpu.matmul %8, %0, %cst {dimension_numbers = #tpu.dot_dimension_numbers<[1], [0], [0], [1], [0, 0, 1, 1], [], []>} : vector<64x8xf32>, vector<8x384xf32>, vector<64x384xf32> -> vector<64x384xf32>
    %10 = vector.broadcast %4 : vector<1x384xf32> to vector<64x384xf32>
    %11 = arith.addf %9, %10 : vector<64x384xf32>
    %cst_12 = arith.constant 0.000000e+00 : f32
    %12 = vector.broadcast %cst_12 : f32 to vector<8x32xf32>
    %cst_13 = arith.constant 0.000000e+00 : f32
    %13 = vector.broadcast %cst_13 : f32 to vector<8x32xf32>
    %14 = vector.extract_strided_slice %11 {offsets = [0, 0], sizes = [8, 384], strides = [1, 1]} : vector<64x384xf32> to vector<8x384xf32>
    %cst_14 = arith.constant dense<0.000000e+00> : vector<8x384xf32>
    %15 = tpu.matmul %12, %1, %cst_14 {dimension_numbers = #tpu.dot_dimension_numbers<[1], [0], [0], [1], [0, 0, 1, 1], [], []>} : vector<8x32xf32>, vector<32x384xf32>, vector<8x384xf32> -> vector<8x384xf32>
    %16 = vector.extract_strided_slice %14 {offsets = [0, 0], sizes = [8, 32], strides = [1, 1]} : vector<8x384xf32> to vector<8x32xf32>
    %17 = vector.extract_strided_slice %15 {offsets = [0, 0], sizes = [8, 32], strides = [1, 1]} : vector<8x384xf32> to vector<8x32xf32>
    %18 = arith.addf %16, %17 : vector<8x32xf32>
    %19 = arith.negf %18 : vector<8x32xf32>
    %20 = math.exp %19 : vector<8x32xf32>
    %cst_15 = arith.constant 1.000000e+00 : f32
    %21 = vector.broadcast %cst_15 : f32 to vector<8x32xf32>
    %22 = arith.addf %21, %20 : vector<8x32xf32>
    %23 = arith.divf %21, %22 : vector<8x32xf32>
    %24 = vector.extract_strided_slice %14 {offsets = [0, 128], sizes = [8, 32], strides = [1, 1]} : vector<8x384xf32> to vector<8x32xf32>
    %25 = vector.extract_strided_slice %15 {offsets = [0, 128], sizes = [8, 32], strides = [1, 1]} : vector<8x384xf32> to vector<8x32xf32>
    %26 = arith.addf %24, %25 : vector<8x32xf32>
    %27 = arith.negf %26 : vector<8x32xf32>
    %28 = math.exp %27 : vector<8x32xf32>
    %cst_16 = arith.constant 1.000000e+00 : f32
    %29 = vector.broadcast %cst_16 : f32 to vector<8x32xf32>
    %30 = arith.addf %29, %28 : vector<8x32xf32>
    %31 = arith.divf %29, %30 : vector<8x32xf32>
    %32 = vector.extract_strided_slice %14 {offsets = [0, 256], sizes = [8, 32], strides = [1, 1]} : vector<8x384xf32> to vector<8x32xf32>
    %33 = vector.extract_strided_slice %15 {offsets = [0, 256], sizes = [8, 32], strides = [1, 1]} : vector<8x384xf32> to vector<8x32xf32>
    %34 = arith.addf %33, %5 : vector<8x32xf32>
    %35 = arith.mulf %23, %34 : vector<8x32xf32>
    %36 = arith.addf %32, %35 : vector<8x32xf32>
    %37 = math.tanh %36 : vector<8x32xf32>
    %38 = arith.subf %12, %37 : vector<8x32xf32>
    %39 = arith.mulf %31, %38 : vector<8x32xf32>
    %40 = arith.addf %37, %39 : vector<8x32xf32>
    %cst_17 = arith.constant dense<0.000000e+00> : vector<8x384xf32>
    %41 = tpu.matmul %40, %2, %cst_17 {dimension_numbers = #tpu.dot_dimension_numbers<[1], [0], [0], [1], [0, 0, 1, 1], [], []>} : vector<8x32xf32>, vector<32x384xf32>, vector<8x384xf32> -> vector<8x384xf32>
    %42 = arith.addf %41, %6 : vector<8x384xf32>
    %cst_18 = arith.constant dense<0.000000e+00> : vector<8x384xf32>
    %43 = tpu.matmul %13, %3, %cst_18 {dimension_numbers = #tpu.dot_dimension_numbers<[1], [0], [0], [1], [0, 0, 1, 1], [], []>} : vector<8x32xf32>, vector<32x384xf32>, vector<8x384xf32> -> vector<8x384xf32>
    %44 = vector.extract_strided_slice %42 {offsets = [0, 0], sizes = [8, 32], strides = [1, 1]} : vector<8x384xf32> to vector<8x32xf32>
    %45 = vector.extract_strided_slice %43 {offsets = [0, 0], sizes = [8, 32], strides = [1, 1]} : vector<8x384xf32> to vector<8x32xf32>
    %46 = arith.addf %44, %45 : vector<8x32xf32>
    %47 = arith.negf %46 : vector<8x32xf32>
    %48 = math.exp %47 : vector<8x32xf32>
    %cst_19 = arith.constant 1.000000e+00 : f32
    %49 = vector.broadcast %cst_19 : f32 to vector<8x32xf32>
    %50 = arith.addf %49, %48 : vector<8x32xf32>
    %51 = arith.divf %49, %50 : vector<8x32xf32>
    %52 = vector.extract_strided_slice %42 {offsets = [0, 128], sizes = [8, 32], strides = [1, 1]} : vector<8x384xf32> to vector<8x32xf32>
    %53 = vector.extract_strided_slice %43 {offsets = [0, 128], sizes = [8, 32], strides = [1, 1]} : vector<8x384xf32> to vector<8x32xf32>
    %54 = arith.addf %52, %53 : vector<8x32xf32>
    %55 = arith.negf %54 : vector<8x32xf32>
    %56 = math.exp %55 : vector<8x32xf32>
    %cst_20 = arith.constant 1.000000e+00 : f32
    %57 = vector.broadcast %cst_20 : f32 to vector<8x32xf32>
    %58 = arith.addf %57, %56 : vector<8x32xf32>
    %59 = arith.divf %57, %58 : vector<8x32xf32>
    %60 = vector.extract_strided_slice %42 {offsets = [0, 256], sizes = [8, 32], strides = [1, 1]} : vector<8x384xf32> to vector<8x32xf32>
    %61 = vector.extract_strided_slice %43 {offsets = [0, 256], sizes = [8, 32], strides = [1, 1]} : vector<8x384xf32> to vector<8x32xf32>
    %62 = arith.addf %61, %7 : vector<8x32xf32>
    %63 = arith.mulf %51, %62 : vector<8x32xf32>
    %64 = arith.addf %60, %63 : vector<8x32xf32>
    %65 = math.tanh %64 : vector<8x32xf32>
    %66 = arith.subf %13, %65 : vector<8x32xf32>
    %67 = arith.mulf %59, %66 : vector<8x32xf32>
    %68 = arith.addf %65, %67 : vector<8x32xf32>
    %69 = vector.extract_strided_slice %11 {offsets = [8, 0], sizes = [8, 384], strides = [1, 1]} : vector<64x384xf32> to vector<8x384xf32>
    %cst_21 = arith.constant dense<0.000000e+00> : vector<8x384xf32>
    %70 = tpu.matmul %40, %1, %cst_21 {dimension_numbers = #tpu.dot_dimension_numbers<[1], [0], [0], [1], [0, 0, 1, 1], [], []>} : vector<8x32xf32>, vector<32x384xf32>, vector<8x384xf32> -> vector<8x384xf32>
    %71 = vector.extract_strided_slice %69 {offsets = [0, 0], sizes = [8, 32], strides = [1, 1]} : vector<8x384xf32> to vector<8x32xf32>
    %72 = vector.extract_strided_slice %70 {offsets = [0, 0], sizes = [8, 32], strides = [1, 1]} : vector<8x384xf32> to vector<8x32xf32>
    %73 = arith.addf %71, %72 : vector<8x32xf32>
    %74 = arith.negf %73 : vector<8x32xf32>
    %75 = math.exp %74 : vector<8x32xf32>
    %cst_22 = arith.constant 1.000000e+00 : f32
    %76 = vector.broadcast %cst_22 : f32 to vector<8x32xf32>
    %77 = arith.addf %76, %75 : vector<8x32xf32>
    %78 = arith.divf %76, %77 : vector<8x32xf32>
    %79 = vector.extract_strided_slice %69 {offsets = [0, 128], sizes = [8, 32], strides = [1, 1]} : vector<8x384xf32> to vector<8x32xf32>
    %80 = vector.extract_strided_slice %70 {offsets = [0, 128], sizes = [8, 32], strides = [1, 1]} : vector<8x384xf32> to vector<8x32xf32>
    %81 = arith.addf %79, %80 : vector<8x32xf32>
    %82 = arith.negf %81 : vector<8x32xf32>
    %83 = math.exp %82 : vector<8x32xf32>
    %cst_23 = arith.constant 1.000000e+00 : f32
    %84 = vector.broadcast %cst_23 : f32 to vector<8x32xf32>
    %85 = arith.addf %84, %83 : vector<8x32xf32>
    %86 = arith.divf %84, %85 : vector<8x32xf32>
    %87 = vector.extract_strided_slice %69 {offsets = [0, 256], sizes = [8, 32], strides = [1, 1]} : vector<8x384xf32> to vector<8x32xf32>
    %88 = vector.extract_strided_slice %70 {offsets = [0, 256], sizes = [8, 32], strides = [1, 1]} : vector<8x384xf32> to vector<8x32xf32>
    %89 = arith.addf %88, %5 : vector<8x32xf32>
    %90 = arith.mulf %78, %89 : vector<8x32xf32>
    %91 = arith.addf %87, %90 : vector<8x32xf32>
    %92 = math.tanh %91 : vector<8x32xf32>
    %93 = arith.subf %40, %92 : vector<8x32xf32>
    %94 = arith.mulf %86, %93 : vector<8x32xf32>
    %95 = arith.addf %92, %94 : vector<8x32xf32>
    %cst_24 = arith.constant dense<0.000000e+00> : vector<8x384xf32>
    %96 = tpu.matmul %95, %2, %cst_24 {dimension_numbers = #tpu.dot_dimension_numbers<[1], [0], [0], [1], [0, 0, 1, 1], [], []>} : vector<8x32xf32>, vector<32x384xf32>, vector<8x384xf32> -> vector<8x384xf32>
    %97 = arith.addf %96, %6 : vector<8x384xf32>
    %cst_25 = arith.constant dense<0.000000e+00> : vector<8x384xf32>
    %98 = tpu.matmul %68, %3, %cst_25 {dimension_numbers = #tpu.dot_dimension_numbers<[1], [0], [0], [1], [0, 0, 1, 1], [], []>} : vector<8x32xf32>, vector<32x384xf32>, vector<8x384xf32> -> vector<8x384xf32>
    %99 = vector.extract_strided_slice %97 {offsets = [0, 0], sizes = [8, 32], strides = [1, 1]} : vector<8x384xf32> to vector<8x32xf32>
    %100 = vector.extract_strided_slice %98 {offsets = [0, 0], sizes = [8, 32], strides = [1, 1]} : vector<8x384xf32> to vector<8x32xf32>
    %101 = arith.addf %99, %100 : vector<8x32xf32>
    %102 = arith.negf %101 : vector<8x32xf32>
    %103 = math.exp %102 : vector<8x32xf32>
    %cst_26 = arith.constant 1.000000e+00 : f32
    %104 = vector.broadcast %cst_26 : f32 to vector<8x32xf32>
    %105 = arith.addf %104, %103 : vector<8x32xf32>
    %106 = arith.divf %104, %105 : vector<8x32xf32>
    %107 = vector.extract_strided_slice %97 {offsets = [0, 128], sizes = [8, 32], strides = [1, 1]} : vector<8x384xf32> to vector<8x32xf32>
    %108 = vector.extract_strided_slice %98 {offsets = [0, 128], sizes = [8, 32], strides = [1, 1]} : vector<8x384xf32> to vector<8x32xf32>
    %109 = arith.addf %107, %108 : vector<8x32xf32>
    %110 = arith.negf %109 : vector<8x32xf32>
    %111 = math.exp %110 : vector<8x32xf32>
    %cst_27 = arith.constant 1.000000e+00 : f32
    %112 = vector.broadcast %cst_27 : f32 to vector<8x32xf32>
    %113 = arith.addf %112, %111 : vector<8x32xf32>
    %114 = arith.divf %112, %113 : vector<8x32xf32>
    %115 = vector.extract_strided_slice %97 {offsets = [0, 256], sizes = [8, 32], strides = [1, 1]} : vector<8x384xf32> to vector<8x32xf32>
    %116 = vector.extract_strided_slice %98 {offsets = [0, 256], sizes = [8, 32], strides = [1, 1]} : vector<8x384xf32> to vector<8x32xf32>
    %117 = arith.addf %116, %7 : vector<8x32xf32>
    %118 = arith.mulf %106, %117 : vector<8x32xf32>
    %119 = arith.addf %115, %118 : vector<8x32xf32>
    %120 = math.tanh %119 : vector<8x32xf32>
    %121 = arith.subf %68, %120 : vector<8x32xf32>
    %122 = arith.mulf %114, %121 : vector<8x32xf32>
    %123 = arith.addf %120, %122 : vector<8x32xf32>
    %124 = vector.extract_strided_slice %11 {offsets = [16, 0], sizes = [8, 384], strides = [1, 1]} : vector<64x384xf32> to vector<8x384xf32>
    %cst_28 = arith.constant dense<0.000000e+00> : vector<8x384xf32>
    %125 = tpu.matmul %95, %1, %cst_28 {dimension_numbers = #tpu.dot_dimension_numbers<[1], [0], [0], [1], [0, 0, 1, 1], [], []>} : vector<8x32xf32>, vector<32x384xf32>, vector<8x384xf32> -> vector<8x384xf32>
    %126 = vector.extract_strided_slice %124 {offsets = [0, 0], sizes = [8, 32], strides = [1, 1]} : vector<8x384xf32> to vector<8x32xf32>
    %127 = vector.extract_strided_slice %125 {offsets = [0, 0], sizes = [8, 32], strides = [1, 1]} : vector<8x384xf32> to vector<8x32xf32>
    %128 = arith.addf %126, %127 : vector<8x32xf32>
    %129 = arith.negf %128 : vector<8x32xf32>
    %130 = math.exp %129 : vector<8x32xf32>
    %cst_29 = arith.constant 1.000000e+00 : f32
    %131 = vector.broadcast %cst_29 : f32 to vector<8x32xf32>
    %132 = arith.addf %131, %130 : vector<8x32xf32>
    %133 = arith.divf %131, %132 : vector<8x32xf32>
    %134 = vector.extract_strided_slice %124 {offsets = [0, 128], sizes = [8, 32], strides = [1, 1]} : vector<8x384xf32> to vector<8x32xf32>
    %135 = vector.extract_strided_slice %125 {offsets = [0, 128], sizes = [8, 32], strides = [1, 1]} : vector<8x384xf32> to vector<8x32xf32>
    %136 = arith.addf %134, %135 : vector<8x32xf32>
    %137 = arith.negf %136 : vector<8x32xf32>
    %138 = math.exp %137 : vector<8x32xf32>
    %cst_30 = arith.constant 1.000000e+00 : f32
    %139 = vector.broadcast %cst_30 : f32 to vector<8x32xf32>
    %140 = arith.addf %139, %138 : vector<8x32xf32>
    %141 = arith.divf %139, %140 : vector<8x32xf32>
    %142 = vector.extract_strided_slice %124 {offsets = [0, 256], sizes = [8, 32], strides = [1, 1]} : vector<8x384xf32> to vector<8x32xf32>
    %143 = vector.extract_strided_slice %125 {offsets = [0, 256], sizes = [8, 32], strides = [1, 1]} : vector<8x384xf32> to vector<8x32xf32>
    %144 = arith.addf %143, %5 : vector<8x32xf32>
    %145 = arith.mulf %133, %144 : vector<8x32xf32>
    %146 = arith.addf %142, %145 : vector<8x32xf32>
    %147 = math.tanh %146 : vector<8x32xf32>
    %148 = arith.subf %95, %147 : vector<8x32xf32>
    %149 = arith.mulf %141, %148 : vector<8x32xf32>
    %150 = arith.addf %147, %149 : vector<8x32xf32>
    %cst_31 = arith.constant dense<0.000000e+00> : vector<8x384xf32>
    %151 = tpu.matmul %150, %2, %cst_31 {dimension_numbers = #tpu.dot_dimension_numbers<[1], [0], [0], [1], [0, 0, 1, 1], [], []>} : vector<8x32xf32>, vector<32x384xf32>, vector<8x384xf32> -> vector<8x384xf32>
    %152 = arith.addf %151, %6 : vector<8x384xf32>
    %cst_32 = arith.constant dense<0.000000e+00> : vector<8x384xf32>
    %153 = tpu.matmul %123, %3, %cst_32 {dimension_numbers = #tpu.dot_dimension_numbers<[1], [0], [0], [1], [0, 0, 1, 1], [], []>} : vector<8x32xf32>, vector<32x384xf32>, vector<8x384xf32> -> vector<8x384xf32>
    %154 = vector.extract_strided_slice %152 {offsets = [0, 0], sizes = [8, 32], strides = [1, 1]} : vector<8x384xf32> to vector<8x32xf32>
    %155 = vector.extract_strided_slice %153 {offsets = [0, 0], sizes = [8, 32], strides = [1, 1]} : vector<8x384xf32> to vector<8x32xf32>
    %156 = arith.addf %154, %155 : vector<8x32xf32>
    %157 = arith.negf %156 : vector<8x32xf32>
    %158 = math.exp %157 : vector<8x32xf32>
    %cst_33 = arith.constant 1.000000e+00 : f32
    %159 = vector.broadcast %cst_33 : f32 to vector<8x32xf32>
    %160 = arith.addf %159, %158 : vector<8x32xf32>
    %161 = arith.divf %159, %160 : vector<8x32xf32>
    %162 = vector.extract_strided_slice %152 {offsets = [0, 128], sizes = [8, 32], strides = [1, 1]} : vector<8x384xf32> to vector<8x32xf32>
    %163 = vector.extract_strided_slice %153 {offsets = [0, 128], sizes = [8, 32], strides = [1, 1]} : vector<8x384xf32> to vector<8x32xf32>
    %164 = arith.addf %162, %163 : vector<8x32xf32>
    %165 = arith.negf %164 : vector<8x32xf32>
    %166 = math.exp %165 : vector<8x32xf32>
    %cst_34 = arith.constant 1.000000e+00 : f32
    %167 = vector.broadcast %cst_34 : f32 to vector<8x32xf32>
    %168 = arith.addf %167, %166 : vector<8x32xf32>
    %169 = arith.divf %167, %168 : vector<8x32xf32>
    %170 = vector.extract_strided_slice %152 {offsets = [0, 256], sizes = [8, 32], strides = [1, 1]} : vector<8x384xf32> to vector<8x32xf32>
    %171 = vector.extract_strided_slice %153 {offsets = [0, 256], sizes = [8, 32], strides = [1, 1]} : vector<8x384xf32> to vector<8x32xf32>
    %172 = arith.addf %171, %7 : vector<8x32xf32>
    %173 = arith.mulf %161, %172 : vector<8x32xf32>
    %174 = arith.addf %170, %173 : vector<8x32xf32>
    %175 = math.tanh %174 : vector<8x32xf32>
    %176 = arith.subf %123, %175 : vector<8x32xf32>
    %177 = arith.mulf %169, %176 : vector<8x32xf32>
    %178 = arith.addf %175, %177 : vector<8x32xf32>
    %179 = vector.extract_strided_slice %11 {offsets = [24, 0], sizes = [8, 384], strides = [1, 1]} : vector<64x384xf32> to vector<8x384xf32>
    %cst_35 = arith.constant dense<0.000000e+00> : vector<8x384xf32>
    %180 = tpu.matmul %150, %1, %cst_35 {dimension_numbers = #tpu.dot_dimension_numbers<[1], [0], [0], [1], [0, 0, 1, 1], [], []>} : vector<8x32xf32>, vector<32x384xf32>, vector<8x384xf32> -> vector<8x384xf32>
    %181 = vector.extract_strided_slice %179 {offsets = [0, 0], sizes = [8, 32], strides = [1, 1]} : vector<8x384xf32> to vector<8x32xf32>
    %182 = vector.extract_strided_slice %180 {offsets = [0, 0], sizes = [8, 32], strides = [1, 1]} : vector<8x384xf32> to vector<8x32xf32>
    %183 = arith.addf %181, %182 : vector<8x32xf32>
    %184 = arith.negf %183 : vector<8x32xf32>
    %185 = math.exp %184 : vector<8x32xf32>
    %cst_36 = arith.constant 1.000000e+00 : f32
    %186 = vector.broadcast %cst_36 : f32 to vector<8x32xf32>
    %187 = arith.addf %186, %185 : vector<8x32xf32>
    %188 = arith.divf %186, %187 : vector<8x32xf32>
    %189 = vector.extract_strided_slice %179 {offsets = [0, 128], sizes = [8, 32], strides = [1, 1]} : vector<8x384xf32> to vector<8x32xf32>
    %190 = vector.extract_strided_slice %180 {offsets = [0, 128], sizes = [8, 32], strides = [1, 1]} : vector<8x384xf32> to vector<8x32xf32>
    %191 = arith.addf %189, %190 : vector<8x32xf32>
    %192 = arith.negf %191 : vector<8x32xf32>
    %193 = math.exp %192 : vector<8x32xf32>
    %cst_37 = arith.constant 1.000000e+00 : f32
    %194 = vector.broadcast %cst_37 : f32 to vector<8x32xf32>
    %195 = arith.addf %194, %193 : vector<8x32xf32>
    %196 = arith.divf %194, %195 : vector<8x32xf32>
    %197 = vector.extract_strided_slice %179 {offsets = [0, 256], sizes = [8, 32], strides = [1, 1]} : vector<8x384xf32> to vector<8x32xf32>
    %198 = vector.extract_strided_slice %180 {offsets = [0, 256], sizes = [8, 32], strides = [1, 1]} : vector<8x384xf32> to vector<8x32xf32>
    %199 = arith.addf %198, %5 : vector<8x32xf32>
    %200 = arith.mulf %188, %199 : vector<8x32xf32>
    %201 = arith.addf %197, %200 : vector<8x32xf32>
    %202 = math.tanh %201 : vector<8x32xf32>
    %203 = arith.subf %150, %202 : vector<8x32xf32>
    %204 = arith.mulf %196, %203 : vector<8x32xf32>
    %205 = arith.addf %202, %204 : vector<8x32xf32>
    %cst_38 = arith.constant dense<0.000000e+00> : vector<8x384xf32>
    %206 = tpu.matmul %205, %2, %cst_38 {dimension_numbers = #tpu.dot_dimension_numbers<[1], [0], [0], [1], [0, 0, 1, 1], [], []>} : vector<8x32xf32>, vector<32x384xf32>, vector<8x384xf32> -> vector<8x384xf32>
    %207 = arith.addf %206, %6 : vector<8x384xf32>
    %cst_39 = arith.constant dense<0.000000e+00> : vector<8x384xf32>
    %208 = tpu.matmul %178, %3, %cst_39 {dimension_numbers = #tpu.dot_dimension_numbers<[1], [0], [0], [1], [0, 0, 1, 1], [], []>} : vector<8x32xf32>, vector<32x384xf32>, vector<8x384xf32> -> vector<8x384xf32>
    %209 = vector.extract_strided_slice %207 {offsets = [0, 0], sizes = [8, 32], strides = [1, 1]} : vector<8x384xf32> to vector<8x32xf32>
    %210 = vector.extract_strided_slice %208 {offsets = [0, 0], sizes = [8, 32], strides = [1, 1]} : vector<8x384xf32> to vector<8x32xf32>
    %211 = arith.addf %209, %210 : vector<8x32xf32>
    %212 = arith.negf %211 : vector<8x32xf32>
    %213 = math.exp %212 : vector<8x32xf32>
    %cst_40 = arith.constant 1.000000e+00 : f32
    %214 = vector.broadcast %cst_40 : f32 to vector<8x32xf32>
    %215 = arith.addf %214, %213 : vector<8x32xf32>
    %216 = arith.divf %214, %215 : vector<8x32xf32>
    %217 = vector.extract_strided_slice %207 {offsets = [0, 128], sizes = [8, 32], strides = [1, 1]} : vector<8x384xf32> to vector<8x32xf32>
    %218 = vector.extract_strided_slice %208 {offsets = [0, 128], sizes = [8, 32], strides = [1, 1]} : vector<8x384xf32> to vector<8x32xf32>
    %219 = arith.addf %217, %218 : vector<8x32xf32>
    %220 = arith.negf %219 : vector<8x32xf32>
    %221 = math.exp %220 : vector<8x32xf32>
    %cst_41 = arith.constant 1.000000e+00 : f32
    %222 = vector.broadcast %cst_41 : f32 to vector<8x32xf32>
    %223 = arith.addf %222, %221 : vector<8x32xf32>
    %224 = arith.divf %222, %223 : vector<8x32xf32>
    %225 = vector.extract_strided_slice %207 {offsets = [0, 256], sizes = [8, 32], strides = [1, 1]} : vector<8x384xf32> to vector<8x32xf32>
    %226 = vector.extract_strided_slice %208 {offsets = [0, 256], sizes = [8, 32], strides = [1, 1]} : vector<8x384xf32> to vector<8x32xf32>
    %227 = arith.addf %226, %7 : vector<8x32xf32>
    %228 = arith.mulf %216, %227 : vector<8x32xf32>
    %229 = arith.addf %225, %228 : vector<8x32xf32>
    %230 = math.tanh %229 : vector<8x32xf32>
    %231 = arith.subf %178, %230 : vector<8x32xf32>
    %232 = arith.mulf %224, %231 : vector<8x32xf32>
    %233 = arith.addf %230, %232 : vector<8x32xf32>
    %234 = vector.extract_strided_slice %11 {offsets = [32, 0], sizes = [8, 384], strides = [1, 1]} : vector<64x384xf32> to vector<8x384xf32>
    %cst_42 = arith.constant dense<0.000000e+00> : vector<8x384xf32>
    %235 = tpu.matmul %205, %1, %cst_42 {dimension_numbers = #tpu.dot_dimension_numbers<[1], [0], [0], [1], [0, 0, 1, 1], [], []>} : vector<8x32xf32>, vector<32x384xf32>, vector<8x384xf32> -> vector<8x384xf32>
    %236 = vector.extract_strided_slice %234 {offsets = [0, 0], sizes = [8, 32], strides = [1, 1]} : vector<8x384xf32> to vector<8x32xf32>
    %237 = vector.extract_strided_slice %235 {offsets = [0, 0], sizes = [8, 32], strides = [1, 1]} : vector<8x384xf32> to vector<8x32xf32>
    %238 = arith.addf %236, %237 : vector<8x32xf32>
    %239 = arith.negf %238 : vector<8x32xf32>
    %240 = math.exp %239 : vector<8x32xf32>
    %cst_43 = arith.constant 1.000000e+00 : f32
    %241 = vector.broadcast %cst_43 : f32 to vector<8x32xf32>
    %242 = arith.addf %241, %240 : vector<8x32xf32>
    %243 = arith.divf %241, %242 : vector<8x32xf32>
    %244 = vector.extract_strided_slice %234 {offsets = [0, 128], sizes = [8, 32], strides = [1, 1]} : vector<8x384xf32> to vector<8x32xf32>
    %245 = vector.extract_strided_slice %235 {offsets = [0, 128], sizes = [8, 32], strides = [1, 1]} : vector<8x384xf32> to vector<8x32xf32>
    %246 = arith.addf %244, %245 : vector<8x32xf32>
    %247 = arith.negf %246 : vector<8x32xf32>
    %248 = math.exp %247 : vector<8x32xf32>
    %cst_44 = arith.constant 1.000000e+00 : f32
    %249 = vector.broadcast %cst_44 : f32 to vector<8x32xf32>
    %250 = arith.addf %249, %248 : vector<8x32xf32>
    %251 = arith.divf %249, %250 : vector<8x32xf32>
    %252 = vector.extract_strided_slice %234 {offsets = [0, 256], sizes = [8, 32], strides = [1, 1]} : vector<8x384xf32> to vector<8x32xf32>
    %253 = vector.extract_strided_slice %235 {offsets = [0, 256], sizes = [8, 32], strides = [1, 1]} : vector<8x384xf32> to vector<8x32xf32>
    %254 = arith.addf %253, %5 : vector<8x32xf32>
    %255 = arith.mulf %243, %254 : vector<8x32xf32>
    %256 = arith.addf %252, %255 : vector<8x32xf32>
    %257 = math.tanh %256 : vector<8x32xf32>
    %258 = arith.subf %205, %257 : vector<8x32xf32>
    %259 = arith.mulf %251, %258 : vector<8x32xf32>
    %260 = arith.addf %257, %259 : vector<8x32xf32>
    %cst_45 = arith.constant dense<0.000000e+00> : vector<8x384xf32>
    %261 = tpu.matmul %260, %2, %cst_45 {dimension_numbers = #tpu.dot_dimension_numbers<[1], [0], [0], [1], [0, 0, 1, 1], [], []>} : vector<8x32xf32>, vector<32x384xf32>, vector<8x384xf32> -> vector<8x384xf32>
    %262 = arith.addf %261, %6 : vector<8x384xf32>
    %cst_46 = arith.constant dense<0.000000e+00> : vector<8x384xf32>
    %263 = tpu.matmul %233, %3, %cst_46 {dimension_numbers = #tpu.dot_dimension_numbers<[1], [0], [0], [1], [0, 0, 1, 1], [], []>} : vector<8x32xf32>, vector<32x384xf32>, vector<8x384xf32> -> vector<8x384xf32>
    %264 = vector.extract_strided_slice %262 {offsets = [0, 0], sizes = [8, 32], strides = [1, 1]} : vector<8x384xf32> to vector<8x32xf32>
    %265 = vector.extract_strided_slice %263 {offsets = [0, 0], sizes = [8, 32], strides = [1, 1]} : vector<8x384xf32> to vector<8x32xf32>
    %266 = arith.addf %264, %265 : vector<8x32xf32>
    %267 = arith.negf %266 : vector<8x32xf32>
    %268 = math.exp %267 : vector<8x32xf32>
    %cst_47 = arith.constant 1.000000e+00 : f32
    %269 = vector.broadcast %cst_47 : f32 to vector<8x32xf32>
    %270 = arith.addf %269, %268 : vector<8x32xf32>
    %271 = arith.divf %269, %270 : vector<8x32xf32>
    %272 = vector.extract_strided_slice %262 {offsets = [0, 128], sizes = [8, 32], strides = [1, 1]} : vector<8x384xf32> to vector<8x32xf32>
    %273 = vector.extract_strided_slice %263 {offsets = [0, 128], sizes = [8, 32], strides = [1, 1]} : vector<8x384xf32> to vector<8x32xf32>
    %274 = arith.addf %272, %273 : vector<8x32xf32>
    %275 = arith.negf %274 : vector<8x32xf32>
    %276 = math.exp %275 : vector<8x32xf32>
    %cst_48 = arith.constant 1.000000e+00 : f32
    %277 = vector.broadcast %cst_48 : f32 to vector<8x32xf32>
    %278 = arith.addf %277, %276 : vector<8x32xf32>
    %279 = arith.divf %277, %278 : vector<8x32xf32>
    %280 = vector.extract_strided_slice %262 {offsets = [0, 256], sizes = [8, 32], strides = [1, 1]} : vector<8x384xf32> to vector<8x32xf32>
    %281 = vector.extract_strided_slice %263 {offsets = [0, 256], sizes = [8, 32], strides = [1, 1]} : vector<8x384xf32> to vector<8x32xf32>
    %282 = arith.addf %281, %7 : vector<8x32xf32>
    %283 = arith.mulf %271, %282 : vector<8x32xf32>
    %284 = arith.addf %280, %283 : vector<8x32xf32>
    %285 = math.tanh %284 : vector<8x32xf32>
    %286 = arith.subf %233, %285 : vector<8x32xf32>
    %287 = arith.mulf %279, %286 : vector<8x32xf32>
    %288 = arith.addf %285, %287 : vector<8x32xf32>
    %289 = vector.extract_strided_slice %11 {offsets = [40, 0], sizes = [8, 384], strides = [1, 1]} : vector<64x384xf32> to vector<8x384xf32>
    %cst_49 = arith.constant dense<0.000000e+00> : vector<8x384xf32>
    %290 = tpu.matmul %260, %1, %cst_49 {dimension_numbers = #tpu.dot_dimension_numbers<[1], [0], [0], [1], [0, 0, 1, 1], [], []>} : vector<8x32xf32>, vector<32x384xf32>, vector<8x384xf32> -> vector<8x384xf32>
    %291 = vector.extract_strided_slice %289 {offsets = [0, 0], sizes = [8, 32], strides = [1, 1]} : vector<8x384xf32> to vector<8x32xf32>
    %292 = vector.extract_strided_slice %290 {offsets = [0, 0], sizes = [8, 32], strides = [1, 1]} : vector<8x384xf32> to vector<8x32xf32>
    %293 = arith.addf %291, %292 : vector<8x32xf32>
    %294 = arith.negf %293 : vector<8x32xf32>
    %295 = math.exp %294 : vector<8x32xf32>
    %cst_50 = arith.constant 1.000000e+00 : f32
    %296 = vector.broadcast %cst_50 : f32 to vector<8x32xf32>
    %297 = arith.addf %296, %295 : vector<8x32xf32>
    %298 = arith.divf %296, %297 : vector<8x32xf32>
    %299 = vector.extract_strided_slice %289 {offsets = [0, 128], sizes = [8, 32], strides = [1, 1]} : vector<8x384xf32> to vector<8x32xf32>
    %300 = vector.extract_strided_slice %290 {offsets = [0, 128], sizes = [8, 32], strides = [1, 1]} : vector<8x384xf32> to vector<8x32xf32>
    %301 = arith.addf %299, %300 : vector<8x32xf32>
    %302 = arith.negf %301 : vector<8x32xf32>
    %303 = math.exp %302 : vector<8x32xf32>
    %cst_51 = arith.constant 1.000000e+00 : f32
    %304 = vector.broadcast %cst_51 : f32 to vector<8x32xf32>
    %305 = arith.addf %304, %303 : vector<8x32xf32>
    %306 = arith.divf %304, %305 : vector<8x32xf32>
    %307 = vector.extract_strided_slice %289 {offsets = [0, 256], sizes = [8, 32], strides = [1, 1]} : vector<8x384xf32> to vector<8x32xf32>
    %308 = vector.extract_strided_slice %290 {offsets = [0, 256], sizes = [8, 32], strides = [1, 1]} : vector<8x384xf32> to vector<8x32xf32>
    %309 = arith.addf %308, %5 : vector<8x32xf32>
    %310 = arith.mulf %298, %309 : vector<8x32xf32>
    %311 = arith.addf %307, %310 : vector<8x32xf32>
    %312 = math.tanh %311 : vector<8x32xf32>
    %313 = arith.subf %260, %312 : vector<8x32xf32>
    %314 = arith.mulf %306, %313 : vector<8x32xf32>
    %315 = arith.addf %312, %314 : vector<8x32xf32>
    %cst_52 = arith.constant dense<0.000000e+00> : vector<8x384xf32>
    %316 = tpu.matmul %315, %2, %cst_52 {dimension_numbers = #tpu.dot_dimension_numbers<[1], [0], [0], [1], [0, 0, 1, 1], [], []>} : vector<8x32xf32>, vector<32x384xf32>, vector<8x384xf32> -> vector<8x384xf32>
    %317 = arith.addf %316, %6 : vector<8x384xf32>
    %cst_53 = arith.constant dense<0.000000e+00> : vector<8x384xf32>
    %318 = tpu.matmul %288, %3, %cst_53 {dimension_numbers = #tpu.dot_dimension_numbers<[1], [0], [0], [1], [0, 0, 1, 1], [], []>} : vector<8x32xf32>, vector<32x384xf32>, vector<8x384xf32> -> vector<8x384xf32>
    %319 = vector.extract_strided_slice %317 {offsets = [0, 0], sizes = [8, 32], strides = [1, 1]} : vector<8x384xf32> to vector<8x32xf32>
    %320 = vector.extract_strided_slice %318 {offsets = [0, 0], sizes = [8, 32], strides = [1, 1]} : vector<8x384xf32> to vector<8x32xf32>
    %321 = arith.addf %319, %320 : vector<8x32xf32>
    %322 = arith.negf %321 : vector<8x32xf32>
    %323 = math.exp %322 : vector<8x32xf32>
    %cst_54 = arith.constant 1.000000e+00 : f32
    %324 = vector.broadcast %cst_54 : f32 to vector<8x32xf32>
    %325 = arith.addf %324, %323 : vector<8x32xf32>
    %326 = arith.divf %324, %325 : vector<8x32xf32>
    %327 = vector.extract_strided_slice %317 {offsets = [0, 128], sizes = [8, 32], strides = [1, 1]} : vector<8x384xf32> to vector<8x32xf32>
    %328 = vector.extract_strided_slice %318 {offsets = [0, 128], sizes = [8, 32], strides = [1, 1]} : vector<8x384xf32> to vector<8x32xf32>
    %329 = arith.addf %327, %328 : vector<8x32xf32>
    %330 = arith.negf %329 : vector<8x32xf32>
    %331 = math.exp %330 : vector<8x32xf32>
    %cst_55 = arith.constant 1.000000e+00 : f32
    %332 = vector.broadcast %cst_55 : f32 to vector<8x32xf32>
    %333 = arith.addf %332, %331 : vector<8x32xf32>
    %334 = arith.divf %332, %333 : vector<8x32xf32>
    %335 = vector.extract_strided_slice %317 {offsets = [0, 256], sizes = [8, 32], strides = [1, 1]} : vector<8x384xf32> to vector<8x32xf32>
    %336 = vector.extract_strided_slice %318 {offsets = [0, 256], sizes = [8, 32], strides = [1, 1]} : vector<8x384xf32> to vector<8x32xf32>
    %337 = arith.addf %336, %7 : vector<8x32xf32>
    %338 = arith.mulf %326, %337 : vector<8x32xf32>
    %339 = arith.addf %335, %338 : vector<8x32xf32>
    %340 = math.tanh %339 : vector<8x32xf32>
    %341 = arith.subf %288, %340 : vector<8x32xf32>
    %342 = arith.mulf %334, %341 : vector<8x32xf32>
    %343 = arith.addf %340, %342 : vector<8x32xf32>
    %344 = vector.extract_strided_slice %11 {offsets = [48, 0], sizes = [8, 384], strides = [1, 1]} : vector<64x384xf32> to vector<8x384xf32>
    %cst_56 = arith.constant dense<0.000000e+00> : vector<8x384xf32>
    %345 = tpu.matmul %315, %1, %cst_56 {dimension_numbers = #tpu.dot_dimension_numbers<[1], [0], [0], [1], [0, 0, 1, 1], [], []>} : vector<8x32xf32>, vector<32x384xf32>, vector<8x384xf32> -> vector<8x384xf32>
    %346 = vector.extract_strided_slice %344 {offsets = [0, 0], sizes = [8, 32], strides = [1, 1]} : vector<8x384xf32> to vector<8x32xf32>
    %347 = vector.extract_strided_slice %345 {offsets = [0, 0], sizes = [8, 32], strides = [1, 1]} : vector<8x384xf32> to vector<8x32xf32>
    %348 = arith.addf %346, %347 : vector<8x32xf32>
    %349 = arith.negf %348 : vector<8x32xf32>
    %350 = math.exp %349 : vector<8x32xf32>
    %cst_57 = arith.constant 1.000000e+00 : f32
    %351 = vector.broadcast %cst_57 : f32 to vector<8x32xf32>
    %352 = arith.addf %351, %350 : vector<8x32xf32>
    %353 = arith.divf %351, %352 : vector<8x32xf32>
    %354 = vector.extract_strided_slice %344 {offsets = [0, 128], sizes = [8, 32], strides = [1, 1]} : vector<8x384xf32> to vector<8x32xf32>
    %355 = vector.extract_strided_slice %345 {offsets = [0, 128], sizes = [8, 32], strides = [1, 1]} : vector<8x384xf32> to vector<8x32xf32>
    %356 = arith.addf %354, %355 : vector<8x32xf32>
    %357 = arith.negf %356 : vector<8x32xf32>
    %358 = math.exp %357 : vector<8x32xf32>
    %cst_58 = arith.constant 1.000000e+00 : f32
    %359 = vector.broadcast %cst_58 : f32 to vector<8x32xf32>
    %360 = arith.addf %359, %358 : vector<8x32xf32>
    %361 = arith.divf %359, %360 : vector<8x32xf32>
    %362 = vector.extract_strided_slice %344 {offsets = [0, 256], sizes = [8, 32], strides = [1, 1]} : vector<8x384xf32> to vector<8x32xf32>
    %363 = vector.extract_strided_slice %345 {offsets = [0, 256], sizes = [8, 32], strides = [1, 1]} : vector<8x384xf32> to vector<8x32xf32>
    %364 = arith.addf %363, %5 : vector<8x32xf32>
    %365 = arith.mulf %353, %364 : vector<8x32xf32>
    %366 = arith.addf %362, %365 : vector<8x32xf32>
    %367 = math.tanh %366 : vector<8x32xf32>
    %368 = arith.subf %315, %367 : vector<8x32xf32>
    %369 = arith.mulf %361, %368 : vector<8x32xf32>
    %370 = arith.addf %367, %369 : vector<8x32xf32>
    %cst_59 = arith.constant dense<0.000000e+00> : vector<8x384xf32>
    %371 = tpu.matmul %370, %2, %cst_59 {dimension_numbers = #tpu.dot_dimension_numbers<[1], [0], [0], [1], [0, 0, 1, 1], [], []>} : vector<8x32xf32>, vector<32x384xf32>, vector<8x384xf32> -> vector<8x384xf32>
    %372 = arith.addf %371, %6 : vector<8x384xf32>
    %cst_60 = arith.constant dense<0.000000e+00> : vector<8x384xf32>
    %373 = tpu.matmul %343, %3, %cst_60 {dimension_numbers = #tpu.dot_dimension_numbers<[1], [0], [0], [1], [0, 0, 1, 1], [], []>} : vector<8x32xf32>, vector<32x384xf32>, vector<8x384xf32> -> vector<8x384xf32>
    %374 = vector.extract_strided_slice %372 {offsets = [0, 0], sizes = [8, 32], strides = [1, 1]} : vector<8x384xf32> to vector<8x32xf32>
    %375 = vector.extract_strided_slice %373 {offsets = [0, 0], sizes = [8, 32], strides = [1, 1]} : vector<8x384xf32> to vector<8x32xf32>
    %376 = arith.addf %374, %375 : vector<8x32xf32>
    %377 = arith.negf %376 : vector<8x32xf32>
    %378 = math.exp %377 : vector<8x32xf32>
    %cst_61 = arith.constant 1.000000e+00 : f32
    %379 = vector.broadcast %cst_61 : f32 to vector<8x32xf32>
    %380 = arith.addf %379, %378 : vector<8x32xf32>
    %381 = arith.divf %379, %380 : vector<8x32xf32>
    %382 = vector.extract_strided_slice %372 {offsets = [0, 128], sizes = [8, 32], strides = [1, 1]} : vector<8x384xf32> to vector<8x32xf32>
    %383 = vector.extract_strided_slice %373 {offsets = [0, 128], sizes = [8, 32], strides = [1, 1]} : vector<8x384xf32> to vector<8x32xf32>
    %384 = arith.addf %382, %383 : vector<8x32xf32>
    %385 = arith.negf %384 : vector<8x32xf32>
    %386 = math.exp %385 : vector<8x32xf32>
    %cst_62 = arith.constant 1.000000e+00 : f32
    %387 = vector.broadcast %cst_62 : f32 to vector<8x32xf32>
    %388 = arith.addf %387, %386 : vector<8x32xf32>
    %389 = arith.divf %387, %388 : vector<8x32xf32>
    %390 = vector.extract_strided_slice %372 {offsets = [0, 256], sizes = [8, 32], strides = [1, 1]} : vector<8x384xf32> to vector<8x32xf32>
    %391 = vector.extract_strided_slice %373 {offsets = [0, 256], sizes = [8, 32], strides = [1, 1]} : vector<8x384xf32> to vector<8x32xf32>
    %392 = arith.addf %391, %7 : vector<8x32xf32>
    %393 = arith.mulf %381, %392 : vector<8x32xf32>
    %394 = arith.addf %390, %393 : vector<8x32xf32>
    %395 = math.tanh %394 : vector<8x32xf32>
    %396 = arith.subf %343, %395 : vector<8x32xf32>
    %397 = arith.mulf %389, %396 : vector<8x32xf32>
    %398 = arith.addf %395, %397 : vector<8x32xf32>
    %399 = vector.extract_strided_slice %11 {offsets = [56, 0], sizes = [8, 384], strides = [1, 1]} : vector<64x384xf32> to vector<8x384xf32>
    %cst_63 = arith.constant dense<0.000000e+00> : vector<8x384xf32>
    %400 = tpu.matmul %370, %1, %cst_63 {dimension_numbers = #tpu.dot_dimension_numbers<[1], [0], [0], [1], [0, 0, 1, 1], [], []>} : vector<8x32xf32>, vector<32x384xf32>, vector<8x384xf32> -> vector<8x384xf32>
    %401 = vector.extract_strided_slice %399 {offsets = [0, 0], sizes = [8, 32], strides = [1, 1]} : vector<8x384xf32> to vector<8x32xf32>
    %402 = vector.extract_strided_slice %400 {offsets = [0, 0], sizes = [8, 32], strides = [1, 1]} : vector<8x384xf32> to vector<8x32xf32>
    %403 = arith.addf %401, %402 : vector<8x32xf32>
    %404 = arith.negf %403 : vector<8x32xf32>
    %405 = math.exp %404 : vector<8x32xf32>
    %cst_64 = arith.constant 1.000000e+00 : f32
    %406 = vector.broadcast %cst_64 : f32 to vector<8x32xf32>
    %407 = arith.addf %406, %405 : vector<8x32xf32>
    %408 = arith.divf %406, %407 : vector<8x32xf32>
    %409 = vector.extract_strided_slice %399 {offsets = [0, 128], sizes = [8, 32], strides = [1, 1]} : vector<8x384xf32> to vector<8x32xf32>
    %410 = vector.extract_strided_slice %400 {offsets = [0, 128], sizes = [8, 32], strides = [1, 1]} : vector<8x384xf32> to vector<8x32xf32>
    %411 = arith.addf %409, %410 : vector<8x32xf32>
    %412 = arith.negf %411 : vector<8x32xf32>
    %413 = math.exp %412 : vector<8x32xf32>
    %cst_65 = arith.constant 1.000000e+00 : f32
    %414 = vector.broadcast %cst_65 : f32 to vector<8x32xf32>
    %415 = arith.addf %414, %413 : vector<8x32xf32>
    %416 = arith.divf %414, %415 : vector<8x32xf32>
    %417 = vector.extract_strided_slice %399 {offsets = [0, 256], sizes = [8, 32], strides = [1, 1]} : vector<8x384xf32> to vector<8x32xf32>
    %418 = vector.extract_strided_slice %400 {offsets = [0, 256], sizes = [8, 32], strides = [1, 1]} : vector<8x384xf32> to vector<8x32xf32>
    %419 = arith.addf %418, %5 : vector<8x32xf32>
    %420 = arith.mulf %408, %419 : vector<8x32xf32>
    %421 = arith.addf %417, %420 : vector<8x32xf32>
    %422 = math.tanh %421 : vector<8x32xf32>
    %423 = arith.subf %370, %422 : vector<8x32xf32>
    %424 = arith.mulf %416, %423 : vector<8x32xf32>
    %425 = arith.addf %422, %424 : vector<8x32xf32>
    %cst_66 = arith.constant dense<0.000000e+00> : vector<8x384xf32>
    %426 = tpu.matmul %425, %2, %cst_66 {dimension_numbers = #tpu.dot_dimension_numbers<[1], [0], [0], [1], [0, 0, 1, 1], [], []>} : vector<8x32xf32>, vector<32x384xf32>, vector<8x384xf32> -> vector<8x384xf32>
    %427 = arith.addf %426, %6 : vector<8x384xf32>
    %cst_67 = arith.constant dense<0.000000e+00> : vector<8x384xf32>
    %428 = tpu.matmul %398, %3, %cst_67 {dimension_numbers = #tpu.dot_dimension_numbers<[1], [0], [0], [1], [0, 0, 1, 1], [], []>} : vector<8x32xf32>, vector<32x384xf32>, vector<8x384xf32> -> vector<8x384xf32>
    %429 = vector.extract_strided_slice %427 {offsets = [0, 0], sizes = [8, 32], strides = [1, 1]} : vector<8x384xf32> to vector<8x32xf32>
    %430 = vector.extract_strided_slice %428 {offsets = [0, 0], sizes = [8, 32], strides = [1, 1]} : vector<8x384xf32> to vector<8x32xf32>
    %431 = arith.addf %429, %430 : vector<8x32xf32>
    %432 = arith.negf %431 : vector<8x32xf32>
    %433 = math.exp %432 : vector<8x32xf32>
    %cst_68 = arith.constant 1.000000e+00 : f32
    %434 = vector.broadcast %cst_68 : f32 to vector<8x32xf32>
    %435 = arith.addf %434, %433 : vector<8x32xf32>
    %436 = arith.divf %434, %435 : vector<8x32xf32>
    %437 = vector.extract_strided_slice %427 {offsets = [0, 128], sizes = [8, 32], strides = [1, 1]} : vector<8x384xf32> to vector<8x32xf32>
    %438 = vector.extract_strided_slice %428 {offsets = [0, 128], sizes = [8, 32], strides = [1, 1]} : vector<8x384xf32> to vector<8x32xf32>
    %439 = arith.addf %437, %438 : vector<8x32xf32>
    %440 = arith.negf %439 : vector<8x32xf32>
    %441 = math.exp %440 : vector<8x32xf32>
    %cst_69 = arith.constant 1.000000e+00 : f32
    %442 = vector.broadcast %cst_69 : f32 to vector<8x32xf32>
    %443 = arith.addf %442, %441 : vector<8x32xf32>
    %444 = arith.divf %442, %443 : vector<8x32xf32>
    %445 = vector.extract_strided_slice %427 {offsets = [0, 256], sizes = [8, 32], strides = [1, 1]} : vector<8x384xf32> to vector<8x32xf32>
    %446 = vector.extract_strided_slice %428 {offsets = [0, 256], sizes = [8, 32], strides = [1, 1]} : vector<8x384xf32> to vector<8x32xf32>
    %447 = arith.addf %446, %7 : vector<8x32xf32>
    %448 = arith.mulf %436, %447 : vector<8x32xf32>
    %449 = arith.addf %445, %448 : vector<8x32xf32>
    %450 = math.tanh %449 : vector<8x32xf32>
    %451 = arith.subf %398, %450 : vector<8x32xf32>
    %452 = arith.mulf %444, %451 : vector<8x32xf32>
    %453 = arith.addf %450, %452 : vector<8x32xf32>
    %c0_70 = arith.constant 0 : index
    %c0_71 = arith.constant 0 : index
    %454 = vector.load %arg3[%c0_70, %c0_71] : memref<176x128xf32, #tpu.memory_space<vmem>>, vector<8x8xf32>
    %c8_72 = arith.constant 8 : index
    %c0_73 = arith.constant 0 : index
    %455 = vector.load %arg3[%c8_72, %c0_73] : memref<176x128xf32, #tpu.memory_space<vmem>>, vector<8x8xf32>
    %c16_74 = arith.constant 16 : index
    %c0_75 = arith.constant 0 : index
    %456 = vector.load %arg3[%c16_74, %c0_75] : memref<176x128xf32, #tpu.memory_space<vmem>>, vector<8x8xf32>
    %c24_76 = arith.constant 24 : index
    %c0_77 = arith.constant 0 : index
    %457 = vector.load %arg3[%c24_76, %c0_77] : memref<176x128xf32, #tpu.memory_space<vmem>>, vector<8x8xf32>
    %c32 = arith.constant 32 : index
    %c0_78 = arith.constant 0 : index
    %458 = vector.load %arg3[%c32, %c0_78] : memref<176x128xf32, #tpu.memory_space<vmem>>, vector<32x128xf32>
    %c64 = arith.constant 64 : index
    %c0_79 = arith.constant 0 : index
    %459 = vector.load %arg3[%c64, %c0_79] : memref<176x128xf32, #tpu.memory_space<vmem>>, vector<32x128xf32>
    %c96 = arith.constant 96 : index
    %c0_80 = arith.constant 0 : index
    %460 = vector.load %arg3[%c96, %c0_80] : memref<176x128xf32, #tpu.memory_space<vmem>>, vector<32x128xf32>
    %c128 = arith.constant 128 : index
    %c0_81 = arith.constant 0 : index
    %461 = vector.load %arg3[%c128, %c0_81] : memref<176x128xf32, #tpu.memory_space<vmem>>, vector<18x128xf32>
    %c152 = arith.constant 152 : index
    %c0_82 = arith.constant 0 : index
    %462 = vector.load %arg3[%c152, %c0_82] : memref<176x128xf32, #tpu.memory_space<vmem>>, vector<8x128xf32>
    %c160 = arith.constant 160 : index
    %c0_83 = arith.constant 0 : index
    %463 = vector.load %arg3[%c160, %c0_83] : memref<176x128xf32, #tpu.memory_space<vmem>>, vector<8x128xf32>
    %c168 = arith.constant 168 : index
    %c0_84 = arith.constant 0 : index
    %464 = vector.load %arg3[%c168, %c0_84] : memref<176x128xf32, #tpu.memory_space<vmem>>, vector<8x128xf32>
    %cst_85 = arith.constant dense<0.000000e+00> : vector<8x32xf32>
    %465 = tpu.matmul %454, %425, %cst_85 {dimension_numbers = #tpu.dot_dimension_numbers<[1], [0], [0], [1], [0, 0, 1, 1], [], []>} : vector<8x8xf32>, vector<8x32xf32>, vector<8x32xf32> -> vector<8x32xf32>
    %cst_86 = arith.constant dense<0.000000e+00> : vector<8x32xf32>
    %466 = tpu.matmul %455, %453, %cst_86 {dimension_numbers = #tpu.dot_dimension_numbers<[1], [0], [0], [1], [0, 0, 1, 1], [], []>} : vector<8x8xf32>, vector<8x32xf32>, vector<8x32xf32> -> vector<8x32xf32>
    %467 = arith.addf %465, %466 : vector<8x32xf32>
    %cst_87 = arith.constant dense<0.000000e+00> : vector<8x32xf32>
    %468 = tpu.matmul %456, %425, %cst_87 {dimension_numbers = #tpu.dot_dimension_numbers<[1], [0], [0], [1], [0, 0, 1, 1], [], []>} : vector<8x8xf32>, vector<8x32xf32>, vector<8x32xf32> -> vector<8x32xf32>
    %cst_88 = arith.constant dense<0.000000e+00> : vector<8x32xf32>
    %469 = tpu.matmul %457, %453, %cst_88 {dimension_numbers = #tpu.dot_dimension_numbers<[1], [0], [0], [1], [0, 0, 1, 1], [], []>} : vector<8x8xf32>, vector<8x32xf32>, vector<8x32xf32> -> vector<8x32xf32>
    %470 = arith.addf %468, %469 : vector<8x32xf32>
    %cst_89 = arith.constant dense<0.000000e+00> : vector<8x128xf32>
    %471 = tpu.matmul %467, %458, %cst_89 {dimension_numbers = #tpu.dot_dimension_numbers<[1], [0], [0], [1], [0, 0, 1, 1], [], []>} : vector<8x32xf32>, vector<32x128xf32>, vector<8x128xf32> -> vector<8x128xf32>
    %cst_90 = arith.constant dense<0.000000e+00> : vector<8x128xf32>
    %472 = tpu.matmul %470, %459, %cst_90 {dimension_numbers = #tpu.dot_dimension_numbers<[1], [0], [0], [1], [0, 0, 1, 1], [], []>} : vector<8x32xf32>, vector<32x128xf32>, vector<8x128xf32> -> vector<8x128xf32>
    %473 = arith.addf %471, %472 : vector<8x128xf32>
    %474 = arith.addf %473, %462 : vector<8x128xf32>
    %cst_91 = arith.constant 0.000000e+00 : f32
    %475 = vector.broadcast %cst_91 : f32 to vector<8x128xf32>
    %476 = arith.maximumf %474, %475 : vector<8x128xf32>
    %477 = vector.extract_strided_slice %476 {offsets = [0, 0], sizes = [8, 32], strides = [1, 1]} : vector<8x128xf32> to vector<8x32xf32>
    %cst_92 = arith.constant dense<0.000000e+00> : vector<8x128xf32>
    %478 = tpu.matmul %477, %460, %cst_92 {dimension_numbers = #tpu.dot_dimension_numbers<[1], [0], [0], [1], [0, 0, 1, 1], [], []>} : vector<8x32xf32>, vector<32x128xf32>, vector<8x128xf32> -> vector<8x128xf32>
    %479 = arith.addf %478, %463 : vector<8x128xf32>
    %cst_93 = arith.constant 0.000000e+00 : f32
    %480 = vector.broadcast %cst_93 : f32 to vector<8x128xf32>
    %481 = arith.maximumf %479, %480 : vector<8x128xf32>
    %482 = vector.extract_strided_slice %481 {offsets = [0, 0], sizes = [8, 18], strides = [1, 1]} : vector<8x128xf32> to vector<8x18xf32>
    %cst_94 = arith.constant dense<0.000000e+00> : vector<8x128xf32>
    %483 = tpu.matmul %482, %461, %cst_94 {dimension_numbers = #tpu.dot_dimension_numbers<[1], [0], [0], [1], [0, 0, 1, 1], [], []>} : vector<8x18xf32>, vector<18x128xf32>, vector<8x128xf32> -> vector<8x128xf32>
    %484 = arith.addf %483, %464 : vector<8x128xf32>
    %c0_95 = arith.constant 0 : index
    %c0_96 = arith.constant 0 : index
    %485 = vector.load %arg4[%c0_95, %c0_96] : memref<8x128xf32, #tpu.memory_space<vmem>>, vector<8x128xf32>
    tpu.vector_store %arg4[%c0_95, %c0_96], %484 {strides = array<i32>} : memref<8x128xf32, #tpu.memory_space<vmem>>, vector<8x128xf32>,
    return
  }
}

</mosaic_0001>

<llo_original>
// kernel: birnn_forward.1
$region0: #{birnn_forward.1}
  #allocation0 [shape = 'u32[]', space=smem, size = 0x4, offset = 0x4, fixed_abs, tag = 'smem constant byte address 0x4 - core index']
  #allocation1 [shape = 'u32[144,128]{1,0:T(1,128)}', space=vmem, size = 0x12000, scoped, tag = 'internal scratch']
  %s0 = inlined_call_operand.vmem [shape: f32[64,8], index: 0, kind: input, shape index: {}]
  %s1 = inlined_call_operand.vmem [shape: f32[104,384], index: 1, kind: input, shape index: {}]
  %s2 = inlined_call_operand.vmem [shape: f32[32,384], index: 2, kind: input, shape index: {}]
  %s3 = inlined_call_operand.vmem [shape: f32[176,128], index: 3, kind: input, shape index: {}]
  %s4 = inlined_call_operand.vmem [shape: f32[8,128], index: 4, kind: output, shape index: {}]
  %s5 = sld [smem:[#allocation0]]
  $region26: #{birnn_forward.1} parent=0
    _
  %s7 = ssub.s32 1, %s5
  %s8 = scalar_select 0, %s7, %s5
  // Predicated region
  $region2: #{birnn_forward.1} parent=0 // pred_check
    _
  $region3: #{birnn_forward.1} parent=0 // pred_check_branch
    %10 = sbr.rel (0) target = $region5
  $region4: #{birnn_forward.1} parent=0 // pred_region
    _
  $region5: #{birnn_forward.1} parent=0 // pred_fallthru
    _
  // Predicated region
  $region6: #{birnn_forward.1} parent=0 // pred_check
    _
  $region7: #{birnn_forward.1} parent=0 // pred_check_branch
    %12 = sbr.rel (0) target = $region9
  $region8: #{birnn_forward.1} parent=0 // pred_region
    _
  $region9: #{birnn_forward.1} parent=0 // pred_fallthru
    _
  // Predicated region
  $region10: #{birnn_forward.1} parent=0 // pred_check
    _
  $region11: #{birnn_forward.1} parent=0 // pred_check_branch
    %14 = sbr.rel (0) target = $region13
  $region12: #{birnn_forward.1} parent=0 // pred_region
    _
  $region13: #{birnn_forward.1} parent=0 // pred_fallthru
    _
  // Predicated region
  $region14: #{birnn_forward.1} parent=0 // pred_check
    _
  $region15: #{birnn_forward.1} parent=0 // pred_check_branch
    %16 = sbr.rel (0) target = $region17
  $region16: #{birnn_forward.1} parent=0 // pred_region
    _
  $region17: #{birnn_forward.1} parent=0 // pred_fallthru
    _
  %v17 = vld [vmem:[%s1] sm:$0xff]
  %v18 = vld [vmem:[%s1 + $0x8] sm:$0xff]
  %v19 = vld [vmem:[%s1 + $0x10] sm:$0xff]
  %v20 = vld [vmem:[%s1 + $0x18] sm:$0xff]
  %v21 = vld [vmem:[%s1 + $0x20] sm:$0xff]
  %v22 = vld [vmem:[%s1 + $0x28] sm:$0xff]
  %v23 = vld [vmem:[%s1 + $0x30] sm:$0xff]
  %v24 = vld [vmem:[%s1 + $0x38] sm:$0xff]
  %v25 = vld [vmem:[%s1 + $0x40] sm:$0xff]
  %v26 = vld [vmem:[%s1 + $0x48] sm:$0xff]
  %v27 = vld [vmem:[%s1 + $0x50] sm:$0xff]
  %v28 = vld [vmem:[%s1 + $0x58] sm:$0xff]
  %v29 = vld [vmem:[%s1 + $0x60] sm:$0xff]
  %v30 = vld [vmem:[%s1 + $0x68] sm:$0xff]
  %v31 = vld [vmem:[%s1 + $0x70] sm:$0xff]
  %v32 = vld [vmem:[%s1 + $0x78] sm:$0xff]
  %v33 = vld [vmem:[%s1 + $0x80] sm:$0xff]
  %v34 = vld [vmem:[%s1 + $0x88] sm:$0xff]
  %v35 = vld [vmem:[%s1 + $0x90] sm:$0xff]
  %v36 = vld [vmem:[%s1 + $0x98] sm:$0xff]
  %v37 = vld [vmem:[%s1 + $0xa0] sm:$0xff]
  %v38 = vld [vmem:[%s1 + $0xa8] sm:$0xff]
  %v39 = vld [vmem:[%s1 + $0xb0] sm:$0xff]
  %v40 = vld [vmem:[%s1 + $0xb8] sm:$0xff]
  %v41 = vld [vmem:[%s1 + $0xc0] sm:$0xff]
  %v42 = vld [vmem:[%s1 + $0xc8] sm:$0xff]
  %v43 = vld [vmem:[%s1 + $0xd0] sm:$0xff]
  %v44 = vld [vmem:[%s1 + $0xd8] sm:$0xff]
  %v45 = vld [vmem:[%s1 + $0xe0] sm:$0xff]
  %v46 = vld [vmem:[%s1 + $0xe8] sm:$0xff]
  %v47 = vld [vmem:[%s1 + $0xf0] sm:$0xff]
  %v48 = vld [vmem:[%s1 + $0xf8] sm:$0xff]
  %v49 = vld [vmem:[%s1 + $0x100] sm:$0xff]
  %v50 = vld [vmem:[%s1 + $0x108] sm:$0xff]
  %v51 = vld [vmem:[%s1 + $0x110] sm:$0xff]
  %v52 = vld [vmem:[%s1 + $0x118] sm:$0xff]
  %v53 = vld [vmem:[%s1 + $0x120] sm:$0xff]
  %v54 = vld [vmem:[%s1 + $0x128] sm:$0xff]
  %v55 = vld [vmem:[%s1 + $0x130] sm:$0xff]
  %v56 = vld [vmem:[%s2] ss:$8 sm:$0x7]
  %v57 = vld [vmem:[%s2 + $0x18] sm:$0xff]
  %v58 = vld [vmem:[%s2 + $0x30] sm:$0xff]
  %v59 = vld [vmem:[%s2 + $0x38] sm:$0xff]
  %v60 = vld [vmem:[%s2 + $0x40] sm:$0xff]
  %v61 = vld [vmem:[%s2 + $0x48] sm:$0xff]
  %v62 = vld [vmem:[%s0] sm:$0xff]
  %v63 = vld [vmem:[%s0 + $0x8] sm:$0xff]
  %v64 = vld [vmem:[%s0 + $0x10] sm:$0xff]
  %v65 = vld [vmem:[%s0 + $0x18] sm:$0xff]
  %v66 = vld [vmem:[%s0 + $0x20] sm:$0xff]
  %v67 = vld [vmem:[%s0 + $0x28] sm:$0xff]
  %v68 = vld [vmem:[%s0 + $0x30] sm:$0xff]
  %v69 = vld [vmem:[%s0 + $0x38] sm:$0xff]
  %v71 = vlaneseq
  %v72 = vshrl.u32 %v71, 7
  %v73 = vsub.s32 0, %v72
  %v74 = vrot.slane %v56, %v73
  %v75 = vlaneseq
  %v76 = vshrl.u32 %v75, 7
  %v77 = vsub.s32 1, %v76
  %v78 = vrot.slane %v56, %v77
  %v79 = vlaneseq
  %v80 = vshrl.u32 %v79, 7
  %v81 = vsub.s32 2, %v80
  %v82 = vrot.slane %v56, %v81
  %vm86 = vcmask 64512
  %v88 = vsel %vm86, %v62, 0
  %v91 = vsel %vm86, %v63, 0
  %v94 = vsel %vm86, %v64, 0
  %v97 = vsel %vm86, %v65, 0
  %v100 = vsel %vm86, %v66, 0
  %v103 = vsel %vm86, %v67, 0
  %v106 = vsel %vm86, %v68, 0
  %v109 = vsel %vm86, %v69, 0
  %111 = vmatprep.subr.mxu0 0.0
  %112 = vmatpush1.msra.mxu0 0.0
  %113 = vmatprep.subr.mxu0 0.0
  %114 = vmatpush1.msra.mxu0 0.0
  %115 = vmatprep.subr.mxu0 0.0
  %116 = vmatpush1.msra.mxu0 0.0
  %117 = vmatprep.subr.mxu0 0.0
  %118 = vmatpush1.msra.mxu0 0.0
  %119 = vmatprep.subr.mxu0 0.0
  %120 = vmatpush1.msra.mxu0 0.0
  %121 = vmatprep.subr.mxu0 0.0
  %122 = vmatpush1.msra.mxu0 0.0
  %123 = vmatprep.subr.mxu0 0.0
  %124 = vmatpush1.msra.mxu0 0.0
  %125 = vmatprep.subr.mxu0 0.0
  %126 = vmatpush1.msra.mxu0 0.0
  %127 = vmatprep.subr.mxu0 0.0
  %128 = vmatpush1.msra.mxu0 0.0
  %129 = vmatprep.subr.mxu0 0.0
  %130 = vmatpush1.msra.mxu0 0.0
  %131 = vmatprep.subr.mxu0 0.0
  %132 = vmatpush1.msra.mxu0 0.0
  %133 = vmatprep.subr.mxu0 0.0
  %134 = vmatpush1.msra.mxu0 0.0
  %135 = vmatprep.subr.mxu0 0.0
  %136 = vmatpush1.msra.mxu0 0.0
  %137 = vmatprep.subr.mxu0 0.0
  %138 = vmatpush1.msra.mxu0 0.0
  %139 = vmatprep.subr.mxu0 0.0
  %140 = vmatpush1.msra.mxu0 0.0
  %141 = vmatprep.subr.mxu0 %v18
  %142 = vmatpush1.msra.mxu0 %v17
  %143 = vmatprep.subr.mxu0 0.0
  %144 = vmatpush2.msra.mxu0 0.0
  %145 = vmatprep.subr.mxu0 0.0
  %146 = vmatpush2.msra.mxu0 0.0
  %147 = vmatprep.subr.mxu0 0.0
  %148 = vmatpush2.msra.mxu0 0.0
  %149 = vmatprep.subr.mxu0 0.0
  %150 = vmatpush2.msra.mxu0 0.0
  %151 = vmatprep.subr.mxu0 0.0
  %152 = vmatpush2.msra.mxu0 0.0
  %153 = vmatprep.subr.mxu0 0.0
  %154 = vmatpush2.msra.mxu0 0.0
  %155 = vmatprep.subr.mxu0 0.0
  %156 = vmatpush2.msra.mxu0 0.0
  %157 = vmatprep.subr.mxu0 0.0
  %158 = vmatpush2.msra.mxu0 0.0
  %159 = vmatprep.subr.mxu0 0.0
  %160 = vmatpush2.msra.mxu0 0.0
  %161 = vmatprep.subr.mxu0 0.0
  %162 = vmatpush2.msra.mxu0 0.0
  %163 = vmatprep.subr.mxu0 0.0
  %164 = vmatpush2.msra.mxu0 0.0
  %165 = vmatprep.subr.mxu0 0.0
  %166 = vmatpush2.msra.mxu0 0.0
  %167 = vmatprep.subr.mxu0 0.0
  %168 = vmatpush2.msra.mxu0 0.0
  %169 = vmatprep.subr.mxu0 0.0
  %170 = vmatpush2.msra.mxu0 0.0
  %171 = vmatprep.subr.mxu0 0.0
  %172 = vmatpush2.msra.mxu0 0.0
  %173 = vmatprep.subr.mxu0 0.0
  %174 = vmatpush2.msra.mxu0 0.0
  %175 = vmatprep.mubr.f32.mxu0 0.0
  %176 = vmatmul.mubr.f32.gmra.mxu0 %v88
  %v177 = vpop.f32.mrf.mxu0
  %v178 = vadd.f32 %v74, %v177
  %v179 = vpop.f32.mrf.mxu0
  %v180 = vadd.f32 %v78, %v179
  %181 = vmatprep.mubr.f32.mxu0 0.0
  %182 = vmatmul.mubr.f32.gmra.mxu0 %v91
  %v183 = vpop.f32.mrf.mxu0
  %v184 = vadd.f32 %v74, %v183
  %v185 = vpop.f32.mrf.mxu0
  %v186 = vadd.f32 %v78, %v185
  %187 = vmatprep.mubr.f32.mxu0 0.0
  %188 = vmatmul.mubr.f32.gmra.mxu0 %v94
  %v189 = vpop.f32.mrf.mxu0
  %v190 = vadd.f32 %v74, %v189
  %v191 = vpop.f32.mrf.mxu0
  %v192 = vadd.f32 %v78, %v191
  %193 = vmatprep.mubr.f32.mxu0 0.0
  %194 = vmatmul.mubr.f32.gmra.mxu0 %v97
  %v195 = vpop.f32.mrf.mxu0
  %v196 = vadd.f32 %v74, %v195
  %v197 = vpop.f32.mrf.mxu0
  %v198 = vadd.f32 %v78, %v197
  %199 = vmatprep.mubr.f32.mxu0 0.0
  %200 = vmatmul.mubr.f32.gmra.mxu0 %v100
  %v201 = vpop.f32.mrf.mxu0
  %v202 = vadd.f32 %v74, %v201
  %v203 = vpop.f32.mrf.mxu0
  %v204 = vadd.f32 %v78, %v203
  %205 = vmatprep.mubr.f32.mxu0 0.0
  %206 = vmatmul.mubr.f32.gmra.mxu0 %v103
  %v207 = vpop.f32.mrf.mxu0
  %v208 = vadd.f32 %v74, %v207
  %v209 = vpop.f32.mrf.mxu0
  %v210 = vadd.f32 %v78, %v209
  %211 = vmatprep.mubr.f32.mxu0 0.0
  %212 = vmatmul.mubr.f32.gmra.mxu0 %v106
  %v213 = vpop.f32.mrf.mxu0
  %v214 = vadd.f32 %v74, %v213
  %v215 = vpop.f32.mrf.mxu0
  %v216 = vadd.f32 %v78, %v215
  %217 = vmatprep.mubr.f32.mxu0 0.0
  %218 = vmatmul.mubr.f32.gmra.mxu0 %v109
  %v219 = vpop.f32.mrf.mxu0
  %v220 = vadd.f32 %v74, %v219
  %v221 = vpop.f32.mrf.mxu0
  %v222 = vadd.f32 %v78, %v221
  %223 = vdwg.mxu0
  %224 = vmatprep.subr.mxu0 0.0
  %225 = vmatpush1.msra.mxu0 0.0
  %226 = vmatprep.subr.mxu0 0.0
  %227 = vmatpush1.msra.mxu0 0.0
  %228 = vmatprep.subr.mxu0 0.0
  %229 = vmatpush1.msra.mxu0 0.0
  %230 = vmatprep.subr.mxu0 0.0
  %231 = vmatpush1.msra.mxu0 0.0
  %232 = vmatprep.subr.mxu0 0.0
  %233 = vmatpush1.msra.mxu0 0.0
  %234 = vmatprep.subr.mxu0 0.0
  %235 = vmatpush1.msra.mxu0 0.0
  %236 = vmatprep.subr.mxu0 0.0
  %237 = vmatpush1.msra.mxu0 0.0
  %238 = vmatprep.subr.mxu0 0.0
  %239 = vmatpush1.msra.mxu0 0.0
  %240 = vmatprep.subr.mxu0 0.0
  %241 = vmatpush1.msra.mxu0 0.0
  %242 = vmatprep.subr.mxu0 0.0
  %243 = vmatpush1.msra.mxu0 0.0
  %244 = vmatprep.subr.mxu0 0.0
  %245 = vmatpush1.msra.mxu0 0.0
  %246 = vmatprep.subr.mxu0 0.0
  %247 = vmatpush1.msra.mxu0 0.0
  %248 = vmatprep.subr.mxu0 0.0
  %249 = vmatpush1.msra.mxu0 0.0
  %250 = vmatprep.subr.mxu0 0.0
  %251 = vmatpush1.msra.mxu0 0.0
  %252 = vmatprep.subr.mxu0 0.0
  %253 = vmatpush1.msra.mxu0 0.0
  %254 = vmatprep.subr.mxu0 0.0
  %255 = vmatpush1.msra.mxu0 %v19
  %256 = vmatprep.subr.mxu0 0.0
  %257 = vmatpush2.msra.mxu0 0.0
  %258 = vmatprep.subr.mxu0 0.0
  %259 = vmatpush2.msra.mxu0 0.0
  %260 = vmatprep.subr.mxu0 0.0
  %261 = vmatpush2.msra.mxu0 0.0
  %262 = vmatprep.subr.mxu0 0.0
  %263 = vmatpush2.msra.mxu0 0.0
  %264 = vmatprep.subr.mxu0 0.0
  %265 = vmatpush2.msra.mxu0 0.0
  %266 = vmatprep.subr.mxu0 0.0
  %267 = vmatpush2.msra.mxu0 0.0
  %268 = vmatprep.subr.mxu0 0.0
  %269 = vmatpush2.msra.mxu0 0.0
  %270 = vmatprep.subr.mxu0 0.0
  %271 = vmatpush2.msra.mxu0 0.0
  %272 = vmatprep.subr.mxu0 0.0
  %273 = vmatpush2.msra.mxu0 0.0
  %274 = vmatprep.subr.mxu0 0.0
  %275 = vmatpush2.msra.mxu0 0.0
  %276 = vmatprep.subr.mxu0 0.0
  %277 = vmatpush2.msra.mxu0 0.0
  %278 = vmatprep.subr.mxu0 0.0
  %279 = vmatpush2.msra.mxu0 0.0
  %280 = vmatprep.subr.mxu0 0.0
  %281 = vmatpush2.msra.mxu0 0.0
  %282 = vmatprep.subr.mxu0 0.0
  %283 = vmatpush2.msra.mxu0 0.0
  %284 = vmatprep.subr.mxu0 0.0
  %285 = vmatpush2.msra.mxu0 0.0
  %286 = vmatprep.subr.mxu0 0.0
  %287 = vmatpush2.msra.mxu0 0.0
  %288 = vmatprep.mubr.f32.mxu0 0.0
  %289 = vmatmul.mubr.f32.gmra.mxu0 %v88
  %v290 = vpop.f32.mrf.mxu0
  %v291 = vadd.f32 %v82, %v290
  %v292 = vpop.f32.mrf.mxu0
  %293 = vmatprep.mubr.f32.mxu0 0.0
  %294 = vmatmul.mubr.f32.gmra.mxu0 %v91
  %v295 = vpop.f32.mrf.mxu0
  %v296 = vadd.f32 %v82, %v295
  %v297 = vpop.f32.mrf.mxu0
  %298 = vmatprep.mubr.f32.mxu0 0.0
  %299 = vmatmul.mubr.f32.gmra.mxu0 %v94
  %v300 = vpop.f32.mrf.mxu0
  %v301 = vadd.f32 %v82, %v300
  %v302 = vpop.f32.mrf.mxu0
  %303 = vmatprep.mubr.f32.mxu0 0.0
  %304 = vmatmul.mubr.f32.gmra.mxu0 %v97
  %v305 = vpop.f32.mrf.mxu0
  %v306 = vadd.f32 %v82, %v305
  %v307 = vpop.f32.mrf.mxu0
  %308 = vmatprep.mubr.f32.mxu0 0.0
  %309 = vmatmul.mubr.f32.gmra.mxu0 %v100
  %v310 = vpop.f32.mrf.mxu0
  %v311 = vadd.f32 %v82, %v310
  %v312 = vpop.f32.mrf.mxu0
  %313 = vmatprep.mubr.f32.mxu0 0.0
  %314 = vmatmul.mubr.f32.gmra.mxu0 %v103
  %v315 = vpop.f32.mrf.mxu0
  %v316 = vadd.f32 %v82, %v315
  %v317 = vpop.f32.mrf.mxu0
  %318 = vmatprep.mubr.f32.mxu0 0.0
  %319 = vmatmul.mubr.f32.gmra.mxu0 %v106
  %v320 = vpop.f32.mrf.mxu0
  %v321 = vadd.f32 %v82, %v320
  %v322 = vpop.f32.mrf.mxu0
  %323 = vmatprep.mubr.f32.mxu0 0.0
  %324 = vmatmul.mubr.f32.gmra.mxu0 %v109
  %v325 = vpop.f32.mrf.mxu0
  %v326 = vadd.f32 %v82, %v325
  %v327 = vpop.f32.mrf.mxu0
  %328 = vdwg.mxu0
  %vm329 = vcmask 261120
  %v331 = vsel %vm329, 0.0, 0
  %333 = vmatprep.subr.mxu0 0.0
  %334 = vmatpush1.msra.mxu0 0.0
  %335 = vmatprep.subr.mxu0 0.0
  %336 = vmatpush1.msra.mxu0 0.0
  %337 = vmatprep.subr.mxu0 0.0
  %338 = vmatpush1.msra.mxu0 0.0
  %339 = vmatprep.subr.mxu0 0.0
  %340 = vmatpush1.msra.mxu0 0.0
  %341 = vmatprep.subr.mxu0 0.0
  %342 = vmatpush1.msra.mxu0 0.0
  %343 = vmatprep.subr.mxu0 0.0
  %344 = vmatpush1.msra.mxu0 0.0
  %345 = vmatprep.subr.mxu0 0.0
  %346 = vmatpush1.msra.mxu0 0.0
  %347 = vmatprep.subr.mxu0 0.0
  %348 = vmatpush1.msra.mxu0 0.0
  %349 = vmatprep.subr.mxu0 0.0
  %350 = vmatpush1.msra.mxu0 0.0
  %351 = vmatprep.subr.mxu0 0.0
  %352 = vmatpush1.msra.mxu0 0.0
  %353 = vmatprep.subr.mxu0 0.0
  %354 = vmatpush1.msra.mxu0 0.0
  %355 = vmatprep.subr.mxu0 0.0
  %356 = vmatpush1.msra.mxu0 0.0
  %357 = vmatprep.subr.mxu0 %v30
  %358 = vmatpush1.msra.mxu0 %v29
  %359 = vmatprep.subr.mxu0 %v27
  %360 = vmatpush1.msra.mxu0 %v26
  %361 = vmatprep.subr.mxu0 %v24
  %362 = vmatpush1.msra.mxu0 %v23
  %363 = vmatprep.subr.mxu0 %v21
  %364 = vmatpush1.msra.mxu0 %v20
  %365 = vmatprep.subr.mxu0 0.0
  %366 = vmatpush2.msra.mxu0 0.0
  %367 = vmatprep.subr.mxu0 0.0
  %368 = vmatpush2.msra.mxu0 0.0
  %369 = vmatprep.subr.mxu0 0.0
  %370 = vmatpush2.msra.mxu0 0.0
  %371 = vmatprep.subr.mxu0 0.0
  %372 = vmatpush2.msra.mxu0 0.0
  %373 = vmatprep.subr.mxu0 0.0
  %374 = vmatpush2.msra.mxu0 0.0
  %375 = vmatprep.subr.mxu0 0.0
  %376 = vmatpush2.msra.mxu0 0.0
  %377 = vmatprep.subr.mxu0 0.0
  %378 = vmatpush2.msra.mxu0 0.0
  %379 = vmatprep.subr.mxu0 0.0
  %380 = vmatpush2.msra.mxu0 0.0
  %381 = vmatprep.subr.mxu0 0.0
  %382 = vmatpush2.msra.mxu0 0.0
  %383 = vmatprep.subr.mxu0 0.0
  %384 = vmatpush2.msra.mxu0 0.0
  %385 = vmatprep.subr.mxu0 0.0
  %386 = vmatpush2.msra.mxu0 0.0
  %387 = vmatprep.subr.mxu0 0.0
  %388 = vmatpush2.msra.mxu0 0.0
  %389 = vmatprep.subr.mxu0 0.0
  %390 = vmatpush2.msra.mxu0 0.0
  %391 = vmatprep.subr.mxu0 0.0
  %392 = vmatpush2.msra.mxu0 0.0
  %393 = vmatprep.subr.mxu0 0.0
  %394 = vmatpush2.msra.mxu0 0.0
  %395 = vmatprep.subr.mxu0 0.0
  %396 = vmatpush2.msra.mxu0 0.0
  %397 = vmatprep.mubr.f32.mxu0 0.0
  %398 = vmatmul.mubr.f32.gmra.mxu0 %v331
  %v399 = vpop.f32.mrf.mxu0
  %v400 = vadd.f32 0.0, %v399
  %v401 = vpop.f32.mrf.mxu0
  %v402 = vadd.f32 0.0, %v401
  %403 = vdwg.mxu0
  %404 = vmatprep.subr.mxu0 0.0
  %405 = vmatpush1.msra.mxu0 0.0
  %406 = vmatprep.subr.mxu0 0.0
  %407 = vmatpush1.msra.mxu0 0.0
  %408 = vmatprep.subr.mxu0 0.0
  %409 = vmatpush1.msra.mxu0 0.0
  %410 = vmatprep.subr.mxu0 0.0
  %411 = vmatpush1.msra.mxu0 0.0
  %412 = vmatprep.subr.mxu0 0.0
  %413 = vmatpush1.msra.mxu0 0.0
  %414 = vmatprep.subr.mxu0 0.0
  %415 = vmatpush1.msra.mxu0 0.0
  %416 = vmatprep.subr.mxu0 0.0
  %417 = vmatpush1.msra.mxu0 0.0
  %418 = vmatprep.subr.mxu0 0.0
  %419 = vmatpush1.msra.mxu0 0.0
  %420 = vmatprep.subr.mxu0 0.0
  %421 = vmatpush1.msra.mxu0 0.0
  %422 = vmatprep.subr.mxu0 0.0
  %423 = vmatpush1.msra.mxu0 0.0
  %424 = vmatprep.subr.mxu0 0.0
  %425 = vmatpush1.msra.mxu0 0.0
  %426 = vmatprep.subr.mxu0 0.0
  %427 = vmatpush1.msra.mxu0 0.0
  %428 = vmatprep.subr.mxu0 0.0
  %429 = vmatpush1.msra.mxu0 %v31
  %430 = vmatprep.subr.mxu0 0.0
  %431 = vmatpush1.msra.mxu0 %v28
  %432 = vmatprep.subr.mxu0 0.0
  %433 = vmatpush1.msra.mxu0 %v25
  %434 = vmatprep.subr.mxu0 0.0
  %435 = vmatpush1.msra.mxu0 %v22
  %436 = vmatprep.subr.mxu0 0.0
  %437 = vmatpush2.msra.mxu0 0.0
  %438 = vmatprep.subr.mxu0 0.0
  %439 = vmatpush2.msra.mxu0 0.0
  %440 = vmatprep.subr.mxu0 0.0
  %441 = vmatpush2.msra.mxu0 0.0
  %442 = vmatprep.subr.mxu0 0.0
  %443 = vmatpush2.msra.mxu0 0.0
  %444 = vmatprep.subr.mxu0 0.0
  %445 = vmatpush2.msra.mxu0 0.0
  %446 = vmatprep.subr.mxu0 0.0
  %447 = vmatpush2.msra.mxu0 0.0
  %448 = vmatprep.subr.mxu0 0.0
  %449 = vmatpush2.msra.mxu0 0.0
  %450 = vmatprep.subr.mxu0 0.0
  %451 = vmatpush2.msra.mxu0 0.0
  %452 = vmatprep.subr.mxu0 0.0
  %453 = vmatpush2.msra.mxu0 0.0
  %454 = vmatprep.subr.mxu0 0.0
  %455 = vmatpush2.msra.mxu0 0.0
  %456 = vmatprep.subr.mxu0 0.0
  %457 = vmatpush2.msra.mxu0 0.0
  %458 = vmatprep.subr.mxu0 0.0
  %459 = vmatpush2.msra.mxu0 0.0
  %460 = vmatprep.subr.mxu0 0.0
  %461 = vmatpush2.msra.mxu0 0.0
  %462 = vmatprep.subr.mxu0 0.0
  %463 = vmatpush2.msra.mxu0 0.0
  %464 = vmatprep.subr.mxu0 0.0
  %465 = vmatpush2.msra.mxu0 0.0
  %466 = vmatprep.subr.mxu0 0.0
  %467 = vmatpush2.msra.mxu0 0.0
  %468 = vmatprep.mubr.f32.mxu0 0.0
  %469 = vmatmul.mubr.f32.gmra.mxu0 %v331
  %v470 = vpop.f32.mrf.mxu0
  %v471 = vadd.f32 0.0, %v470
  %v472 = vpop.f32.mrf.mxu0
  %473 = vdwg.mxu0
  %v474 = vadd.f32 %v178, %v400
  %v475 = vxor.u32 %v474, 2147483648
  %v476 = vmul.f32 %v475, 1.442695
  %v477 = vpow.pop %v476
  %v478 = vadd.f32 %v477, 1.0
  %v479 = vrcp.pop %v478
  %v480 = vmul.f32 1.0, %v479
  %v481 = vadd.f32 %v180, %v402
  %v482 = vxor.u32 %v481, 2147483648
  %v483 = vmul.f32 %v482, 1.442695
  %v484 = vpow.pop %v483
  %v485 = vadd.f32 %v484, 1.0
  %v486 = vrcp.pop %v485
  %v487 = vmul.f32 1.0, %v486
  %v488 = vadd.f32 %v471, %v57
  %v489 = vmul.f32 %v480, %v488
  %v490 = vadd.f32 %v291, %v489
  %v491 = vtanh.pop %v490
  %v492 = vsub.f32 0.0, %v491
  %v493 = vmul.f32 %v487, %v492
  %v494 = vadd.f32 %v491, %v493
  %v496 = vsel %vm329, %v494, 0
  %498 = vmatprep.subr.mxu0 0.0
  %499 = vmatpush1.msra.mxu0 0.0
  %500 = vmatprep.subr.mxu0 0.0
  %501 = vmatpush1.msra.mxu0 0.0
  %502 = vmatprep.subr.mxu0 0.0
  %503 = vmatpush1.msra.mxu0 0.0
  %504 = vmatprep.subr.mxu0 0.0
  %505 = vmatpush1.msra.mxu0 0.0
  %506 = vmatprep.subr.mxu0 0.0
  %507 = vmatpush1.msra.mxu0 0.0
  %508 = vmatprep.subr.mxu0 0.0
  %509 = vmatpush1.msra.mxu0 0.0
  %510 = vmatprep.subr.mxu0 0.0
  %511 = vmatpush1.msra.mxu0 0.0
  %512 = vmatprep.subr.mxu0 0.0
  %513 = vmatpush1.msra.mxu0 0.0
  %514 = vmatprep.subr.mxu0 0.0
  %515 = vmatpush1.msra.mxu0 0.0
  %516 = vmatprep.subr.mxu0 0.0
  %517 = vmatpush1.msra.mxu0 0.0
  %518 = vmatprep.subr.mxu0 0.0
  %519 = vmatpush1.msra.mxu0 0.0
  %520 = vmatprep.subr.mxu0 0.0
  %521 = vmatpush1.msra.mxu0 0.0
  %522 = vmatprep.subr.mxu0 %v42
  %523 = vmatpush1.msra.mxu0 %v41
  %524 = vmatprep.subr.mxu0 %v39
  %525 = vmatpush1.msra.mxu0 %v38
  %526 = vmatprep.subr.mxu0 %v36
  %527 = vmatpush1.msra.mxu0 %v35
  %528 = vmatprep.subr.mxu0 %v33
  %529 = vmatpush1.msra.mxu0 %v32
  %530 = vmatprep.subr.mxu0 0.0
  %531 = vmatpush2.msra.mxu0 0.0
  %532 = vmatprep.subr.mxu0 0.0
  %533 = vmatpush2.msra.mxu0 0.0
  %534 = vmatprep.subr.mxu0 0.0
  %535 = vmatpush2.msra.mxu0 0.0
  %536 = vmatprep.subr.mxu0 0.0
  %537 = vmatpush2.msra.mxu0 0.0
  %538 = vmatprep.subr.mxu0 0.0
  %539 = vmatpush2.msra.mxu0 0.0
  %540 = vmatprep.subr.mxu0 0.0
  %541 = vmatpush2.msra.mxu0 0.0
  %542 = vmatprep.subr.mxu0 0.0
  %543 = vmatpush2.msra.mxu0 0.0
  %544 = vmatprep.subr.mxu0 0.0
  %545 = vmatpush2.msra.mxu0 0.0
  %546 = vmatprep.subr.mxu0 0.0
  %547 = vmatpush2.msra.mxu0 0.0
  %548 = vmatprep.subr.mxu0 0.0
  %549 = vmatpush2.msra.mxu0 0.0
  %550 = vmatprep.subr.mxu0 0.0
  %551 = vmatpush2.msra.mxu0 0.0
  %552 = vmatprep.subr.mxu0 0.0
  %553 = vmatpush2.msra.mxu0 0.0
  %554 = vmatprep.subr.mxu0 0.0
  %555 = vmatpush2.msra.mxu0 0.0
  %556 = vmatprep.subr.mxu0 0.0
  %557 = vmatpush2.msra.mxu0 0.0
  %558 = vmatprep.subr.mxu0 0.0
  %559 = vmatpush2.msra.mxu0 0.0
  %560 = vmatprep.subr.mxu0 0.0
  %561 = vmatpush2.msra.mxu0 0.0
  %562 = vmatprep.mubr.f32.mxu0 0.0
  %563 = vmatmul.mubr.f32.gmra.mxu0 %v496
  %v564 = vpop.f32.mrf.mxu0
  %v565 = vadd.f32 %v58, %v564
  %v566 = vpop.f32.mrf.mxu0
  %v567 = vadd.f32 %v59, %v566
  %568 = vdwg.mxu0
  %569 = vmatprep.subr.mxu0 0.0
  %570 = vmatpush1.msra.mxu0 0.0
  %571 = vmatprep.subr.mxu0 0.0
  %572 = vmatpush1.msra.mxu0 0.0
  %573 = vmatprep.subr.mxu0 0.0
  %574 = vmatpush1.msra.mxu0 0.0
  %575 = vmatprep.subr.mxu0 0.0
  %576 = vmatpush1.msra.mxu0 0.0
  %577 = vmatprep.subr.mxu0 0.0
  %578 = vmatpush1.msra.mxu0 0.0
  %579 = vmatprep.subr.mxu0 0.0
  %580 = vmatpush1.msra.mxu0 0.0
  %581 = vmatprep.subr.mxu0 0.0
  %582 = vmatpush1.msra.mxu0 0.0
  %583 = vmatprep.subr.mxu0 0.0
  %584 = vmatpush1.msra.mxu0 0.0
  %585 = vmatprep.subr.mxu0 0.0
  %586 = vmatpush1.msra.mxu0 0.0
  %587 = vmatprep.subr.mxu0 0.0
  %588 = vmatpush1.msra.mxu0 0.0
  %589 = vmatprep.subr.mxu0 0.0
  %590 = vmatpush1.msra.mxu0 0.0
  %591 = vmatprep.subr.mxu0 0.0
  %592 = vmatpush1.msra.mxu0 0.0
  %593 = vmatprep.subr.mxu0 0.0
  %594 = vmatpush1.msra.mxu0 %v43
  %595 = vmatprep.subr.mxu0 0.0
  %596 = vmatpush1.msra.mxu0 %v40
  %597 = vmatprep.subr.mxu0 0.0
  %598 = vmatpush1.msra.mxu0 %v37
  %599 = vmatprep.subr.mxu0 0.0
  %600 = vmatpush1.msra.mxu0 %v34
  %601 = vmatprep.subr.mxu0 0.0
  %602 = vmatpush2.msra.mxu0 0.0
  %603 = vmatprep.subr.mxu0 0.0
  %604 = vmatpush2.msra.mxu0 0.0
  %605 = vmatprep.subr.mxu0 0.0
  %606 = vmatpush2.msra.mxu0 0.0
  %607 = vmatprep.subr.mxu0 0.0
  %608 = vmatpush2.msra.mxu0 0.0
  %609 = vmatprep.subr.mxu0 0.0
  %610 = vmatpush2.msra.mxu0 0.0
  %611 = vmatprep.subr.mxu0 0.0
  %612 = vmatpush2.msra.mxu0 0.0
  %613 = vmatprep.subr.mxu0 0.0
  %614 = vmatpush2.msra.mxu0 0.0
  %615 = vmatprep.subr.mxu0 0.0
  %616 = vmatpush2.msra.mxu0 0.0
  %617 = vmatprep.subr.mxu0 0.0
  %618 = vmatpush2.msra.mxu0 0.0
  %619 = vmatprep.subr.mxu0 0.0
  %620 = vmatpush2.msra.mxu0 0.0
  %621 = vmatprep.subr.mxu0 0.0
  %622 = vmatpush2.msra.mxu0 0.0
  %623 = vmatprep.subr.mxu0 0.0
  %624 = vmatpush2.msra.mxu0 0.0
  %625 = vmatprep.subr.mxu0 0.0
  %626 = vmatpush2.msra.mxu0 0.0
  %627 = vmatprep.subr.mxu0 0.0
  %628 = vmatpush2.msra.mxu0 0.0
  %629 = vmatprep.subr.mxu0 0.0
  %630 = vmatpush2.msra.mxu0 0.0
  %631 = vmatprep.subr.mxu0 0.0
  %632 = vmatpush2.msra.mxu0 0.0
  %633 = vmatprep.mubr.f32.mxu0 0.0
  %634 = vmatmul.mubr.f32.gmra.mxu0 %v496
  %v635 = vpop.f32.mrf.mxu0
  %v636 = vadd.f32 %v60, %v635
  %v637 = vpop.f32.mrf.mxu0
  %638 = vdwg.mxu0
  %639 = vmatprep.subr.mxu0 0.0
  %640 = vmatpush1.msra.mxu0 0.0
  %641 = vmatprep.subr.mxu0 0.0
  %642 = vmatpush1.msra.mxu0 0.0
  %643 = vmatprep.subr.mxu0 0.0
  %644 = vmatpush1.msra.mxu0 0.0
  %645 = vmatprep.subr.mxu0 0.0
  %646 = vmatpush1.msra.mxu0 0.0
  %647 = vmatprep.subr.mxu0 0.0
  %648 = vmatpush1.msra.mxu0 0.0
  %649 = vmatprep.subr.mxu0 0.0
  %650 = vmatpush1.msra.mxu0 0.0
  %651 = vmatprep.subr.mxu0 0.0
  %652 = vmatpush1.msra.mxu0 0.0
  %653 = vmatprep.subr.mxu0 0.0
  %654 = vmatpush1.msra.mxu0 0.0
  %655 = vmatprep.subr.mxu0 0.0
  %656 = vmatpush1.msra.mxu0 0.0
  %657 = vmatprep.subr.mxu0 0.0
  %658 = vmatpush1.msra.mxu0 0.0
  %659 = vmatprep.subr.mxu0 0.0
  %660 = vmatpush1.msra.mxu0 0.0
  %661 = vmatprep.subr.mxu0 0.0
  %662 = vmatpush1.msra.mxu0 0.0
  %663 = vmatprep.subr.mxu0 %v54
  %664 = vmatpush1.msra.mxu0 %v53
  %665 = vmatprep.subr.mxu0 %v51
  %666 = vmatpush1.msra.mxu0 %v50
  %667 = vmatprep.subr.mxu0 %v48
  %668 = vmatpush1.msra.mxu0 %v47
  %669 = vmatprep.subr.mxu0 %v45
  %670 = vmatpush1.msra.mxu0 %v44
  %671 = vmatprep.subr.mxu0 0.0
  %672 = vmatpush2.msra.mxu0 0.0
  %673 = vmatprep.subr.mxu0 0.0
  %674 = vmatpush2.msra.mxu0 0.0
  %675 = vmatprep.subr.mxu0 0.0
  %676 = vmatpush2.msra.mxu0 0.0
  %677 = vmatprep.subr.mxu0 0.0
  %678 = vmatpush2.msra.mxu0 0.0
  %679 = vmatprep.subr.mxu0 0.0
  %680 = vmatpush2.msra.mxu0 0.0
  %681 = vmatprep.subr.mxu0 0.0
  %682 = vmatpush2.msra.mxu0 0.0
  %683 = vmatprep.subr.mxu0 0.0
  %684 = vmatpush2.msra.mxu0 0.0
  %685 = vmatprep.subr.mxu0 0.0
  %686 = vmatpush2.msra.mxu0 0.0
  %687 = vmatprep.subr.mxu0 0.0
  %688 = vmatpush2.msra.mxu0 0.0
  %689 = vmatprep.subr.mxu0 0.0
  %690 = vmatpush2.msra.mxu0 0.0
  %691 = vmatprep.subr.mxu0 0.0
  %692 = vmatpush2.msra.mxu0 0.0
  %693 = vmatprep.subr.mxu0 0.0
  %694 = vmatpush2.msra.mxu0 0.0
  %695 = vmatprep.subr.mxu0 0.0
  %696 = vmatpush2.msra.mxu0 0.0
  %697 = vmatprep.subr.mxu0 0.0
  %698 = vmatpush2.msra.mxu0 0.0
  %699 = vmatprep.subr.mxu0 0.0
  %700 = vmatpush2.msra.mxu0 0.0
  %701 = vmatprep.subr.mxu0 0.0
  %702 = vmatpush2.msra.mxu0 0.0
  %703 = vmatprep.mubr.f32.mxu0 0.0
  %704 = vmatmul.mubr.f32.gmra.mxu0 %v331
  %v705 = vpop.f32.mrf.mxu0
  %v706 = vadd.f32 0.0, %v705
  %v707 = vpop.f32.mrf.mxu0
  %v708 = vadd.f32 0.0, %v707
  %709 = vdwg.mxu0
  %710 = vmatprep.subr.mxu0 0.0
  %711 = vmatpush1.msra.mxu0 0.0
  %712 = vmatprep.subr.mxu0 0.0
  %713 = vmatpush1.msra.mxu0 0.0
  %714 = vmatprep.subr.mxu0 0.0
  %715 = vmatpush1.msra.mxu0 0.0
  %716 = vmatprep.subr.mxu0 0.0
  %717 = vmatpush1.msra.mxu0 0.0
  %718 = vmatprep.subr.mxu0 0.0
  %719 = vmatpush1.msra.mxu0 0.0
  %720 = vmatprep.subr.mxu0 0.0
  %721 = vmatpush1.msra.mxu0 0.0
  %722 = vmatprep.subr.mxu0 0.0
  %723 = vmatpush1.msra.mxu0 0.0
  %724 = vmatprep.subr.mxu0 0.0
  %725 = vmatpush1.msra.mxu0 0.0
  %726 = vmatprep.subr.mxu0 0.0
  %727 = vmatpush1.msra.mxu0 0.0
  %728 = vmatprep.subr.mxu0 0.0
  %729 = vmatpush1.msra.mxu0 0.0
  %730 = vmatprep.subr.mxu0 0.0
  %731 = vmatpush1.msra.mxu0 0.0
  %732 = vmatprep.subr.mxu0 0.0
  %733 = vmatpush1.msra.mxu0 0.0
  %734 = vmatprep.subr.mxu0 0.0
  %735 = vmatpush1.msra.mxu0 %v55
  %736 = vmatprep.subr.mxu0 0.0
  %737 = vmatpush1.msra.mxu0 %v52
  %738 = vmatprep.subr.mxu0 0.0
  %739 = vmatpush1.msra.mxu0 %v49
  %740 = vmatprep.subr.mxu0 0.0
  %741 = vmatpush1.msra.mxu0 %v46
  %742 = vmatprep.subr.mxu0 0.0
  %743 = vmatpush2.msra.mxu0 0.0
  %744 = vmatprep.subr.mxu0 0.0
  %745 = vmatpush2.msra.mxu0 0.0
  %746 = vmatprep.subr.mxu0 0.0
  %747 = vmatpush2.msra.mxu0 0.0
  %748 = vmatprep.subr.mxu0 0.0
  %749 = vmatpush2.msra.mxu0 0.0
  %750 = vmatprep.subr.mxu0 0.0
  %751 = vmatpush2.msra.mxu0 0.0
  %752 = vmatprep.subr.mxu0 0.0
  %753 = vmatpush2.msra.mxu0 0.0
  %754 = vmatprep.subr.mxu0 0.0
  %755 = vmatpush2.msra.mxu0 0.0
  %756 = vmatprep.subr.mxu0 0.0
  %757 = vmatpush2.msra.mxu0 0.0
  %758 = vmatprep.subr.mxu0 0.0
  %759 = vmatpush2.msra.mxu0 0.0
  %760 = vmatprep.subr.mxu0 0.0
  %761 = vmatpush2.msra.mxu0 0.0
  %762 = vmatprep.subr.mxu0 0.0
  %763 = vmatpush2.msra.mxu0 0.0
  %764 = vmatprep.subr.mxu0 0.0
  %765 = vmatpush2.msra.mxu0 0.0
  %766 = vmatprep.subr.mxu0 0.0
  %767 = vmatpush2.msra.mxu0 0.0
  %768 = vmatprep.subr.mxu0 0.0
  %769 = vmatpush2.msra.mxu0 0.0
  %770 = vmatprep.subr.mxu0 0.0
  %771 = vmatpush2.msra.mxu0 0.0
  %772 = vmatprep.subr.mxu0 0.0
  %773 = vmatpush2.msra.mxu0 0.0
  %774 = vmatprep.mubr.f32.mxu0 0.0
  %775 = vmatmul.mubr.f32.gmra.mxu0 %v331
  %v776 = vpop.f32.mrf.mxu0
  %v777 = vadd.f32 0.0, %v776
  %v778 = vpop.f32.mrf.mxu0
  %779 = vdwg.mxu0
  %v780 = vadd.f32 %v565, %v706
  %v781 = vxor.u32 %v780, 2147483648
  %v782 = vmul.f32 %v781, 1.442695
  %v783 = vpow.pop %v782
  %v784 = vadd.f32 %v783, 1.0
  %v785 = vrcp.pop %v784
  %v786 = vmul.f32 1.0, %v785
  %v787 = vadd.f32 %v567, %v708
  %v788 = vxor.u32 %v787, 2147483648
  %v789 = vmul.f32 %v788, 1.442695
  %v790 = vpow.pop %v789
  %v791 = vadd.f32 %v790, 1.0
  %v792 = vrcp.pop %v791
  %v793 = vmul.f32 1.0, %v792
  %v794 = vadd.f32 %v777, %v61
  %v795 = vmul.f32 %v786, %v794
  %v796 = vadd.f32 %v636, %v795
  %v797 = vtanh.pop %v796
  %v798 = vsub.f32 0.0, %v797
  %v799 = vmul.f32 %v793, %v798
  %v800 = vadd.f32 %v797, %v799
  %801 = vmatprep.subr.mxu0 0.0
  %802 = vmatpush1.msra.mxu0 0.0
  %803 = vmatprep.subr.mxu0 0.0
  %804 = vmatpush1.msra.mxu0 0.0
  %805 = vmatprep.subr.mxu0 0.0
  %806 = vmatpush1.msra.mxu0 0.0
  %807 = vmatprep.subr.mxu0 0.0
  %808 = vmatpush1.msra.mxu0 0.0
  %809 = vmatprep.subr.mxu0 0.0
  %810 = vmatpush1.msra.mxu0 0.0
  %811 = vmatprep.subr.mxu0 0.0
  %812 = vmatpush1.msra.mxu0 0.0
  %813 = vmatprep.subr.mxu0 0.0
  %814 = vmatpush1.msra.mxu0 0.0
  %815 = vmatprep.subr.mxu0 0.0
  %816 = vmatpush1.msra.mxu0 0.0
  %817 = vmatprep.subr.mxu0 0.0
  %818 = vmatpush1.msra.mxu0 0.0
  %819 = vmatprep.subr.mxu0 0.0
  %820 = vmatpush1.msra.mxu0 0.0
  %821 = vmatprep.subr.mxu0 0.0
  %822 = vmatpush1.msra.mxu0 0.0
  %823 = vmatprep.subr.mxu0 0.0
  %824 = vmatpush1.msra.mxu0 0.0
  %825 = vmatprep.subr.mxu0 %v30
  %826 = vmatpush1.msra.mxu0 %v29
  %827 = vmatprep.subr.mxu0 %v27
  %828 = vmatpush1.msra.mxu0 %v26
  %829 = vmatprep.subr.mxu0 %v24
  %830 = vmatpush1.msra.mxu0 %v23
  %831 = vmatprep.subr.mxu0 %v21
  %832 = vmatpush1.msra.mxu0 %v20
  %833 = vmatprep.subr.mxu0 0.0
  %834 = vmatpush2.msra.mxu0 0.0
  %835 = vmatprep.subr.mxu0 0.0
  %836 = vmatpush2.msra.mxu0 0.0
  %837 = vmatprep.subr.mxu0 0.0
  %838 = vmatpush2.msra.mxu0 0.0
  %839 = vmatprep.subr.mxu0 0.0
  %840 = vmatpush2.msra.mxu0 0.0
  %841 = vmatprep.subr.mxu0 0.0
  %842 = vmatpush2.msra.mxu0 0.0
  %843 = vmatprep.subr.mxu0 0.0
  %844 = vmatpush2.msra.mxu0 0.0
  %845 = vmatprep.subr.mxu0 0.0
  %846 = vmatpush2.msra.mxu0 0.0
  %847 = vmatprep.subr.mxu0 0.0
  %848 = vmatpush2.msra.mxu0 0.0
  %849 = vmatprep.subr.mxu0 0.0
  %850 = vmatpush2.msra.mxu0 0.0
  %851 = vmatprep.subr.mxu0 0.0
  %852 = vmatpush2.msra.mxu0 0.0
  %853 = vmatprep.subr.mxu0 0.0
  %854 = vmatpush2.msra.mxu0 0.0
  %855 = vmatprep.subr.mxu0 0.0
  %856 = vmatpush2.msra.mxu0 0.0
  %857 = vmatprep.subr.mxu0 0.0
  %858 = vmatpush2.msra.mxu0 0.0
  %859 = vmatprep.subr.mxu0 0.0
  %860 = vmatpush2.msra.mxu0 0.0
  %861 = vmatprep.subr.mxu0 0.0
  %862 = vmatpush2.msra.mxu0 0.0
  %863 = vmatprep.subr.mxu0 0.0
  %864 = vmatpush2.msra.mxu0 0.0
  %865 = vmatprep.mubr.f32.mxu0 0.0
  %866 = vmatmul.mubr.f32.gmra.mxu0 %v496
  %v867 = vpop.f32.mrf.mxu0
  %v868 = vadd.f32 0.0, %v867
  %v869 = vpop.f32.mrf.mxu0
  %v870 = vadd.f32 0.0, %v869
  %871 = vdwg.mxu0
  %872 = vmatprep.subr.mxu0 0.0
  %873 = vmatpush1.msra.mxu0 0.0
  %874 = vmatprep.subr.mxu0 0.0
  %875 = vmatpush1.msra.mxu0 0.0
  %876 = vmatprep.subr.mxu0 0.0
  %877 = vmatpush1.msra.mxu0 0.0
  %878 = vmatprep.subr.mxu0 0.0
  %879 = vmatpush1.msra.mxu0 0.0
  %880 = vmatprep.subr.mxu0 0.0
  %881 = vmatpush1.msra.mxu0 0.0
  %882 = vmatprep.subr.mxu0 0.0
  %883 = vmatpush1.msra.mxu0 0.0
  %884 = vmatprep.subr.mxu0 0.0
  %885 = vmatpush1.msra.mxu0 0.0
  %886 = vmatprep.subr.mxu0 0.0
  %887 = vmatpush1.msra.mxu0 0.0
  %888 = vmatprep.subr.mxu0 0.0
  %889 = vmatpush1.msra.mxu0 0.0
  %890 = vmatprep.subr.mxu0 0.0
  %891 = vmatpush1.msra.mxu0 0.0
  %892 = vmatprep.subr.mxu0 0.0
  %893 = vmatpush1.msra.mxu0 0.0
  %894 = vmatprep.subr.mxu0 0.0
  %895 = vmatpush1.msra.mxu0 0.0
  %896 = vmatprep.subr.mxu0 0.0
  %897 = vmatpush1.msra.mxu0 %v31
  %898 = vmatprep.subr.mxu0 0.0
  %899 = vmatpush1.msra.mxu0 %v28
  %900 = vmatprep.subr.mxu0 0.0
  %901 = vmatpush1.msra.mxu0 %v25
  %902 = vmatprep.subr.mxu0 0.0
  %903 = vmatpush1.msra.mxu0 %v22
  %904 = vmatprep.subr.mxu0 0.0
  %905 = vmatpush2.msra.mxu0 0.0
  %906 = vmatprep.subr.mxu0 0.0
  %907 = vmatpush2.msra.mxu0 0.0
  %908 = vmatprep.subr.mxu0 0.0
  %909 = vmatpush2.msra.mxu0 0.0
  %910 = vmatprep.subr.mxu0 0.0
  %911 = vmatpush2.msra.mxu0 0.0
  %912 = vmatprep.subr.mxu0 0.0
  %913 = vmatpush2.msra.mxu0 0.0
  %914 = vmatprep.subr.mxu0 0.0
  %915 = vmatpush2.msra.mxu0 0.0
  %916 = vmatprep.subr.mxu0 0.0
  %917 = vmatpush2.msra.mxu0 0.0
  %918 = vmatprep.subr.mxu0 0.0
  %919 = vmatpush2.msra.mxu0 0.0
  %920 = vmatprep.subr.mxu0 0.0
  %921 = vmatpush2.msra.mxu0 0.0
  %922 = vmatprep.subr.mxu0 0.0
  %923 = vmatpush2.msra.mxu0 0.0
  %924 = vmatprep.subr.mxu0 0.0
  %925 = vmatpush2.msra.mxu0 0.0
  %926 = vmatprep.subr.mxu0 0.0
  %927 = vmatpush2.msra.mxu0 0.0
  %928 = vmatprep.subr.mxu0 0.0
  %929 = vmatpush2.msra.mxu0 0.0
  %930 = vmatprep.subr.mxu0 0.0
  %931 = vmatpush2.msra.mxu0 0.0
  %932 = vmatprep.subr.mxu0 0.0
  %933 = vmatpush2.msra.mxu0 0.0
  %934 = vmatprep.subr.mxu0 0.0
  %935 = vmatpush2.msra.mxu0 0.0
  %936 = vmatprep.mubr.f32.mxu0 0.0
  %937 = vmatmul.mubr.f32.gmra.mxu0 %v496
  %v938 = vpop.f32.mrf.mxu0
  %v939 = vadd.f32 0.0, %v938
  %v940 = vpop.f32.mrf.mxu0
  %941 = vdwg.mxu0
  %v942 = vadd.f32 %v184, %v868
  %v943 = vxor.u32 %v942, 2147483648
  %v944 = vmul.f32 %v943, 1.442695
  %v945 = vpow.pop %v944
  %v946 = vadd.f32 %v945, 1.0
  %v947 = vrcp.pop %v946
  %v948 = vmul.f32 1.0, %v947
  %v949 = vadd.f32 %v186, %v870
  %v950 = vxor.u32 %v949, 2147483648
  %v951 = vmul.f32 %v950, 1.442695
  %v952 = vpow.pop %v951
  %v953 = vadd.f32 %v952, 1.0
  %v954 = vrcp.pop %v953
  %v955 = vmul.f32 1.0, %v954
  %v956 = vadd.f32 %v939, %v57
  %v957 = vmul.f32 %v948, %v956
  %v958 = vadd.f32 %v296, %v957
  %v959 = vtanh.pop %v958
  %v960 = vsub.f32 %v494, %v959
  %v961 = vmul.f32 %v955, %v960
  %v962 = vadd.f32 %v959, %v961
  %v964 = vsel %vm329, %v962, 0
  %966 = vmatprep.subr.mxu0 0.0
  %967 = vmatpush1.msra.mxu0 0.0
  %968 = vmatprep.subr.mxu0 0.0
  %969 = vmatpush1.msra.mxu0 0.0
  %970 = vmatprep.subr.mxu0 0.0
  %971 = vmatpush1.msra.mxu0 0.0
  %972 = vmatprep.subr.mxu0 0.0
  %973 = vmatpush1.msra.mxu0 0.0
  %974 = vmatprep.subr.mxu0 0.0
  %975 = vmatpush1.msra.mxu0 0.0
  %976 = vmatprep.subr.mxu0 0.0
  %977 = vmatpush1.msra.mxu0 0.0
  %978 = vmatprep.subr.mxu0 0.0
  %979 = vmatpush1.msra.mxu0 0.0
  %980 = vmatprep.subr.mxu0 0.0
  %981 = vmatpush1.msra.mxu0 0.0
  %982 = vmatprep.subr.mxu0 0.0
  %983 = vmatpush1.msra.mxu0 0.0
  %984 = vmatprep.subr.mxu0 0.0
  %985 = vmatpush1.msra.mxu0 0.0
  %986 = vmatprep.subr.mxu0 0.0
  %987 = vmatpush1.msra.mxu0 0.0
  %988 = vmatprep.subr.mxu0 0.0
  %989 = vmatpush1.msra.mxu0 0.0
  %990 = vmatprep.subr.mxu0 %v42
  %991 = vmatpush1.msra.mxu0 %v41
  %992 = vmatprep.subr.mxu0 %v39
  %993 = vmatpush1.msra.mxu0 %v38
  %994 = vmatprep.subr.mxu0 %v36
  %995 = vmatpush1.msra.mxu0 %v35
  %996 = vmatprep.subr.mxu0 %v33
  %997 = vmatpush1.msra.mxu0 %v32
  %998 = vmatprep.subr.mxu0 0.0
  %999 = vmatpush2.msra.mxu0 0.0
  %1000 = vmatprep.subr.mxu0 0.0
  %1001 = vmatpush2.msra.mxu0 0.0
  %1002 = vmatprep.subr.mxu0 0.0
  %1003 = vmatpush2.msra.mxu0 0.0
  %1004 = vmatprep.subr.mxu0 0.0
  %1005 = vmatpush2.msra.mxu0 0.0
  %1006 = vmatprep.subr.mxu0 0.0
  %1007 = vmatpush2.msra.mxu0 0.0
  %1008 = vmatprep.subr.mxu0 0.0
  %1009 = vmatpush2.msra.mxu0 0.0
  %1010 = vmatprep.subr.mxu0 0.0
  %1011 = vmatpush2.msra.mxu0 0.0
  %1012 = vmatprep.subr.mxu0 0.0
  %1013 = vmatpush2.msra.mxu0 0.0
  %1014 = vmatprep.subr.mxu0 0.0
  %1015 = vmatpush2.msra.mxu0 0.0
  %1016 = vmatprep.subr.mxu0 0.0
  %1017 = vmatpush2.msra.mxu0 0.0
  %1018 = vmatprep.subr.mxu0 0.0
  %1019 = vmatpush2.msra.mxu0 0.0
  %1020 = vmatprep.subr.mxu0 0.0
  %1021 = vmatpush2.msra.mxu0 0.0
  %1022 = vmatprep.subr.mxu0 0.0
  %1023 = vmatpush2.msra.mxu0 0.0
  %1024 = vmatprep.subr.mxu0 0.0
  %1025 = vmatpush2.msra.mxu0 0.0
  %1026 = vmatprep.subr.mxu0 0.0
  %1027 = vmatpush2.msra.mxu0 0.0
  %1028 = vmatprep.subr.mxu0 0.0
  %1029 = vmatpush2.msra.mxu0 0.0
  %1030 = vmatprep.mubr.f32.mxu0 0.0
  %1031 = vmatmul.mubr.f32.gmra.mxu0 %v964
  %v1032 = vpop.f32.mrf.mxu0
  %v1033 = vadd.f32 %v58, %v1032
  %v1034 = vpop.f32.mrf.mxu0
  %v1035 = vadd.f32 %v59, %v1034
  %1036 = vdwg.mxu0
  %1037 = vmatprep.subr.mxu0 0.0
  %1038 = vmatpush1.msra.mxu0 0.0
  %1039 = vmatprep.subr.mxu0 0.0
  %1040 = vmatpush1.msra.mxu0 0.0
  %1041 = vmatprep.subr.mxu0 0.0
  %1042 = vmatpush1.msra.mxu0 0.0
  %1043 = vmatprep.subr.mxu0 0.0
  %1044 = vmatpush1.msra.mxu0 0.0
  %1045 = vmatprep.subr.mxu0 0.0
  %1046 = vmatpush1.msra.mxu0 0.0
  %1047 = vmatprep.subr.mxu0 0.0
  %1048 = vmatpush1.msra.mxu0 0.0
  %1049 = vmatprep.subr.mxu0 0.0
  %1050 = vmatpush1.msra.mxu0 0.0
  %1051 = vmatprep.subr.mxu0 0.0
  %1052 = vmatpush1.msra.mxu0 0.0
  %1053 = vmatprep.subr.mxu0 0.0
  %1054 = vmatpush1.msra.mxu0 0.0
  %1055 = vmatprep.subr.mxu0 0.0
  %1056 = vmatpush1.msra.mxu0 0.0
  %1057 = vmatprep.subr.mxu0 0.0
  %1058 = vmatpush1.msra.mxu0 0.0
  %1059 = vmatprep.subr.mxu0 0.0
  %1060 = vmatpush1.msra.mxu0 0.0
  %1061 = vmatprep.subr.mxu0 0.0
  %1062 = vmatpush1.msra.mxu0 %v43
  %1063 = vmatprep.subr.mxu0 0.0
  %1064 = vmatpush1.msra.mxu0 %v40
  %1065 = vmatprep.subr.mxu0 0.0
  %1066 = vmatpush1.msra.mxu0 %v37
  %1067 = vmatprep.subr.mxu0 0.0
  %1068 = vmatpush1.msra.mxu0 %v34
  %1069 = vmatprep.subr.mxu0 0.0
  %1070 = vmatpush2.msra.mxu0 0.0
  %1071 = vmatprep.subr.mxu0 0.0
  %1072 = vmatpush2.msra.mxu0 0.0
  %1073 = vmatprep.subr.mxu0 0.0
  %1074 = vmatpush2.msra.mxu0 0.0
  %1075 = vmatprep.subr.mxu0 0.0
  %1076 = vmatpush2.msra.mxu0 0.0
  %1077 = vmatprep.subr.mxu0 0.0
  %1078 = vmatpush2.msra.mxu0 0.0
  %1079 = vmatprep.subr.mxu0 0.0
  %1080 = vmatpush2.msra.mxu0 0.0
  %1081 = vmatprep.subr.mxu0 0.0
  %1082 = vmatpush2.msra.mxu0 0.0
  %1083 = vmatprep.subr.mxu0 0.0
  %1084 = vmatpush2.msra.mxu0 0.0
  %1085 = vmatprep.subr.mxu0 0.0
  %1086 = vmatpush2.msra.mxu0 0.0
  %1087 = vmatprep.subr.mxu0 0.0
  %1088 = vmatpush2.msra.mxu0 0.0
  %1089 = vmatprep.subr.mxu0 0.0
  %1090 = vmatpush2.msra.mxu0 0.0
  %1091 = vmatprep.subr.mxu0 0.0
  %1092 = vmatpush2.msra.mxu0 0.0
  %1093 = vmatprep.subr.mxu0 0.0
  %1094 = vmatpush2.msra.mxu0 0.0
  %1095 = vmatprep.subr.mxu0 0.0
  %1096 = vmatpush2.msra.mxu0 0.0
  %1097 = vmatprep.subr.mxu0 0.0
  %1098 = vmatpush2.msra.mxu0 0.0
  %1099 = vmatprep.subr.mxu0 0.0
  %1100 = vmatpush2.msra.mxu0 0.0
  %1101 = vmatprep.mubr.f32.mxu0 0.0
  %1102 = vmatmul.mubr.f32.gmra.mxu0 %v964
  %v1103 = vpop.f32.mrf.mxu0
  %v1104 = vadd.f32 %v60, %v1103
  %v1105 = vpop.f32.mrf.mxu0
  %1106 = vdwg.mxu0
  %v1108 = vsel %vm329, %v800, 0
  %1110 = vmatprep.subr.mxu0 0.0
  %1111 = vmatpush1.msra.mxu0 0.0
  %1112 = vmatprep.subr.mxu0 0.0
  %1113 = vmatpush1.msra.mxu0 0.0
  %1114 = vmatprep.subr.mxu0 0.0
  %1115 = vmatpush1.msra.mxu0 0.0
  %1116 = vmatprep.subr.mxu0 0.0
  %1117 = vmatpush1.msra.mxu0 0.0
  %1118 = vmatprep.subr.mxu0 0.0
  %1119 = vmatpush1.msra.mxu0 0.0
  %1120 = vmatprep.subr.mxu0 0.0
  %1121 = vmatpush1.msra.mxu0 0.0
  %1122 = vmatprep.subr.mxu0 0.0
  %1123 = vmatpush1.msra.mxu0 0.0
  %1124 = vmatprep.subr.mxu0 0.0
  %1125 = vmatpush1.msra.mxu0 0.0
  %1126 = vmatprep.subr.mxu0 0.0
  %1127 = vmatpush1.msra.mxu0 0.0
  %1128 = vmatprep.subr.mxu0 0.0
  %1129 = vmatpush1.msra.mxu0 0.0
  %1130 = vmatprep.subr.mxu0 0.0
  %1131 = vmatpush1.msra.mxu0 0.0
  %1132 = vmatprep.subr.mxu0 0.0
  %1133 = vmatpush1.msra.mxu0 0.0
  %1134 = vmatprep.subr.mxu0 %v54
  %1135 = vmatpush1.msra.mxu0 %v53
  %1136 = vmatprep.subr.mxu0 %v51
  %1137 = vmatpush1.msra.mxu0 %v50
  %1138 = vmatprep.subr.mxu0 %v48
  %1139 = vmatpush1.msra.mxu0 %v47
  %1140 = vmatprep.subr.mxu0 %v45
  %1141 = vmatpush1.msra.mxu0 %v44
  %1142 = vmatprep.subr.mxu0 0.0
  %1143 = vmatpush2.msra.mxu0 0.0
  %1144 = vmatprep.subr.mxu0 0.0
  %1145 = vmatpush2.msra.mxu0 0.0
  %1146 = vmatprep.subr.mxu0 0.0
  %1147 = vmatpush2.msra.mxu0 0.0
  %1148 = vmatprep.subr.mxu0 0.0
  %1149 = vmatpush2.msra.mxu0 0.0
  %1150 = vmatprep.subr.mxu0 0.0
  %1151 = vmatpush2.msra.mxu0 0.0
  %1152 = vmatprep.subr.mxu0 0.0
  %1153 = vmatpush2.msra.mxu0 0.0
  %1154 = vmatprep.subr.mxu0 0.0
  %1155 = vmatpush2.msra.mxu0 0.0
  %1156 = vmatprep.subr.mxu0 0.0
  %1157 = vmatpush2.msra.mxu0 0.0
  %1158 = vmatprep.subr.mxu0 0.0
  %1159 = vmatpush2.msra.mxu0 0.0
  %1160 = vmatprep.subr.mxu0 0.0
  %1161 = vmatpush2.msra.mxu0 0.0
  %1162 = vmatprep.subr.mxu0 0.0
  %1163 = vmatpush2.msra.mxu0 0.0
  %1164 = vmatprep.subr.mxu0 0.0
  %1165 = vmatpush2.msra.mxu0 0.0
  %1166 = vmatprep.subr.mxu0 0.0
  %1167 = vmatpush2.msra.mxu0 0.0
  %1168 = vmatprep.subr.mxu0 0.0
  %1169 = vmatpush2.msra.mxu0 0.0
  %1170 = vmatprep.subr.mxu0 0.0
  %1171 = vmatpush2.msra.mxu0 0.0
  %1172 = vmatprep.subr.mxu0 0.0
  %1173 = vmatpush2.msra.mxu0 0.0
  %1174 = vmatprep.mubr.f32.mxu0 0.0
  %1175 = vmatmul.mubr.f32.gmra.mxu0 %v1108
  %v1176 = vpop.f32.mrf.mxu0
  %v1177 = vadd.f32 0.0, %v1176
  %v1178 = vpop.f32.mrf.mxu0
  %v1179 = vadd.f32 0.0, %v1178
  %1180 = vdwg.mxu0
  %1181 = vmatprep.subr.mxu0 0.0
  %1182 = vmatpush1.msra.mxu0 0.0
  %1183 = vmatprep.subr.mxu0 0.0
  %1184 = vmatpush1.msra.mxu0 0.0
  %1185 = vmatprep.subr.mxu0 0.0
  %1186 = vmatpush1.msra.mxu0 0.0
  %1187 = vmatprep.subr.mxu0 0.0
  %1188 = vmatpush1.msra.mxu0 0.0
  %1189 = vmatprep.subr.mxu0 0.0
  %1190 = vmatpush1.msra.mxu0 0.0
  %1191 = vmatprep.subr.mxu0 0.0
  %1192 = vmatpush1.msra.mxu0 0.0
  %1193 = vmatprep.subr.mxu0 0.0
  %1194 = vmatpush1.msra.mxu0 0.0
  %1195 = vmatprep.subr.mxu0 0.0
  %1196 = vmatpush1.msra.mxu0 0.0
  %1197 = vmatprep.subr.mxu0 0.0
  %1198 = vmatpush1.msra.mxu0 0.0
  %1199 = vmatprep.subr.mxu0 0.0
  %1200 = vmatpush1.msra.mxu0 0.0
  %1201 = vmatprep.subr.mxu0 0.0
  %1202 = vmatpush1.msra.mxu0 0.0
  %1203 = vmatprep.subr.mxu0 0.0
  %1204 = vmatpush1.msra.mxu0 0.0
  %1205 = vmatprep.subr.mxu0 0.0
  %1206 = vmatpush1.msra.mxu0 %v55
  %1207 = vmatprep.subr.mxu0 0.0
  %1208 = vmatpush1.msra.mxu0 %v52
  %1209 = vmatprep.subr.mxu0 0.0
  %1210 = vmatpush1.msra.mxu0 %v49
  %1211 = vmatprep.subr.mxu0 0.0
  %1212 = vmatpush1.msra.mxu0 %v46
  %1213 = vmatprep.subr.mxu0 0.0
  %1214 = vmatpush2.msra.mxu0 0.0
  %1215 = vmatprep.subr.mxu0 0.0
  %1216 = vmatpush2.msra.mxu0 0.0
  %1217 = vmatprep.subr.mxu0 0.0
  %1218 = vmatpush2.msra.mxu0 0.0
  %1219 = vmatprep.subr.mxu0 0.0
  %1220 = vmatpush2.msra.mxu0 0.0
  %1221 = vmatprep.subr.mxu0 0.0
  %1222 = vmatpush2.msra.mxu0 0.0
  %1223 = vmatprep.subr.mxu0 0.0
  %1224 = vmatpush2.msra.mxu0 0.0
  %1225 = vmatprep.subr.mxu0 0.0
  %1226 = vmatpush2.msra.mxu0 0.0
  %1227 = vmatprep.subr.mxu0 0.0
  %1228 = vmatpush2.msra.mxu0 0.0
  %1229 = vmatprep.subr.mxu0 0.0
  %1230 = vmatpush2.msra.mxu0 0.0
  %1231 = vmatprep.subr.mxu0 0.0
  %1232 = vmatpush2.msra.mxu0 0.0
  %1233 = vmatprep.subr.mxu0 0.0
  %1234 = vmatpush2.msra.mxu0 0.0
  %1235 = vmatprep.subr.mxu0 0.0
  %1236 = vmatpush2.msra.mxu0 0.0
  %1237 = vmatprep.subr.mxu0 0.0
  %1238 = vmatpush2.msra.mxu0 0.0
  %1239 = vmatprep.subr.mxu0 0.0
  %1240 = vmatpush2.msra.mxu0 0.0
  %1241 = vmatprep.subr.mxu0 0.0
  %1242 = vmatpush2.msra.mxu0 0.0
  %1243 = vmatprep.subr.mxu0 0.0
  %1244 = vmatpush2.msra.mxu0 0.0
  %1245 = vmatprep.mubr.f32.mxu0 0.0
  %1246 = vmatmul.mubr.f32.gmra.mxu0 %v1108
  %v1247 = vpop.f32.mrf.mxu0
  %v1248 = vadd.f32 0.0, %v1247
  %v1249 = vpop.f32.mrf.mxu0
  %1250 = vdwg.mxu0
  %v1251 = vadd.f32 %v1033, %v1177
  %v1252 = vxor.u32 %v1251, 2147483648
  %v1253 = vmul.f32 %v1252, 1.442695
  %v1254 = vpow.pop %v1253
  %v1255 = vadd.f32 %v1254, 1.0
  %v1256 = vrcp.pop %v1255
  %v1257 = vmul.f32 1.0, %v1256
  %v1258 = vadd.f32 %v1035, %v1179
  %v1259 = vxor.u32 %v1258, 2147483648
  %v1260 = vmul.f32 %v1259, 1.442695
  %v1261 = vpow.pop %v1260
  %v1262 = vadd.f32 %v1261, 1.0
  %v1263 = vrcp.pop %v1262
  %v1264 = vmul.f32 1.0, %v1263
  %v1265 = vadd.f32 %v1248, %v61
  %v1266 = vmul.f32 %v1257, %v1265
  %v1267 = vadd.f32 %v1104, %v1266
  %v1268 = vtanh.pop %v1267
  %v1269 = vsub.f32 %v800, %v1268
  %v1270 = vmul.f32 %v1264, %v1269
  %v1271 = vadd.f32 %v1268, %v1270
  %1272 = vmatprep.subr.mxu0 0.0
  %1273 = vmatpush1.msra.mxu0 0.0
  %1274 = vmatprep.subr.mxu0 0.0
  %1275 = vmatpush1.msra.mxu0 0.0
  %1276 = vmatprep.subr.mxu0 0.0
  %1277 = vmatpush1.msra.mxu0 0.0
  %1278 = vmatprep.subr.mxu0 0.0
  %1279 = vmatpush1.msra.mxu0 0.0
  %1280 = vmatprep.subr.mxu0 0.0
  %1281 = vmatpush1.msra.mxu0 0.0
  %1282 = vmatprep.subr.mxu0 0.0
  %1283 = vmatpush1.msra.mxu0 0.0
  %1284 = vmatprep.subr.mxu0 0.0
  %1285 = vmatpush1.msra.mxu0 0.0
  %1286 = vmatprep.subr.mxu0 0.0
  %1287 = vmatpush1.msra.mxu0 0.0
  %1288 = vmatprep.subr.mxu0 0.0
  %1289 = vmatpush1.msra.mxu0 0.0
  %1290 = vmatprep.subr.mxu0 0.0
  %1291 = vmatpush1.msra.mxu0 0.0
  %1292 = vmatprep.subr.mxu0 0.0
  %1293 = vmatpush1.msra.mxu0 0.0
  %1294 = vmatprep.subr.mxu0 0.0
  %1295 = vmatpush1.msra.mxu0 0.0
  %1296 = vmatprep.subr.mxu0 %v30
  %1297 = vmatpush1.msra.mxu0 %v29
  %1298 = vmatprep.subr.mxu0 %v27
  %1299 = vmatpush1.msra.mxu0 %v26
  %1300 = vmatprep.subr.mxu0 %v24
  %1301 = vmatpush1.msra.mxu0 %v23
  %1302 = vmatprep.subr.mxu0 %v21
  %1303 = vmatpush1.msra.mxu0 %v20
  %1304 = vmatprep.subr.mxu0 0.0
  %1305 = vmatpush2.msra.mxu0 0.0
  %1306 = vmatprep.subr.mxu0 0.0
  %1307 = vmatpush2.msra.mxu0 0.0
  %1308 = vmatprep.subr.mxu0 0.0
  %1309 = vmatpush2.msra.mxu0 0.0
  %1310 = vmatprep.subr.mxu0 0.0
  %1311 = vmatpush2.msra.mxu0 0.0
  %1312 = vmatprep.subr.mxu0 0.0
  %1313 = vmatpush2.msra.mxu0 0.0
  %1314 = vmatprep.subr.mxu0 0.0
  %1315 = vmatpush2.msra.mxu0 0.0
  %1316 = vmatprep.subr.mxu0 0.0
  %1317 = vmatpush2.msra.mxu0 0.0
  %1318 = vmatprep.subr.mxu0 0.0
  %1319 = vmatpush2.msra.mxu0 0.0
  %1320 = vmatprep.subr.mxu0 0.0
  %1321 = vmatpush2.msra.mxu0 0.0
  %1322 = vmatprep.subr.mxu0 0.0
  %1323 = vmatpush2.msra.mxu0 0.0
  %1324 = vmatprep.subr.mxu0 0.0
  %1325 = vmatpush2.msra.mxu0 0.0
  %1326 = vmatprep.subr.mxu0 0.0
  %1327 = vmatpush2.msra.mxu0 0.0
  %1328 = vmatprep.subr.mxu0 0.0
  %1329 = vmatpush2.msra.mxu0 0.0
  %1330 = vmatprep.subr.mxu0 0.0
  %1331 = vmatpush2.msra.mxu0 0.0
  %1332 = vmatprep.subr.mxu0 0.0
  %1333 = vmatpush2.msra.mxu0 0.0
  %1334 = vmatprep.subr.mxu0 0.0
  %1335 = vmatpush2.msra.mxu0 0.0
  %1336 = vmatprep.mubr.f32.mxu0 0.0
  %1337 = vmatmul.mubr.f32.gmra.mxu0 %v964
  %v1338 = vpop.f32.mrf.mxu0
  %v1339 = vadd.f32 0.0, %v1338
  %v1340 = vpop.f32.mrf.mxu0
  %v1341 = vadd.f32 0.0, %v1340
  %1342 = vdwg.mxu0
  %1343 = vmatprep.subr.mxu0 0.0
  %1344 = vmatpush1.msra.mxu0 0.0
  %1345 = vmatprep.subr.mxu0 0.0
  %1346 = vmatpush1.msra.mxu0 0.0
  %1347 = vmatprep.subr.mxu0 0.0
  %1348 = vmatpush1.msra.mxu0 0.0
  %1349 = vmatprep.subr.mxu0 0.0
  %1350 = vmatpush1.msra.mxu0 0.0
  %1351 = vmatprep.subr.mxu0 0.0
  %1352 = vmatpush1.msra.mxu0 0.0
  %1353 = vmatprep.subr.mxu0 0.0
  %1354 = vmatpush1.msra.mxu0 0.0
  %1355 = vmatprep.subr.mxu0 0.0
  %1356 = vmatpush1.msra.mxu0 0.0
  %1357 = vmatprep.subr.mxu0 0.0
  %1358 = vmatpush1.msra.mxu0 0.0
  %1359 = vmatprep.subr.mxu0 0.0
  %1360 = vmatpush1.msra.mxu0 0.0
  %1361 = vmatprep.subr.mxu0 0.0
  %1362 = vmatpush1.msra.mxu0 0.0
  %1363 = vmatprep.subr.mxu0 0.0
  %1364 = vmatpush1.msra.mxu0 0.0
  %1365 = vmatprep.subr.mxu0 0.0
  %1366 = vmatpush1.msra.mxu0 0.0
  %1367 = vmatprep.subr.mxu0 0.0
  %1368 = vmatpush1.msra.mxu0 %v31
  %1369 = vmatprep.subr.mxu0 0.0
  %1370 = vmatpush1.msra.mxu0 %v28
  %1371 = vmatprep.subr.mxu0 0.0
  %1372 = vmatpush1.msra.mxu0 %v25
  %1373 = vmatprep.subr.mxu0 0.0
  %1374 = vmatpush1.msra.mxu0 %v22
  %1375 = vmatprep.subr.mxu0 0.0
  %1376 = vmatpush2.msra.mxu0 0.0
  %1377 = vmatprep.subr.mxu0 0.0
  %1378 = vmatpush2.msra.mxu0 0.0
  %1379 = vmatprep.subr.mxu0 0.0
  %1380 = vmatpush2.msra.mxu0 0.0
  %1381 = vmatprep.subr.mxu0 0.0
  %1382 = vmatpush2.msra.mxu0 0.0
  %1383 = vmatprep.subr.mxu0 0.0
  %1384 = vmatpush2.msra.mxu0 0.0
  %1385 = vmatprep.subr.mxu0 0.0
  %1386 = vmatpush2.msra.mxu0 0.0
  %1387 = vmatprep.subr.mxu0 0.0
  %1388 = vmatpush2.msra.mxu0 0.0
  %1389 = vmatprep.subr.mxu0 0.0
  %1390 = vmatpush2.msra.mxu0 0.0
  %1391 = vmatprep.subr.mxu0 0.0
  %1392 = vmatpush2.msra.mxu0 0.0
  %1393 = vmatprep.subr.mxu0 0.0
  %1394 = vmatpush2.msra.mxu0 0.0
  %1395 = vmatprep.subr.mxu0 0.0
  %1396 = vmatpush2.msra.mxu0 0.0
  %1397 = vmatprep.subr.mxu0 0.0
  %1398 = vmatpush2.msra.mxu0 0.0
  %1399 = vmatprep.subr.mxu0 0.0
  %1400 = vmatpush2.msra.mxu0 0.0
  %1401 = vmatprep.subr.mxu0 0.0
  %1402 = vmatpush2.msra.mxu0 0.0
  %1403 = vmatprep.subr.mxu0 0.0
  %1404 = vmatpush2.msra.mxu0 0.0
  %1405 = vmatprep.subr.mxu0 0.0
  %1406 = vmatpush2.msra.mxu0 0.0
  %1407 = vmatprep.mubr.f32.mxu0 0.0
  %1408 = vmatmul.mubr.f32.gmra.mxu0 %v964
  %v1409 = vpop.f32.mrf.mxu0
  %v1410 = vadd.f32 0.0, %v1409
  %v1411 = vpop.f32.mrf.mxu0
  %1412 = vdwg.mxu0
  %v1413 = vadd.f32 %v190, %v1339
  %v1414 = vxor.u32 %v1413, 2147483648
  %v1415 = vmul.f32 %v1414, 1.442695
  %v1416 = vpow.pop %v1415
  %v1417 = vadd.f32 %v1416, 1.0
  %v1418 = vrcp.pop %v1417
  %v1419 = vmul.f32 1.0, %v1418
  %v1420 = vadd.f32 %v192, %v1341
  %v1421 = vxor.u32 %v1420, 2147483648
  %v1422 = vmul.f32 %v1421, 1.442695
  %v1423 = vpow.pop %v1422
  %v1424 = vadd.f32 %v1423, 1.0
  %v1425 = vrcp.pop %v1424
  %v1426 = vmul.f32 1.0, %v1425
  %v1427 = vadd.f32 %v1410, %v57
  %v1428 = vmul.f32 %v1419, %v1427
  %v1429 = vadd.f32 %v301, %v1428
  %v1430 = vtanh.pop %v1429
  %v1431 = vsub.f32 %v962, %v1430
  %v1432 = vmul.f32 %v1426, %v1431
  %v1433 = vadd.f32 %v1430, %v1432
  %v1435 = vsel %vm329, %v1433, 0
  %1437 = vmatprep.subr.mxu0 0.0
  %1438 = vmatpush1.msra.mxu0 0.0
  %1439 = vmatprep.subr.mxu0 0.0
  %1440 = vmatpush1.msra.mxu0 0.0
  %1441 = vmatprep.subr.mxu0 0.0
  %1442 = vmatpush1.msra.mxu0 0.0
  %1443 = vmatprep.subr.mxu0 0.0
  %1444 = vmatpush1.msra.mxu0 0.0
  %1445 = vmatprep.subr.mxu0 0.0
  %1446 = vmatpush1.msra.mxu0 0.0
  %1447 = vmatprep.subr.mxu0 0.0
  %1448 = vmatpush1.msra.mxu0 0.0
  %1449 = vmatprep.subr.mxu0 0.0
  %1450 = vmatpush1.msra.mxu0 0.0
  %1451 = vmatprep.subr.mxu0 0.0
  %1452 = vmatpush1.msra.mxu0 0.0
  %1453 = vmatprep.subr.mxu0 0.0
  %1454 = vmatpush1.msra.mxu0 0.0
  %1455 = vmatprep.subr.mxu0 0.0
  %1456 = vmatpush1.msra.mxu0 0.0
  %1457 = vmatprep.subr.mxu0 0.0
  %1458 = vmatpush1.msra.mxu0 0.0
  %1459 = vmatprep.subr.mxu0 0.0
  %1460 = vmatpush1.msra.mxu0 0.0
  %1461 = vmatprep.subr.mxu0 %v42
  %1462 = vmatpush1.msra.mxu0 %v41
  %1463 = vmatprep.subr.mxu0 %v39
  %1464 = vmatpush1.msra.mxu0 %v38
  %1465 = vmatprep.subr.mxu0 %v36
  %1466 = vmatpush1.msra.mxu0 %v35
  %1467 = vmatprep.subr.mxu0 %v33
  %1468 = vmatpush1.msra.mxu0 %v32
  %1469 = vmatprep.subr.mxu0 0.0
  %1470 = vmatpush2.msra.mxu0 0.0
  %1471 = vmatprep.subr.mxu0 0.0
  %1472 = vmatpush2.msra.mxu0 0.0
  %1473 = vmatprep.subr.mxu0 0.0
  %1474 = vmatpush2.msra.mxu0 0.0
  %1475 = vmatprep.subr.mxu0 0.0
  %1476 = vmatpush2.msra.mxu0 0.0
  %1477 = vmatprep.subr.mxu0 0.0
  %1478 = vmatpush2.msra.mxu0 0.0
  %1479 = vmatprep.subr.mxu0 0.0
  %1480 = vmatpush2.msra.mxu0 0.0
  %1481 = vmatprep.subr.mxu0 0.0
  %1482 = vmatpush2.msra.mxu0 0.0
  %1483 = vmatprep.subr.mxu0 0.0
  %1484 = vmatpush2.msra.mxu0 0.0
  %1485 = vmatprep.subr.mxu0 0.0
  %1486 = vmatpush2.msra.mxu0 0.0
  %1487 = vmatprep.subr.mxu0 0.0
  %1488 = vmatpush2.msra.mxu0 0.0
  %1489 = vmatprep.subr.mxu0 0.0
  %1490 = vmatpush2.msra.mxu0 0.0
  %1491 = vmatprep.subr.mxu0 0.0
  %1492 = vmatpush2.msra.mxu0 0.0
  %1493 = vmatprep.subr.mxu0 0.0
  %1494 = vmatpush2.msra.mxu0 0.0
  %1495 = vmatprep.subr.mxu0 0.0
  %1496 = vmatpush2.msra.mxu0 0.0
  %1497 = vmatprep.subr.mxu0 0.0
  %1498 = vmatpush2.msra.mxu0 0.0
  %1499 = vmatprep.subr.mxu0 0.0
  %1500 = vmatpush2.msra.mxu0 0.0
  %1501 = vmatprep.mubr.f32.mxu0 0.0
  %1502 = vmatmul.mubr.f32.gmra.mxu0 %v1435
  %v1503 = vpop.f32.mrf.mxu0
  %v1504 = vadd.f32 %v58, %v1503
  %v1505 = vpop.f32.mrf.mxu0
  %v1506 = vadd.f32 %v59, %v1505
  %1507 = vdwg.mxu0
  %1508 = vmatprep.subr.mxu0 0.0
  %1509 = vmatpush1.msra.mxu0 0.0
  %1510 = vmatprep.subr.mxu0 0.0
  %1511 = vmatpush1.msra.mxu0 0.0
  %1512 = vmatprep.subr.mxu0 0.0
  %1513 = vmatpush1.msra.mxu0 0.0
  %1514 = vmatprep.subr.mxu0 0.0
  %1515 = vmatpush1.msra.mxu0 0.0
  %1516 = vmatprep.subr.mxu0 0.0
  %1517 = vmatpush1.msra.mxu0 0.0
  %1518 = vmatprep.subr.mxu0 0.0
  %1519 = vmatpush1.msra.mxu0 0.0
  %1520 = vmatprep.subr.mxu0 0.0
  %1521 = vmatpush1.msra.mxu0 0.0
  %1522 = vmatprep.subr.mxu0 0.0
  %1523 = vmatpush1.msra.mxu0 0.0
  %1524 = vmatprep.subr.mxu0 0.0
  %1525 = vmatpush1.msra.mxu0 0.0
  %1526 = vmatprep.subr.mxu0 0.0
  %1527 = vmatpush1.msra.mxu0 0.0
  %1528 = vmatprep.subr.mxu0 0.0
  %1529 = vmatpush1.msra.mxu0 0.0
  %1530 = vmatprep.subr.mxu0 0.0
  %1531 = vmatpush1.msra.mxu0 0.0
  %1532 = vmatprep.subr.mxu0 0.0
  %1533 = vmatpush1.msra.mxu0 %v43
  %1534 = vmatprep.subr.mxu0 0.0
  %1535 = vmatpush1.msra.mxu0 %v40
  %1536 = vmatprep.subr.mxu0 0.0
  %1537 = vmatpush1.msra.mxu0 %v37
  %1538 = vmatprep.subr.mxu0 0.0
  %1539 = vmatpush1.msra.mxu0 %v34
  %1540 = vmatprep.subr.mxu0 0.0
  %1541 = vmatpush2.msra.mxu0 0.0
  %1542 = vmatprep.subr.mxu0 0.0
  %1543 = vmatpush2.msra.mxu0 0.0
  %1544 = vmatprep.subr.mxu0 0.0
  %1545 = vmatpush2.msra.mxu0 0.0
  %1546 = vmatprep.subr.mxu0 0.0
  %1547 = vmatpush2.msra.mxu0 0.0
  %1548 = vmatprep.subr.mxu0 0.0
  %1549 = vmatpush2.msra.mxu0 0.0
  %1550 = vmatprep.subr.mxu0 0.0
  %1551 = vmatpush2.msra.mxu0 0.0
  %1552 = vmatprep.subr.mxu0 0.0
  %1553 = vmatpush2.msra.mxu0 0.0
  %1554 = vmatprep.subr.mxu0 0.0
  %1555 = vmatpush2.msra.mxu0 0.0
  %1556 = vmatprep.subr.mxu0 0.0
  %1557 = vmatpush2.msra.mxu0 0.0
  %1558 = vmatprep.subr.mxu0 0.0
  %1559 = vmatpush2.msra.mxu0 0.0
  %1560 = vmatprep.subr.mxu0 0.0
  %1561 = vmatpush2.msra.mxu0 0.0
  %1562 = vmatprep.subr.mxu0 0.0
  %1563 = vmatpush2.msra.mxu0 0.0
  %1564 = vmatprep.subr.mxu0 0.0
  %1565 = vmatpush2.msra.mxu0 0.0
  %1566 = vmatprep.subr.mxu0 0.0
  %1567 = vmatpush2.msra.mxu0 0.0
  %1568 = vmatprep.subr.mxu0 0.0
  %1569 = vmatpush2.msra.mxu0 0.0
  %1570 = vmatprep.subr.mxu0 0.0
  %1571 = vmatpush2.msra.mxu0 0.0
  %1572 = vmatprep.mubr.f32.mxu0 0.0
  %1573 = vmatmul.mubr.f32.gmra.mxu0 %v1435
  %v1574 = vpop.f32.mrf.mxu0
  %v1575 = vadd.f32 %v60, %v1574
  %v1576 = vpop.f32.mrf.mxu0
  %1577 = vdwg.mxu0
  %v1579 = vsel %vm329, %v1271, 0
  %1581 = vmatprep.subr.mxu0 0.0
  %1582 = vmatpush1.msra.mxu0 0.0
  %1583 = vmatprep.subr.mxu0 0.0
  %1584 = vmatpush1.msra.mxu0 0.0
  %1585 = vmatprep.subr.mxu0 0.0
  %1586 = vmatpush1.msra.mxu0 0.0
  %1587 = vmatprep.subr.mxu0 0.0
  %1588 = vmatpush1.msra.mxu0 0.0
  %1589 = vmatprep.subr.mxu0 0.0
  %1590 = vmatpush1.msra.mxu0 0.0
  %1591 = vmatprep.subr.mxu0 0.0
  %1592 = vmatpush1.msra.mxu0 0.0
  %1593 = vmatprep.subr.mxu0 0.0
  %1594 = vmatpush1.msra.mxu0 0.0
  %1595 = vmatprep.subr.mxu0 0.0
  %1596 = vmatpush1.msra.mxu0 0.0
  %1597 = vmatprep.subr.mxu0 0.0
  %1598 = vmatpush1.msra.mxu0 0.0
  %1599 = vmatprep.subr.mxu0 0.0
  %1600 = vmatpush1.msra.mxu0 0.0
  %1601 = vmatprep.subr.mxu0 0.0
  %1602 = vmatpush1.msra.mxu0 0.0
  %1603 = vmatprep.subr.mxu0 0.0
  %1604 = vmatpush1.msra.mxu0 0.0
  %1605 = vmatprep.subr.mxu0 %v54
  %1606 = vmatpush1.msra.mxu0 %v53
  %1607 = vmatprep.subr.mxu0 %v51
  %1608 = vmatpush1.msra.mxu0 %v50
  %1609 = vmatprep.subr.mxu0 %v48
  %1610 = vmatpush1.msra.mxu0 %v47
  %1611 = vmatprep.subr.mxu0 %v45
  %1612 = vmatpush1.msra.mxu0 %v44
  %1613 = vmatprep.subr.mxu0 0.0
  %1614 = vmatpush2.msra.mxu0 0.0
  %1615 = vmatprep.subr.mxu0 0.0
  %1616 = vmatpush2.msra.mxu0 0.0
  %1617 = vmatprep.subr.mxu0 0.0
  %1618 = vmatpush2.msra.mxu0 0.0
  %1619 = vmatprep.subr.mxu0 0.0
  %1620 = vmatpush2.msra.mxu0 0.0
  %1621 = vmatprep.subr.mxu0 0.0
  %1622 = vmatpush2.msra.mxu0 0.0
  %1623 = vmatprep.subr.mxu0 0.0
  %1624 = vmatpush2.msra.mxu0 0.0
  %1625 = vmatprep.subr.mxu0 0.0
  %1626 = vmatpush2.msra.mxu0 0.0
  %1627 = vmatprep.subr.mxu0 0.0
  %1628 = vmatpush2.msra.mxu0 0.0
  %1629 = vmatprep.subr.mxu0 0.0
  %1630 = vmatpush2.msra.mxu0 0.0
  %1631 = vmatprep.subr.mxu0 0.0
  %1632 = vmatpush2.msra.mxu0 0.0
  %1633 = vmatprep.subr.mxu0 0.0
  %1634 = vmatpush2.msra.mxu0 0.0
  %1635 = vmatprep.subr.mxu0 0.0
  %1636 = vmatpush2.msra.mxu0 0.0
  %1637 = vmatprep.subr.mxu0 0.0
  %1638 = vmatpush2.msra.mxu0 0.0
  %1639 = vmatprep.subr.mxu0 0.0
  %1640 = vmatpush2.msra.mxu0 0.0
  %1641 = vmatprep.subr.mxu0 0.0
  %1642 = vmatpush2.msra.mxu0 0.0
  %1643 = vmatprep.subr.mxu0 0.0
  %1644 = vmatpush2.msra.mxu0 0.0
  %1645 = vmatprep.mubr.f32.mxu0 0.0
  %1646 = vmatmul.mubr.f32.gmra.mxu0 %v1579
  %v1647 = vpop.f32.mrf.mxu0
  %v1648 = vadd.f32 0.0, %v1647
  %v1649 = vpop.f32.mrf.mxu0
  %v1650 = vadd.f32 0.0, %v1649
  %1651 = vdwg.mxu0
  %1652 = vmatprep.subr.mxu0 0.0
  %1653 = vmatpush1.msra.mxu0 0.0
  %1654 = vmatprep.subr.mxu0 0.0
  %1655 = vmatpush1.msra.mxu0 0.0
  %1656 = vmatprep.subr.mxu0 0.0
  %1657 = vmatpush1.msra.mxu0 0.0
  %1658 = vmatprep.subr.mxu0 0.0
  %1659 = vmatpush1.msra.mxu0 0.0
  %1660 = vmatprep.subr.mxu0 0.0
  %1661 = vmatpush1.msra.mxu0 0.0
  %1662 = vmatprep.subr.mxu0 0.0
  %1663 = vmatpush1.msra.mxu0 0.0
  %1664 = vmatprep.subr.mxu0 0.0
  %1665 = vmatpush1.msra.mxu0 0.0
  %1666 = vmatprep.subr.mxu0 0.0
  %1667 = vmatpush1.msra.mxu0 0.0
  %1668 = vmatprep.subr.mxu0 0.0
  %1669 = vmatpush1.msra.mxu0 0.0
  %1670 = vmatprep.subr.mxu0 0.0
  %1671 = vmatpush1.msra.mxu0 0.0
  %1672 = vmatprep.subr.mxu0 0.0
  %1673 = vmatpush1.msra.mxu0 0.0
  %1674 = vmatprep.subr.mxu0 0.0
  %1675 = vmatpush1.msra.mxu0 0.0
  %1676 = vmatprep.subr.mxu0 0.0
  %1677 = vmatpush1.msra.mxu0 %v55
  %1678 = vmatprep.subr.mxu0 0.0
  %1679 = vmatpush1.msra.mxu0 %v52
  %1680 = vmatprep.subr.mxu0 0.0
  %1681 = vmatpush1.msra.mxu0 %v49
  %1682 = vmatprep.subr.mxu0 0.0
  %1683 = vmatpush1.msra.mxu0 %v46
  %1684 = vmatprep.subr.mxu0 0.0
  %1685 = vmatpush2.msra.mxu0 0.0
  %1686 = vmatprep.subr.mxu0 0.0
  %1687 = vmatpush2.msra.mxu0 0.0
  %1688 = vmatprep.subr.mxu0 0.0
  %1689 = vmatpush2.msra.mxu0 0.0
  %1690 = vmatprep.subr.mxu0 0.0
  %1691 = vmatpush2.msra.mxu0 0.0
  %1692 = vmatprep.subr.mxu0 0.0
  %1693 = vmatpush2.msra.mxu0 0.0
  %1694 = vmatprep.subr.mxu0 0.0
  %1695 = vmatpush2.msra.mxu0 0.0
  %1696 = vmatprep.subr.mxu0 0.0
  %1697 = vmatpush2.msra.mxu0 0.0
  %1698 = vmatprep.subr.mxu0 0.0
  %1699 = vmatpush2.msra.mxu0 0.0
  %1700 = vmatprep.subr.mxu0 0.0
  %1701 = vmatpush2.msra.mxu0 0.0
  %1702 = vmatprep.subr.mxu0 0.0
  %1703 = vmatpush2.msra.mxu0 0.0
  %1704 = vmatprep.subr.mxu0 0.0
  %1705 = vmatpush2.msra.mxu0 0.0
  %1706 = vmatprep.subr.mxu0 0.0
  %1707 = vmatpush2.msra.mxu0 0.0
  %1708 = vmatprep.subr.mxu0 0.0
  %1709 = vmatpush2.msra.mxu0 0.0
  %1710 = vmatprep.subr.mxu0 0.0
  %1711 = vmatpush2.msra.mxu0 0.0
  %1712 = vmatprep.subr.mxu0 0.0
  %1713 = vmatpush2.msra.mxu0 0.0
  %1714 = vmatprep.subr.mxu0 0.0
  %1715 = vmatpush2.msra.mxu0 0.0
  %1716 = vmatprep.mubr.f32.mxu0 0.0
  %1717 = vmatmul.mubr.f32.gmra.mxu0 %v1579
  %v1718 = vpop.f32.mrf.mxu0
  %v1719 = vadd.f32 0.0, %v1718
  %v1720 = vpop.f32.mrf.mxu0
  %1721 = vdwg.mxu0
  %v1722 = vadd.f32 %v1504, %v1648
  %v1723 = vxor.u32 %v1722, 2147483648
  %v1724 = vmul.f32 %v1723, 1.442695
  %v1725 = vpow.pop %v1724
  %v1726 = vadd.f32 %v1725, 1.0
  %v1727 = vrcp.pop %v1726
  %v1728 = vmul.f32 1.0, %v1727
  %v1729 = vadd.f32 %v1506, %v1650
  %v1730 = vxor.u32 %v1729, 2147483648
  %v1731 = vmul.f32 %v1730, 1.442695
  %v1732 = vpow.pop %v1731
  %v1733 = vadd.f32 %v1732, 1.0
  %v1734 = vrcp.pop %v1733
  %v1735 = vmul.f32 1.0, %v1734
  %v1736 = vadd.f32 %v1719, %v61
  %v1737 = vmul.f32 %v1728, %v1736
  %v1738 = vadd.f32 %v1575, %v1737
  %v1739 = vtanh.pop %v1738
  %v1740 = vsub.f32 %v1271, %v1739
  %v1741 = vmul.f32 %v1735, %v1740
  %v1742 = vadd.f32 %v1739, %v1741
  %1743 = vmatprep.subr.mxu0 0.0
  %1744 = vmatpush1.msra.mxu0 0.0
  %1745 = vmatprep.subr.mxu0 0.0
  %1746 = vmatpush1.msra.mxu0 0.0
  %1747 = vmatprep.subr.mxu0 0.0
  %1748 = vmatpush1.msra.mxu0 0.0
  %1749 = vmatprep.subr.mxu0 0.0
  %1750 = vmatpush1.msra.mxu0 0.0
  %1751 = vmatprep.subr.mxu0 0.0
  %1752 = vmatpush1.msra.mxu0 0.0
  %1753 = vmatprep.subr.mxu0 0.0
  %1754 = vmatpush1.msra.mxu0 0.0
  %1755 = vmatprep.subr.mxu0 0.0
  %1756 = vmatpush1.msra.mxu0 0.0
  %1757 = vmatprep.subr.mxu0 0.0
  %1758 = vmatpush1.msra.mxu0 0.0
  %1759 = vmatprep.subr.mxu0 0.0
  %1760 = vmatpush1.msra.mxu0 0.0
  %1761 = vmatprep.subr.mxu0 0.0
  %1762 = vmatpush1.msra.mxu0 0.0
  %1763 = vmatprep.subr.mxu0 0.0
  %1764 = vmatpush1.msra.mxu0 0.0
  %1765 = vmatprep.subr.mxu0 0.0
  %1766 = vmatpush1.msra.mxu0 0.0
  %1767 = vmatprep.subr.mxu0 %v30
  %1768 = vmatpush1.msra.mxu0 %v29
  %1769 = vmatprep.subr.mxu0 %v27
  %1770 = vmatpush1.msra.mxu0 %v26
  %1771 = vmatprep.subr.mxu0 %v24
  %1772 = vmatpush1.msra.mxu0 %v23
  %1773 = vmatprep.subr.mxu0 %v21
  %1774 = vmatpush1.msra.mxu0 %v20
  %1775 = vmatprep.subr.mxu0 0.0
  %1776 = vmatpush2.msra.mxu0 0.0
  %1777 = vmatprep.subr.mxu0 0.0
  %1778 = vmatpush2.msra.mxu0 0.0
  %1779 = vmatprep.subr.mxu0 0.0
  %1780 = vmatpush2.msra.mxu0 0.0
  %1781 = vmatprep.subr.mxu0 0.0
  %1782 = vmatpush2.msra.mxu0 0.0
  %1783 = vmatprep.subr.mxu0 0.0
  %1784 = vmatpush2.msra.mxu0 0.0
  %1785 = vmatprep.subr.mxu0 0.0
  %1786 = vmatpush2.msra.mxu0 0.0
  %1787 = vmatprep.subr.mxu0 0.0
  %1788 = vmatpush2.msra.mxu0 0.0
  %1789 = vmatprep.subr.mxu0 0.0
  %1790 = vmatpush2.msra.mxu0 0.0
  %1791 = vmatprep.subr.mxu0 0.0
  %1792 = vmatpush2.msra.mxu0 0.0
  %1793 = vmatprep.subr.mxu0 0.0
  %1794 = vmatpush2.msra.mxu0 0.0
  %1795 = vmatprep.subr.mxu0 0.0
  %1796 = vmatpush2.msra.mxu0 0.0
  %1797 = vmatprep.subr.mxu0 0.0
  %1798 = vmatpush2.msra.mxu0 0.0
  %1799 = vmatprep.subr.mxu0 0.0
  %1800 = vmatpush2.msra.mxu0 0.0
  %1801 = vmatprep.subr.mxu0 0.0
  %1802 = vmatpush2.msra.mxu0 0.0
  %1803 = vmatprep.subr.mxu0 0.0
  %1804 = vmatpush2.msra.mxu0 0.0
  %1805 = vmatprep.subr.mxu0 0.0
  %1806 = vmatpush2.msra.mxu0 0.0
  %1807 = vmatprep.mubr.f32.mxu0 0.0
  %1808 = vmatmul.mubr.f32.gmra.mxu0 %v1435
  %v1809 = vpop.f32.mrf.mxu0
  %v1810 = vadd.f32 0.0, %v1809
  %v1811 = vpop.f32.mrf.mxu0
  %v1812 = vadd.f32 0.0, %v1811
  %1813 = vdwg.mxu0
  %1814 = vmatprep.subr.mxu0 0.0
  %1815 = vmatpush1.msra.mxu0 0.0
  %1816 = vmatprep.subr.mxu0 0.0
  %1817 = vmatpush1.msra.mxu0 0.0
  %1818 = vmatprep.subr.mxu0 0.0
  %1819 = vmatpush1.msra.mxu0 0.0
  %1820 = vmatprep.subr.mxu0 0.0
  %1821 = vmatpush1.msra.mxu0 0.0
  %1822 = vmatprep.subr.mxu0 0.0
  %1823 = vmatpush1.msra.mxu0 0.0
  %1824 = vmatprep.subr.mxu0 0.0
  %1825 = vmatpush1.msra.mxu0 0.0
  %1826 = vmatprep.subr.mxu0 0.0
  %1827 = vmatpush1.msra.mxu0 0.0
  %1828 = vmatprep.subr.mxu0 0.0
  %1829 = vmatpush1.msra.mxu0 0.0
  %1830 = vmatprep.subr.mxu0 0.0
  %1831 = vmatpush1.msra.mxu0 0.0
  %1832 = vmatprep.subr.mxu0 0.0
  %1833 = vmatpush1.msra.mxu0 0.0
  %1834 = vmatprep.subr.mxu0 0.0
  %1835 = vmatpush1.msra.mxu0 0.0
  %1836 = vmatprep.subr.mxu0 0.0
  %1837 = vmatpush1.msra.mxu0 0.0
  %1838 = vmatprep.subr.mxu0 0.0
  %1839 = vmatpush1.msra.mxu0 %v31
  %1840 = vmatprep.subr.mxu0 0.0
  %1841 = vmatpush1.msra.mxu0 %v28
  %1842 = vmatprep.subr.mxu0 0.0
  %1843 = vmatpush1.msra.mxu0 %v25
  %1844 = vmatprep.subr.mxu0 0.0
  %1845 = vmatpush1.msra.mxu0 %v22
  %1846 = vmatprep.subr.mxu0 0.0
  %1847 = vmatpush2.msra.mxu0 0.0
  %1848 = vmatprep.subr.mxu0 0.0
  %1849 = vmatpush2.msra.mxu0 0.0
  %1850 = vmatprep.subr.mxu0 0.0
  %1851 = vmatpush2.msra.mxu0 0.0
  %1852 = vmatprep.subr.mxu0 0.0
  %1853 = vmatpush2.msra.mxu0 0.0
  %1854 = vmatprep.subr.mxu0 0.0
  %1855 = vmatpush2.msra.mxu0 0.0
  %1856 = vmatprep.subr.mxu0 0.0
  %1857 = vmatpush2.msra.mxu0 0.0
  %1858 = vmatprep.subr.mxu0 0.0
  %1859 = vmatpush2.msra.mxu0 0.0
  %1860 = vmatprep.subr.mxu0 0.0
  %1861 = vmatpush2.msra.mxu0 0.0
  %1862 = vmatprep.subr.mxu0 0.0
  %1863 = vmatpush2.msra.mxu0 0.0
  %1864 = vmatprep.subr.mxu0 0.0
  %1865 = vmatpush2.msra.mxu0 0.0
  %1866 = vmatprep.subr.mxu0 0.0
  %1867 = vmatpush2.msra.mxu0 0.0
  %1868 = vmatprep.subr.mxu0 0.0
  %1869 = vmatpush2.msra.mxu0 0.0
  %1870 = vmatprep.subr.mxu0 0.0
  %1871 = vmatpush2.msra.mxu0 0.0
  %1872 = vmatprep.subr.mxu0 0.0
  %1873 = vmatpush2.msra.mxu0 0.0
  %1874 = vmatprep.subr.mxu0 0.0
  %1875 = vmatpush2.msra.mxu0 0.0
  %1876 = vmatprep.subr.mxu0 0.0
  %1877 = vmatpush2.msra.mxu0 0.0
  %1878 = vmatprep.mubr.f32.mxu0 0.0
  %1879 = vmatmul.mubr.f32.gmra.mxu0 %v1435
  %v1880 = vpop.f32.mrf.mxu0
  %v1881 = vadd.f32 0.0, %v1880
  %v1882 = vpop.f32.mrf.mxu0
  %1883 = vdwg.mxu0
  %v1884 = vadd.f32 %v196, %v1810
  %v1885 = vxor.u32 %v1884, 2147483648
  %v1886 = vmul.f32 %v1885, 1.442695
  %v1887 = vpow.pop %v1886
  %v1888 = vadd.f32 %v1887, 1.0
  %v1889 = vrcp.pop %v1888
  %v1890 = vmul.f32 1.0, %v1889
  %v1891 = vadd.f32 %v198, %v1812
  %v1892 = vxor.u32 %v1891, 2147483648
  %v1893 = vmul.f32 %v1892, 1.442695
  %v1894 = vpow.pop %v1893
  %v1895 = vadd.f32 %v1894, 1.0
  %v1896 = vrcp.pop %v1895
  %v1897 = vmul.f32 1.0, %v1896
  %v1898 = vadd.f32 %v1881, %v57
  %v1899 = vmul.f32 %v1890, %v1898
  %v1900 = vadd.f32 %v306, %v1899
  %v1901 = vtanh.pop %v1900
  %v1902 = vsub.f32 %v1433, %v1901
  %v1903 = vmul.f32 %v1897, %v1902
  %v1904 = vadd.f32 %v1901, %v1903
  %v1906 = vsel %vm329, %v1904, 0
  %1908 = vmatprep.subr.mxu0 0.0
  %1909 = vmatpush1.msra.mxu0 0.0
  %1910 = vmatprep.subr.mxu0 0.0
  %1911 = vmatpush1.msra.mxu0 0.0
  %1912 = vmatprep.subr.mxu0 0.0
  %1913 = vmatpush1.msra.mxu0 0.0
  %1914 = vmatprep.subr.mxu0 0.0
  %1915 = vmatpush1.msra.mxu0 0.0
  %1916 = vmatprep.subr.mxu0 0.0
  %1917 = vmatpush1.msra.mxu0 0.0
  %1918 = vmatprep.subr.mxu0 0.0
  %1919 = vmatpush1.msra.mxu0 0.0
  %1920 = vmatprep.subr.mxu0 0.0
  %1921 = vmatpush1.msra.mxu0 0.0
  %1922 = vmatprep.subr.mxu0 0.0
  %1923 = vmatpush1.msra.mxu0 0.0
  %1924 = vmatprep.subr.mxu0 0.0
  %1925 = vmatpush1.msra.mxu0 0.0
  %1926 = vmatprep.subr.mxu0 0.0
  %1927 = vmatpush1.msra.mxu0 0.0
  %1928 = vmatprep.subr.mxu0 0.0
  %1929 = vmatpush1.msra.mxu0 0.0
  %1930 = vmatprep.subr.mxu0 0.0
  %1931 = vmatpush1.msra.mxu0 0.0
  %1932 = vmatprep.subr.mxu0 %v42
  %1933 = vmatpush1.msra.mxu0 %v41
  %1934 = vmatprep.subr.mxu0 %v39
  %1935 = vmatpush1.msra.mxu0 %v38
  %1936 = vmatprep.subr.mxu0 %v36
  %1937 = vmatpush1.msra.mxu0 %v35
  %1938 = vmatprep.subr.mxu0 %v33
  %1939 = vmatpush1.msra.mxu0 %v32
  %1940 = vmatprep.subr.mxu0 0.0
  %1941 = vmatpush2.msra.mxu0 0.0
  %1942 = vmatprep.subr.mxu0 0.0
  %1943 = vmatpush2.msra.mxu0 0.0
  %1944 = vmatprep.subr.mxu0 0.0
  %1945 = vmatpush2.msra.mxu0 0.0
  %1946 = vmatprep.subr.mxu0 0.0
  %1947 = vmatpush2.msra.mxu0 0.0
  %1948 = vmatprep.subr.mxu0 0.0
  %1949 = vmatpush2.msra.mxu0 0.0
  %1950 = vmatprep.subr.mxu0 0.0
  %1951 = vmatpush2.msra.mxu0 0.0
  %1952 = vmatprep.subr.mxu0 0.0
  %1953 = vmatpush2.msra.mxu0 0.0
  %1954 = vmatprep.subr.mxu0 0.0
  %1955 = vmatpush2.msra.mxu0 0.0
  %1956 = vmatprep.subr.mxu0 0.0
  %1957 = vmatpush2.msra.mxu0 0.0
  %1958 = vmatprep.subr.mxu0 0.0
  %1959 = vmatpush2.msra.mxu0 0.0
  %1960 = vmatprep.subr.mxu0 0.0
  %1961 = vmatpush2.msra.mxu0 0.0
  %1962 = vmatprep.subr.mxu0 0.0
  %1963 = vmatpush2.msra.mxu0 0.0
  %1964 = vmatprep.subr.mxu0 0.0
  %1965 = vmatpush2.msra.mxu0 0.0
  %1966 = vmatprep.subr.mxu0 0.0
  %1967 = vmatpush2.msra.mxu0 0.0
  %1968 = vmatprep.subr.mxu0 0.0
  %1969 = vmatpush2.msra.mxu0 0.0
  %1970 = vmatprep.subr.mxu0 0.0
  %1971 = vmatpush2.msra.mxu0 0.0
  %1972 = vmatprep.mubr.f32.mxu0 0.0
  %1973 = vmatmul.mubr.f32.gmra.mxu0 %v1906
  %v1974 = vpop.f32.mrf.mxu0
  %v1975 = vadd.f32 %v58, %v1974
  %v1976 = vpop.f32.mrf.mxu0
  %v1977 = vadd.f32 %v59, %v1976
  %1978 = vdwg.mxu0
  %1979 = vmatprep.subr.mxu0 0.0
  %1980 = vmatpush1.msra.mxu0 0.0
  %1981 = vmatprep.subr.mxu0 0.0
  %1982 = vmatpush1.msra.mxu0 0.0
  %1983 = vmatprep.subr.mxu0 0.0
  %1984 = vmatpush1.msra.mxu0 0.0
  %1985 = vmatprep.subr.mxu0 0.0
  %1986 = vmatpush1.msra.mxu0 0.0
  %1987 = vmatprep.subr.mxu0 0.0
  %1988 = vmatpush1.msra.mxu0 0.0
  %1989 = vmatprep.subr.mxu0 0.0
  %1990 = vmatpush1.msra.mxu0 0.0
  %1991 = vmatprep.subr.mxu0 0.0
  %1992 = vmatpush1.msra.mxu0 0.0
  %1993 = vmatprep.subr.mxu0 0.0
  %1994 = vmatpush1.msra.mxu0 0.0
  %1995 = vmatprep.subr.mxu0 0.0
  %1996 = vmatpush1.msra.mxu0 0.0
  %1997 = vmatprep.subr.mxu0 0.0
  %1998 = vmatpush1.msra.mxu0 0.0
  %1999 = vmatprep.subr.mxu0 0.0
  %2000 = vmatpush1.msra.mxu0 0.0
  %2001 = vmatprep.subr.mxu0 0.0
  %2002 = vmatpush1.msra.mxu0 0.0
  %2003 = vmatprep.subr.mxu0 0.0
  %2004 = vmatpush1.msra.mxu0 %v43
  %2005 = vmatprep.subr.mxu0 0.0
  %2006 = vmatpush1.msra.mxu0 %v40
  %2007 = vmatprep.subr.mxu0 0.0
  %2008 = vmatpush1.msra.mxu0 %v37
  %2009 = vmatprep.subr.mxu0 0.0
  %2010 = vmatpush1.msra.mxu0 %v34
  %2011 = vmatprep.subr.mxu0 0.0
  %2012 = vmatpush2.msra.mxu0 0.0
  %2013 = vmatprep.subr.mxu0 0.0
  %2014 = vmatpush2.msra.mxu0 0.0
  %2015 = vmatprep.subr.mxu0 0.0
  %2016 = vmatpush2.msra.mxu0 0.0
  %2017 = vmatprep.subr.mxu0 0.0
  %2018 = vmatpush2.msra.mxu0 0.0
  %2019 = vmatprep.subr.mxu0 0.0
  %2020 = vmatpush2.msra.mxu0 0.0
  %2021 = vmatprep.subr.mxu0 0.0
  %2022 = vmatpush2.msra.mxu0 0.0
  %2023 = vmatprep.subr.mxu0 0.0
  %2024 = vmatpush2.msra.mxu0 0.0
  %2025 = vmatprep.subr.mxu0 0.0
  %2026 = vmatpush2.msra.mxu0 0.0
  %2027 = vmatprep.subr.mxu0 0.0
  %2028 = vmatpush2.msra.mxu0 0.0
  %2029 = vmatprep.subr.mxu0 0.0
  %2030 = vmatpush2.msra.mxu0 0.0
  %2031 = vmatprep.subr.mxu0 0.0
  %2032 = vmatpush2.msra.mxu0 0.0
  %2033 = vmatprep.subr.mxu0 0.0
  %2034 = vmatpush2.msra.mxu0 0.0
  %2035 = vmatprep.subr.mxu0 0.0
  %2036 = vmatpush2.msra.mxu0 0.0
  %2037 = vmatprep.subr.mxu0 0.0
  %2038 = vmatpush2.msra.mxu0 0.0
  %2039 = vmatprep.subr.mxu0 0.0
  %2040 = vmatpush2.msra.mxu0 0.0
  %2041 = vmatprep.subr.mxu0 0.0
  %2042 = vmatpush2.msra.mxu0 0.0
  %2043 = vmatprep.mubr.f32.mxu0 0.0
  %2044 = vmatmul.mubr.f32.gmra.mxu0 %v1906
  %v2045 = vpop.f32.mrf.mxu0
  %v2046 = vadd.f32 %v60, %v2045
  %v2047 = vpop.f32.mrf.mxu0
  %2048 = vdwg.mxu0
  %v2050 = vsel %vm329, %v1742, 0
  %2052 = vmatprep.subr.mxu0 0.0
  %2053 = vmatpush1.msra.mxu0 0.0
  %2054 = vmatprep.subr.mxu0 0.0
  %2055 = vmatpush1.msra.mxu0 0.0
  %2056 = vmatprep.subr.mxu0 0.0
  %2057 = vmatpush1.msra.mxu0 0.0
  %2058 = vmatprep.subr.mxu0 0.0
  %2059 = vmatpush1.msra.mxu0 0.0
  %2060 = vmatprep.subr.mxu0 0.0
  %2061 = vmatpush1.msra.mxu0 0.0
  %2062 = vmatprep.subr.mxu0 0.0
  %2063 = vmatpush1.msra.mxu0 0.0
  %2064 = vmatprep.subr.mxu0 0.0
  %2065 = vmatpush1.msra.mxu0 0.0
  %2066 = vmatprep.subr.mxu0 0.0
  %2067 = vmatpush1.msra.mxu0 0.0
  %2068 = vmatprep.subr.mxu0 0.0
  %2069 = vmatpush1.msra.mxu0 0.0
  %2070 = vmatprep.subr.mxu0 0.0
  %2071 = vmatpush1.msra.mxu0 0.0
  %2072 = vmatprep.subr.mxu0 0.0
  %2073 = vmatpush1.msra.mxu0 0.0
  %2074 = vmatprep.subr.mxu0 0.0
  %2075 = vmatpush1.msra.mxu0 0.0
  %2076 = vmatprep.subr.mxu0 %v54
  %2077 = vmatpush1.msra.mxu0 %v53
  %2078 = vmatprep.subr.mxu0 %v51
  %2079 = vmatpush1.msra.mxu0 %v50
  %2080 = vmatprep.subr.mxu0 %v48
  %2081 = vmatpush1.msra.mxu0 %v47
  %2082 = vmatprep.subr.mxu0 %v45
  %2083 = vmatpush1.msra.mxu0 %v44
  %2084 = vmatprep.subr.mxu0 0.0
  %2085 = vmatpush2.msra.mxu0 0.0
  %2086 = vmatprep.subr.mxu0 0.0
  %2087 = vmatpush2.msra.mxu0 0.0
  %2088 = vmatprep.subr.mxu0 0.0
  %2089 = vmatpush2.msra.mxu0 0.0
  %2090 = vmatprep.subr.mxu0 0.0
  %2091 = vmatpush2.msra.mxu0 0.0
  %2092 = vmatprep.subr.mxu0 0.0
  %2093 = vmatpush2.msra.mxu0 0.0
  %2094 = vmatprep.subr.mxu0 0.0
  %2095 = vmatpush2.msra.mxu0 0.0
  %2096 = vmatprep.subr.mxu0 0.0
  %2097 = vmatpush2.msra.mxu0 0.0
  %2098 = vmatprep.subr.mxu0 0.0
  %2099 = vmatpush2.msra.mxu0 0.0
  %2100 = vmatprep.subr.mxu0 0.0
  %2101 = vmatpush2.msra.mxu0 0.0
  %2102 = vmatprep.subr.mxu0 0.0
  %2103 = vmatpush2.msra.mxu0 0.0
  %2104 = vmatprep.subr.mxu0 0.0
  %2105 = vmatpush2.msra.mxu0 0.0
  %2106 = vmatprep.subr.mxu0 0.0
  %2107 = vmatpush2.msra.mxu0 0.0
  %2108 = vmatprep.subr.mxu0 0.0
  %2109 = vmatpush2.msra.mxu0 0.0
  %2110 = vmatprep.subr.mxu0 0.0
  %2111 = vmatpush2.msra.mxu0 0.0
  %2112 = vmatprep.subr.mxu0 0.0
  %2113 = vmatpush2.msra.mxu0 0.0
  %2114 = vmatprep.subr.mxu0 0.0
  %2115 = vmatpush2.msra.mxu0 0.0
  %2116 = vmatprep.mubr.f32.mxu0 0.0
  %2117 = vmatmul.mubr.f32.gmra.mxu0 %v2050
  %v2118 = vpop.f32.mrf.mxu0
  %v2119 = vadd.f32 0.0, %v2118
  %v2120 = vpop.f32.mrf.mxu0
  %v2121 = vadd.f32 0.0, %v2120
  %2122 = vdwg.mxu0
  %2123 = vmatprep.subr.mxu0 0.0
  %2124 = vmatpush1.msra.mxu0 0.0
  %2125 = vmatprep.subr.mxu0 0.0
  %2126 = vmatpush1.msra.mxu0 0.0
  %2127 = vmatprep.subr.mxu0 0.0
  %2128 = vmatpush1.msra.mxu0 0.0
  %2129 = vmatprep.subr.mxu0 0.0
  %2130 = vmatpush1.msra.mxu0 0.0
  %2131 = vmatprep.subr.mxu0 0.0
  %2132 = vmatpush1.msra.mxu0 0.0
  %2133 = vmatprep.subr.mxu0 0.0
  %2134 = vmatpush1.msra.mxu0 0.0
  %2135 = vmatprep.subr.mxu0 0.0
  %2136 = vmatpush1.msra.mxu0 0.0
  %2137 = vmatprep.subr.mxu0 0.0
  %2138 = vmatpush1.msra.mxu0 0.0
  %2139 = vmatprep.subr.mxu0 0.0
  %2140 = vmatpush1.msra.mxu0 0.0
  %2141 = vmatprep.subr.mxu0 0.0
  %2142 = vmatpush1.msra.mxu0 0.0
  %2143 = vmatprep.subr.mxu0 0.0
  %2144 = vmatpush1.msra.mxu0 0.0
  %2145 = vmatprep.subr.mxu0 0.0
  %2146 = vmatpush1.msra.mxu0 0.0
  %2147 = vmatprep.subr.mxu0 0.0
  %2148 = vmatpush1.msra.mxu0 %v55
  %2149 = vmatprep.subr.mxu0 0.0
  %2150 = vmatpush1.msra.mxu0 %v52
  %2151 = vmatprep.subr.mxu0 0.0
  %2152 = vmatpush1.msra.mxu0 %v49
  %2153 = vmatprep.subr.mxu0 0.0
  %2154 = vmatpush1.msra.mxu0 %v46
  %2155 = vmatprep.subr.mxu0 0.0
  %2156 = vmatpush2.msra.mxu0 0.0
  %2157 = vmatprep.subr.mxu0 0.0
  %2158 = vmatpush2.msra.mxu0 0.0
  %2159 = vmatprep.subr.mxu0 0.0
  %2160 = vmatpush2.msra.mxu0 0.0
  %2161 = vmatprep.subr.mxu0 0.0
  %2162 = vmatpush2.msra.mxu0 0.0
  %2163 = vmatprep.subr.mxu0 0.0
  %2164 = vmatpush2.msra.mxu0 0.0
  %2165 = vmatprep.subr.mxu0 0.0
  %2166 = vmatpush2.msra.mxu0 0.0
  %2167 = vmatprep.subr.mxu0 0.0
  %2168 = vmatpush2.msra.mxu0 0.0
  %2169 = vmatprep.subr.mxu0 0.0
  %2170 = vmatpush2.msra.mxu0 0.0
  %2171 = vmatprep.subr.mxu0 0.0
  %2172 = vmatpush2.msra.mxu0 0.0
  %2173 = vmatprep.subr.mxu0 0.0
  %2174 = vmatpush2.msra.mxu0 0.0
  %2175 = vmatprep.subr.mxu0 0.0
  %2176 = vmatpush2.msra.mxu0 0.0
  %2177 = vmatprep.subr.mxu0 0.0
  %2178 = vmatpush2.msra.mxu0 0.0
  %2179 = vmatprep.subr.mxu0 0.0
  %2180 = vmatpush2.msra.mxu0 0.0
  %2181 = vmatprep.subr.mxu0 0.0
  %2182 = vmatpush2.msra.mxu0 0.0
  %2183 = vmatprep.subr.mxu0 0.0
  %2184 = vmatpush2.msra.mxu0 0.0
  %2185 = vmatprep.subr.mxu0 0.0
  %2186 = vmatpush2.msra.mxu0 0.0
  %2187 = vmatprep.mubr.f32.mxu0 0.0
  %2188 = vmatmul.mubr.f32.gmra.mxu0 %v2050
  %v2189 = vpop.f32.mrf.mxu0
  %v2190 = vadd.f32 0.0, %v2189
  %v2191 = vpop.f32.mrf.mxu0
  %2192 = vdwg.mxu0
  %v2193 = vadd.f32 %v1975, %v2119
  %v2194 = vxor.u32 %v2193, 2147483648
  %v2195 = vmul.f32 %v2194, 1.442695
  %v2196 = vpow.pop %v2195
  %v2197 = vadd.f32 %v2196, 1.0
  %v2198 = vrcp.pop %v2197
  %v2199 = vmul.f32 1.0, %v2198
  %v2200 = vadd.f32 %v1977, %v2121
  %v2201 = vxor.u32 %v2200, 2147483648
  %v2202 = vmul.f32 %v2201, 1.442695
  %v2203 = vpow.pop %v2202
  %v2204 = vadd.f32 %v2203, 1.0
  %v2205 = vrcp.pop %v2204
  %v2206 = vmul.f32 1.0, %v2205
  %v2207 = vadd.f32 %v2190, %v61
  %v2208 = vmul.f32 %v2199, %v2207
  %v2209 = vadd.f32 %v2046, %v2208
  %v2210 = vtanh.pop %v2209
  %v2211 = vsub.f32 %v1742, %v2210
  %v2212 = vmul.f32 %v2206, %v2211
  %v2213 = vadd.f32 %v2210, %v2212
  %2214 = vmatprep.subr.mxu0 0.0
  %2215 = vmatpush1.msra.mxu0 0.0
  %2216 = vmatprep.subr.mxu0 0.0
  %2217 = vmatpush1.msra.mxu0 0.0
  %2218 = vmatprep.subr.mxu0 0.0
  %2219 = vmatpush1.msra.mxu0 0.0
  %2220 = vmatprep.subr.mxu0 0.0
  %2221 = vmatpush1.msra.mxu0 0.0
  %2222 = vmatprep.subr.mxu0 0.0
  %2223 = vmatpush1.msra.mxu0 0.0
  %2224 = vmatprep.subr.mxu0 0.0
  %2225 = vmatpush1.msra.mxu0 0.0
  %2226 = vmatprep.subr.mxu0 0.0
  %2227 = vmatpush1.msra.mxu0 0.0
  %2228 = vmatprep.subr.mxu0 0.0
  %2229 = vmatpush1.msra.mxu0 0.0
  %2230 = vmatprep.subr.mxu0 0.0
  %2231 = vmatpush1.msra.mxu0 0.0
  %2232 = vmatprep.subr.mxu0 0.0
  %2233 = vmatpush1.msra.mxu0 0.0
  %2234 = vmatprep.subr.mxu0 0.0
  %2235 = vmatpush1.msra.mxu0 0.0
  %2236 = vmatprep.subr.mxu0 0.0
  %2237 = vmatpush1.msra.mxu0 0.0
  %2238 = vmatprep.subr.mxu0 %v30
  %2239 = vmatpush1.msra.mxu0 %v29
  %2240 = vmatprep.subr.mxu0 %v27
  %2241 = vmatpush1.msra.mxu0 %v26
  %2242 = vmatprep.subr.mxu0 %v24
  %2243 = vmatpush1.msra.mxu0 %v23
  %2244 = vmatprep.subr.mxu0 %v21
  %2245 = vmatpush1.msra.mxu0 %v20
  %2246 = vmatprep.subr.mxu0 0.0
  %2247 = vmatpush2.msra.mxu0 0.0
  %2248 = vmatprep.subr.mxu0 0.0
  %2249 = vmatpush2.msra.mxu0 0.0
  %2250 = vmatprep.subr.mxu0 0.0
  %2251 = vmatpush2.msra.mxu0 0.0
  %2252 = vmatprep.subr.mxu0 0.0
  %2253 = vmatpush2.msra.mxu0 0.0
  %2254 = vmatprep.subr.mxu0 0.0
  %2255 = vmatpush2.msra.mxu0 0.0
  %2256 = vmatprep.subr.mxu0 0.0
  %2257 = vmatpush2.msra.mxu0 0.0
  %2258 = vmatprep.subr.mxu0 0.0
  %2259 = vmatpush2.msra.mxu0 0.0
  %2260 = vmatprep.subr.mxu0 0.0
  %2261 = vmatpush2.msra.mxu0 0.0
  %2262 = vmatprep.subr.mxu0 0.0
  %2263 = vmatpush2.msra.mxu0 0.0
  %2264 = vmatprep.subr.mxu0 0.0
  %2265 = vmatpush2.msra.mxu0 0.0
  %2266 = vmatprep.subr.mxu0 0.0
  %2267 = vmatpush2.msra.mxu0 0.0
  %2268 = vmatprep.subr.mxu0 0.0
  %2269 = vmatpush2.msra.mxu0 0.0
  %2270 = vmatprep.subr.mxu0 0.0
  %2271 = vmatpush2.msra.mxu0 0.0
  %2272 = vmatprep.subr.mxu0 0.0
  %2273 = vmatpush2.msra.mxu0 0.0
  %2274 = vmatprep.subr.mxu0 0.0
  %2275 = vmatpush2.msra.mxu0 0.0
  %2276 = vmatprep.subr.mxu0 0.0
  %2277 = vmatpush2.msra.mxu0 0.0
  %2278 = vmatprep.mubr.f32.mxu0 0.0
  %2279 = vmatmul.mubr.f32.gmra.mxu0 %v1906
  %v2280 = vpop.f32.mrf.mxu0
  %v2281 = vadd.f32 0.0, %v2280
  %v2282 = vpop.f32.mrf.mxu0
  %v2283 = vadd.f32 0.0, %v2282
  %2284 = vdwg.mxu0
  %2285 = vmatprep.subr.mxu0 0.0
  %2286 = vmatpush1.msra.mxu0 0.0
  %2287 = vmatprep.subr.mxu0 0.0
  %2288 = vmatpush1.msra.mxu0 0.0
  %2289 = vmatprep.subr.mxu0 0.0
  %2290 = vmatpush1.msra.mxu0 0.0
  %2291 = vmatprep.subr.mxu0 0.0
  %2292 = vmatpush1.msra.mxu0 0.0
  %2293 = vmatprep.subr.mxu0 0.0
  %2294 = vmatpush1.msra.mxu0 0.0
  %2295 = vmatprep.subr.mxu0 0.0
  %2296 = vmatpush1.msra.mxu0 0.0
  %2297 = vmatprep.subr.mxu0 0.0
  %2298 = vmatpush1.msra.mxu0 0.0
  %2299 = vmatprep.subr.mxu0 0.0
  %2300 = vmatpush1.msra.mxu0 0.0
  %2301 = vmatprep.subr.mxu0 0.0
  %2302 = vmatpush1.msra.mxu0 0.0
  %2303 = vmatprep.subr.mxu0 0.0
  %2304 = vmatpush1.msra.mxu0 0.0
  %2305 = vmatprep.subr.mxu0 0.0
  %2306 = vmatpush1.msra.mxu0 0.0
  %2307 = vmatprep.subr.mxu0 0.0
  %2308 = vmatpush1.msra.mxu0 0.0
  %2309 = vmatprep.subr.mxu0 0.0
  %2310 = vmatpush1.msra.mxu0 %v31
  %2311 = vmatprep.subr.mxu0 0.0
  %2312 = vmatpush1.msra.mxu0 %v28
  %2313 = vmatprep.subr.mxu0 0.0
  %2314 = vmatpush1.msra.mxu0 %v25
  %2315 = vmatprep.subr.mxu0 0.0
  %2316 = vmatpush1.msra.mxu0 %v22
  %2317 = vmatprep.subr.mxu0 0.0
  %2318 = vmatpush2.msra.mxu0 0.0
  %2319 = vmatprep.subr.mxu0 0.0
  %2320 = vmatpush2.msra.mxu0 0.0
  %2321 = vmatprep.subr.mxu0 0.0
  %2322 = vmatpush2.msra.mxu0 0.0
  %2323 = vmatprep.subr.mxu0 0.0
  %2324 = vmatpush2.msra.mxu0 0.0
  %2325 = vmatprep.subr.mxu0 0.0
  %2326 = vmatpush2.msra.mxu0 0.0
  %2327 = vmatprep.subr.mxu0 0.0
  %2328 = vmatpush2.msra.mxu0 0.0
  %2329 = vmatprep.subr.mxu0 0.0
  %2330 = vmatpush2.msra.mxu0 0.0
  %2331 = vmatprep.subr.mxu0 0.0
  %2332 = vmatpush2.msra.mxu0 0.0
  %2333 = vmatprep.subr.mxu0 0.0
  %2334 = vmatpush2.msra.mxu0 0.0
  %2335 = vmatprep.subr.mxu0 0.0
  %2336 = vmatpush2.msra.mxu0 0.0
  %2337 = vmatprep.subr.mxu0 0.0
  %2338 = vmatpush2.msra.mxu0 0.0
  %2339 = vmatprep.subr.mxu0 0.0
  %2340 = vmatpush2.msra.mxu0 0.0
  %2341 = vmatprep.subr.mxu0 0.0
  %2342 = vmatpush2.msra.mxu0 0.0
  %2343 = vmatprep.subr.mxu0 0.0
  %2344 = vmatpush2.msra.mxu0 0.0
  %2345 = vmatprep.subr.mxu0 0.0
  %2346 = vmatpush2.msra.mxu0 0.0
  %2347 = vmatprep.subr.mxu0 0.0
  %2348 = vmatpush2.msra.mxu0 0.0
  %2349 = vmatprep.mubr.f32.mxu0 0.0
  %2350 = vmatmul.mubr.f32.gmra.mxu0 %v1906
  %v2351 = vpop.f32.mrf.mxu0
  %v2352 = vadd.f32 0.0, %v2351
  %v2353 = vpop.f32.mrf.mxu0
  %2354 = vdwg.mxu0
  %v2355 = vadd.f32 %v202, %v2281
  %v2356 = vxor.u32 %v2355, 2147483648
  %v2357 = vmul.f32 %v2356, 1.442695
  %v2358 = vpow.pop %v2357
  %v2359 = vadd.f32 %v2358, 1.0
  %v2360 = vrcp.pop %v2359
  %v2361 = vmul.f32 1.0, %v2360
  %v2362 = vadd.f32 %v204, %v2283
  %v2363 = vxor.u32 %v2362, 2147483648
  %v2364 = vmul.f32 %v2363, 1.442695
  %v2365 = vpow.pop %v2364
  %v2366 = vadd.f32 %v2365, 1.0
  %v2367 = vrcp.pop %v2366
  %v2368 = vmul.f32 1.0, %v2367
  %v2369 = vadd.f32 %v2352, %v57
  %v2370 = vmul.f32 %v2361, %v2369
  %v2371 = vadd.f32 %v311, %v2370
  %v2372 = vtanh.pop %v2371
  %v2373 = vsub.f32 %v1904, %v2372
  %v2374 = vmul.f32 %v2368, %v2373
  %v2375 = vadd.f32 %v2372, %v2374
  %v2377 = vsel %vm329, %v2375, 0
  %2379 = vmatprep.subr.mxu0 0.0
  %2380 = vmatpush1.msra.mxu0 0.0
  %2381 = vmatprep.subr.mxu0 0.0
  %2382 = vmatpush1.msra.mxu0 0.0
  %2383 = vmatprep.subr.mxu0 0.0
  %2384 = vmatpush1.msra.mxu0 0.0
  %2385 = vmatprep.subr.mxu0 0.0
  %2386 = vmatpush1.msra.mxu0 0.0
  %2387 = vmatprep.subr.mxu0 0.0
  %2388 = vmatpush1.msra.mxu0 0.0
  %2389 = vmatprep.subr.mxu0 0.0
  %2390 = vmatpush1.msra.mxu0 0.0
  %2391 = vmatprep.subr.mxu0 0.0
  %2392 = vmatpush1.msra.mxu0 0.0
  %2393 = vmatprep.subr.mxu0 0.0
  %2394 = vmatpush1.msra.mxu0 0.0
  %2395 = vmatprep.subr.mxu0 0.0
  %2396 = vmatpush1.msra.mxu0 0.0
  %2397 = vmatprep.subr.mxu0 0.0
  %2398 = vmatpush1.msra.mxu0 0.0
  %2399 = vmatprep.subr.mxu0 0.0
  %2400 = vmatpush1.msra.mxu0 0.0
  %2401 = vmatprep.subr.mxu0 0.0
  %2402 = vmatpush1.msra.mxu0 0.0
  %2403 = vmatprep.subr.mxu0 %v42
  %2404 = vmatpush1.msra.mxu0 %v41
  %2405 = vmatprep.subr.mxu0 %v39
  %2406 = vmatpush1.msra.mxu0 %v38
  %2407 = vmatprep.subr.mxu0 %v36
  %2408 = vmatpush1.msra.mxu0 %v35
  %2409 = vmatprep.subr.mxu0 %v33
  %2410 = vmatpush1.msra.mxu0 %v32
  %2411 = vmatprep.subr.mxu0 0.0
  %2412 = vmatpush2.msra.mxu0 0.0
  %2413 = vmatprep.subr.mxu0 0.0
  %2414 = vmatpush2.msra.mxu0 0.0
  %2415 = vmatprep.subr.mxu0 0.0
  %2416 = vmatpush2.msra.mxu0 0.0
  %2417 = vmatprep.subr.mxu0 0.0
  %2418 = vmatpush2.msra.mxu0 0.0
  %2419 = vmatprep.subr.mxu0 0.0
  %2420 = vmatpush2.msra.mxu0 0.0
  %2421 = vmatprep.subr.mxu0 0.0
  %2422 = vmatpush2.msra.mxu0 0.0
  %2423 = vmatprep.subr.mxu0 0.0
  %2424 = vmatpush2.msra.mxu0 0.0
  %2425 = vmatprep.subr.mxu0 0.0
  %2426 = vmatpush2.msra.mxu0 0.0
  %2427 = vmatprep.subr.mxu0 0.0
  %2428 = vmatpush2.msra.mxu0 0.0
  %2429 = vmatprep.subr.mxu0 0.0
  %2430 = vmatpush2.msra.mxu0 0.0
  %2431 = vmatprep.subr.mxu0 0.0
  %2432 = vmatpush2.msra.mxu0 0.0
  %2433 = vmatprep.subr.mxu0 0.0
  %2434 = vmatpush2.msra.mxu0 0.0
  %2435 = vmatprep.subr.mxu0 0.0
  %2436 = vmatpush2.msra.mxu0 0.0
  %2437 = vmatprep.subr.mxu0 0.0
  %2438 = vmatpush2.msra.mxu0 0.0
  %2439 = vmatprep.subr.mxu0 0.0
  %2440 = vmatpush2.msra.mxu0 0.0
  %2441 = vmatprep.subr.mxu0 0.0
  %2442 = vmatpush2.msra.mxu0 0.0
  %2443 = vmatprep.mubr.f32.mxu0 0.0
  %2444 = vmatmul.mubr.f32.gmra.mxu0 %v2377
  %v2445 = vpop.f32.mrf.mxu0
  %v2446 = vadd.f32 %v58, %v2445
  %v2447 = vpop.f32.mrf.mxu0
  %v2448 = vadd.f32 %v59, %v2447
  %2449 = vdwg.mxu0
  %2450 = vmatprep.subr.mxu0 0.0
  %2451 = vmatpush1.msra.mxu0 0.0
  %2452 = vmatprep.subr.mxu0 0.0
  %2453 = vmatpush1.msra.mxu0 0.0
  %2454 = vmatprep.subr.mxu0 0.0
  %2455 = vmatpush1.msra.mxu0 0.0
  %2456 = vmatprep.subr.mxu0 0.0
  %2457 = vmatpush1.msra.mxu0 0.0
  %2458 = vmatprep.subr.mxu0 0.0
  %2459 = vmatpush1.msra.mxu0 0.0
  %2460 = vmatprep.subr.mxu0 0.0
  %2461 = vmatpush1.msra.mxu0 0.0
  %2462 = vmatprep.subr.mxu0 0.0
  %2463 = vmatpush1.msra.mxu0 0.0
  %2464 = vmatprep.subr.mxu0 0.0
  %2465 = vmatpush1.msra.mxu0 0.0
  %2466 = vmatprep.subr.mxu0 0.0
  %2467 = vmatpush1.msra.mxu0 0.0
  %2468 = vmatprep.subr.mxu0 0.0
  %2469 = vmatpush1.msra.mxu0 0.0
  %2470 = vmatprep.subr.mxu0 0.0
  %2471 = vmatpush1.msra.mxu0 0.0
  %2472 = vmatprep.subr.mxu0 0.0
  %2473 = vmatpush1.msra.mxu0 0.0
  %2474 = vmatprep.subr.mxu0 0.0
  %2475 = vmatpush1.msra.mxu0 %v43
  %2476 = vmatprep.subr.mxu0 0.0
  %2477 = vmatpush1.msra.mxu0 %v40
  %2478 = vmatprep.subr.mxu0 0.0
  %2479 = vmatpush1.msra.mxu0 %v37
  %2480 = vmatprep.subr.mxu0 0.0
  %2481 = vmatpush1.msra.mxu0 %v34
  %2482 = vmatprep.subr.mxu0 0.0
  %2483 = vmatpush2.msra.mxu0 0.0
  %2484 = vmatprep.subr.mxu0 0.0
  %2485 = vmatpush2.msra.mxu0 0.0
  %2486 = vmatprep.subr.mxu0 0.0
  %2487 = vmatpush2.msra.mxu0 0.0
  %2488 = vmatprep.subr.mxu0 0.0
  %2489 = vmatpush2.msra.mxu0 0.0
  %2490 = vmatprep.subr.mxu0 0.0
  %2491 = vmatpush2.msra.mxu0 0.0
  %2492 = vmatprep.subr.mxu0 0.0
  %2493 = vmatpush2.msra.mxu0 0.0
  %2494 = vmatprep.subr.mxu0 0.0
  %2495 = vmatpush2.msra.mxu0 0.0
  %2496 = vmatprep.subr.mxu0 0.0
  %2497 = vmatpush2.msra.mxu0 0.0
  %2498 = vmatprep.subr.mxu0 0.0
  %2499 = vmatpush2.msra.mxu0 0.0
  %2500 = vmatprep.subr.mxu0 0.0
  %2501 = vmatpush2.msra.mxu0 0.0
  %2502 = vmatprep.subr.mxu0 0.0
  %2503 = vmatpush2.msra.mxu0 0.0
  %2504 = vmatprep.subr.mxu0 0.0
  %2505 = vmatpush2.msra.mxu0 0.0
  %2506 = vmatprep.subr.mxu0 0.0
  %2507 = vmatpush2.msra.mxu0 0.0
  %2508 = vmatprep.subr.mxu0 0.0
  %2509 = vmatpush2.msra.mxu0 0.0
  %2510 = vmatprep.subr.mxu0 0.0
  %2511 = vmatpush2.msra.mxu0 0.0
  %2512 = vmatprep.subr.mxu0 0.0
  %2513 = vmatpush2.msra.mxu0 0.0
  %2514 = vmatprep.mubr.f32.mxu0 0.0
  %2515 = vmatmul.mubr.f32.gmra.mxu0 %v2377
  %v2516 = vpop.f32.mrf.mxu0
  %v2517 = vadd.f32 %v60, %v2516
  %v2518 = vpop.f32.mrf.mxu0
  %2519 = vdwg.mxu0
  %v2521 = vsel %vm329, %v2213, 0
  %2523 = vmatprep.subr.mxu0 0.0
  %2524 = vmatpush1.msra.mxu0 0.0
  %2525 = vmatprep.subr.mxu0 0.0
  %2526 = vmatpush1.msra.mxu0 0.0
  %2527 = vmatprep.subr.mxu0 0.0
  %2528 = vmatpush1.msra.mxu0 0.0
  %2529 = vmatprep.subr.mxu0 0.0
  %2530 = vmatpush1.msra.mxu0 0.0
  %2531 = vmatprep.subr.mxu0 0.0
  %2532 = vmatpush1.msra.mxu0 0.0
  %2533 = vmatprep.subr.mxu0 0.0
  %2534 = vmatpush1.msra.mxu0 0.0
  %2535 = vmatprep.subr.mxu0 0.0
  %2536 = vmatpush1.msra.mxu0 0.0
  %2537 = vmatprep.subr.mxu0 0.0
  %2538 = vmatpush1.msra.mxu0 0.0
  %2539 = vmatprep.subr.mxu0 0.0
  %2540 = vmatpush1.msra.mxu0 0.0
  %2541 = vmatprep.subr.mxu0 0.0
  %2542 = vmatpush1.msra.mxu0 0.0
  %2543 = vmatprep.subr.mxu0 0.0
  %2544 = vmatpush1.msra.mxu0 0.0
  %2545 = vmatprep.subr.mxu0 0.0
  %2546 = vmatpush1.msra.mxu0 0.0
  %2547 = vmatprep.subr.mxu0 %v54
  %2548 = vmatpush1.msra.mxu0 %v53
  %2549 = vmatprep.subr.mxu0 %v51
  %2550 = vmatpush1.msra.mxu0 %v50
  %2551 = vmatprep.subr.mxu0 %v48
  %2552 = vmatpush1.msra.mxu0 %v47
  %2553 = vmatprep.subr.mxu0 %v45
  %2554 = vmatpush1.msra.mxu0 %v44
  %2555 = vmatprep.subr.mxu0 0.0
  %2556 = vmatpush2.msra.mxu0 0.0
  %2557 = vmatprep.subr.mxu0 0.0
  %2558 = vmatpush2.msra.mxu0 0.0
  %2559 = vmatprep.subr.mxu0 0.0
  %2560 = vmatpush2.msra.mxu0 0.0
  %2561 = vmatprep.subr.mxu0 0.0
  %2562 = vmatpush2.msra.mxu0 0.0
  %2563 = vmatprep.subr.mxu0 0.0
  %2564 = vmatpush2.msra.mxu0 0.0
  %2565 = vmatprep.subr.mxu0 0.0
  %2566 = vmatpush2.msra.mxu0 0.0
  %2567 = vmatprep.subr.mxu0 0.0
  %2568 = vmatpush2.msra.mxu0 0.0
  %2569 = vmatprep.subr.mxu0 0.0
  %2570 = vmatpush2.msra.mxu0 0.0
  %2571 = vmatprep.subr.mxu0 0.0
  %2572 = vmatpush2.msra.mxu0 0.0
  %2573 = vmatprep.subr.mxu0 0.0
  %2574 = vmatpush2.msra.mxu0 0.0
  %2575 = vmatprep.subr.mxu0 0.0
  %2576 = vmatpush2.msra.mxu0 0.0
  %2577 = vmatprep.subr.mxu0 0.0
  %2578 = vmatpush2.msra.mxu0 0.0
  %2579 = vmatprep.subr.mxu0 0.0
  %2580 = vmatpush2.msra.mxu0 0.0
  %2581 = vmatprep.subr.mxu0 0.0
  %2582 = vmatpush2.msra.mxu0 0.0
  %2583 = vmatprep.subr.mxu0 0.0
  %2584 = vmatpush2.msra.mxu0 0.0
  %2585 = vmatprep.subr.mxu0 0.0
  %2586 = vmatpush2.msra.mxu0 0.0
  %2587 = vmatprep.mubr.f32.mxu0 0.0
  %2588 = vmatmul.mubr.f32.gmra.mxu0 %v2521
  %v2589 = vpop.f32.mrf.mxu0
  %v2590 = vadd.f32 0.0, %v2589
  %v2591 = vpop.f32.mrf.mxu0
  %v2592 = vadd.f32 0.0, %v2591
  %2593 = vdwg.mxu0
  %2594 = vmatprep.subr.mxu0 0.0
  %2595 = vmatpush1.msra.mxu0 0.0
  %2596 = vmatprep.subr.mxu0 0.0
  %2597 = vmatpush1.msra.mxu0 0.0
  %2598 = vmatprep.subr.mxu0 0.0
  %2599 = vmatpush1.msra.mxu0 0.0
  %2600 = vmatprep.subr.mxu0 0.0
  %2601 = vmatpush1.msra.mxu0 0.0
  %2602 = vmatprep.subr.mxu0 0.0
  %2603 = vmatpush1.msra.mxu0 0.0
  %2604 = vmatprep.subr.mxu0 0.0
  %2605 = vmatpush1.msra.mxu0 0.0
  %2606 = vmatprep.subr.mxu0 0.0
  %2607 = vmatpush1.msra.mxu0 0.0
  %2608 = vmatprep.subr.mxu0 0.0
  %2609 = vmatpush1.msra.mxu0 0.0
  %2610 = vmatprep.subr.mxu0 0.0
  %2611 = vmatpush1.msra.mxu0 0.0
  %2612 = vmatprep.subr.mxu0 0.0
  %2613 = vmatpush1.msra.mxu0 0.0
  %2614 = vmatprep.subr.mxu0 0.0
  %2615 = vmatpush1.msra.mxu0 0.0
  %2616 = vmatprep.subr.mxu0 0.0
  %2617 = vmatpush1.msra.mxu0 0.0
  %2618 = vmatprep.subr.mxu0 0.0
  %2619 = vmatpush1.msra.mxu0 %v55
  %2620 = vmatprep.subr.mxu0 0.0
  %2621 = vmatpush1.msra.mxu0 %v52
  %2622 = vmatprep.subr.mxu0 0.0
  %2623 = vmatpush1.msra.mxu0 %v49
  %2624 = vmatprep.subr.mxu0 0.0
  %2625 = vmatpush1.msra.mxu0 %v46
  %2626 = vmatprep.subr.mxu0 0.0
  %2627 = vmatpush2.msra.mxu0 0.0
  %2628 = vmatprep.subr.mxu0 0.0
  %2629 = vmatpush2.msra.mxu0 0.0
  %2630 = vmatprep.subr.mxu0 0.0
  %2631 = vmatpush2.msra.mxu0 0.0
  %2632 = vmatprep.subr.mxu0 0.0
  %2633 = vmatpush2.msra.mxu0 0.0
  %2634 = vmatprep.subr.mxu0 0.0
  %2635 = vmatpush2.msra.mxu0 0.0
  %2636 = vmatprep.subr.mxu0 0.0
  %2637 = vmatpush2.msra.mxu0 0.0
  %2638 = vmatprep.subr.mxu0 0.0
  %2639 = vmatpush2.msra.mxu0 0.0
  %2640 = vmatprep.subr.mxu0 0.0
  %2641 = vmatpush2.msra.mxu0 0.0
  %2642 = vmatprep.subr.mxu0 0.0
  %2643 = vmatpush2.msra.mxu0 0.0
  %2644 = vmatprep.subr.mxu0 0.0
  %2645 = vmatpush2.msra.mxu0 0.0
  %2646 = vmatprep.subr.mxu0 0.0
  %2647 = vmatpush2.msra.mxu0 0.0
  %2648 = vmatprep.subr.mxu0 0.0
  %2649 = vmatpush2.msra.mxu0 0.0
  %2650 = vmatprep.subr.mxu0 0.0
  %2651 = vmatpush2.msra.mxu0 0.0
  %2652 = vmatprep.subr.mxu0 0.0
  %2653 = vmatpush2.msra.mxu0 0.0
  %2654 = vmatprep.subr.mxu0 0.0
  %2655 = vmatpush2.msra.mxu0 0.0
  %2656 = vmatprep.subr.mxu0 0.0
  %2657 = vmatpush2.msra.mxu0 0.0
  %2658 = vmatprep.mubr.f32.mxu0 0.0
  %2659 = vmatmul.mubr.f32.gmra.mxu0 %v2521
  %v2660 = vpop.f32.mrf.mxu0
  %v2661 = vadd.f32 0.0, %v2660
  %v2662 = vpop.f32.mrf.mxu0
  %2663 = vdwg.mxu0
  %v2664 = vadd.f32 %v2446, %v2590
  %v2665 = vxor.u32 %v2664, 2147483648
  %v2666 = vmul.f32 %v2665, 1.442695
  %v2667 = vpow.pop %v2666
  %v2668 = vadd.f32 %v2667, 1.0
  %v2669 = vrcp.pop %v2668
  %v2670 = vmul.f32 1.0, %v2669
  %v2671 = vadd.f32 %v2448, %v2592
  %v2672 = vxor.u32 %v2671, 2147483648
  %v2673 = vmul.f32 %v2672, 1.442695
  %v2674 = vpow.pop %v2673
  %v2675 = vadd.f32 %v2674, 1.0
  %v2676 = vrcp.pop %v2675
  %v2677 = vmul.f32 1.0, %v2676
  %v2678 = vadd.f32 %v2661, %v61
  %v2679 = vmul.f32 %v2670, %v2678
  %v2680 = vadd.f32 %v2517, %v2679
  %v2681 = vtanh.pop %v2680
  %v2682 = vsub.f32 %v2213, %v2681
  %v2683 = vmul.f32 %v2677, %v2682
  %v2684 = vadd.f32 %v2681, %v2683
  %2685 = vmatprep.subr.mxu0 0.0
  %2686 = vmatpush1.msra.mxu0 0.0
  %2687 = vmatprep.subr.mxu0 0.0
  %2688 = vmatpush1.msra.mxu0 0.0
  %2689 = vmatprep.subr.mxu0 0.0
  %2690 = vmatpush1.msra.mxu0 0.0
  %2691 = vmatprep.subr.mxu0 0.0
  %2692 = vmatpush1.msra.mxu0 0.0
  %2693 = vmatprep.subr.mxu0 0.0
  %2694 = vmatpush1.msra.mxu0 0.0
  %2695 = vmatprep.subr.mxu0 0.0
  %2696 = vmatpush1.msra.mxu0 0.0
  %2697 = vmatprep.subr.mxu0 0.0
  %2698 = vmatpush1.msra.mxu0 0.0
  %2699 = vmatprep.subr.mxu0 0.0
  %2700 = vmatpush1.msra.mxu0 0.0
  %2701 = vmatprep.subr.mxu0 0.0
  %2702 = vmatpush1.msra.mxu0 0.0
  %2703 = vmatprep.subr.mxu0 0.0
  %2704 = vmatpush1.msra.mxu0 0.0
  %2705 = vmatprep.subr.mxu0 0.0
  %2706 = vmatpush1.msra.mxu0 0.0
  %2707 = vmatprep.subr.mxu0 0.0
  %2708 = vmatpush1.msra.mxu0 0.0
  %2709 = vmatprep.subr.mxu0 %v30
  %2710 = vmatpush1.msra.mxu0 %v29
  %2711 = vmatprep.subr.mxu0 %v27
  %2712 = vmatpush1.msra.mxu0 %v26
  %2713 = vmatprep.subr.mxu0 %v24
  %2714 = vmatpush1.msra.mxu0 %v23
  %2715 = vmatprep.subr.mxu0 %v21
  %2716 = vmatpush1.msra.mxu0 %v20
  %2717 = vmatprep.subr.mxu0 0.0
  %2718 = vmatpush2.msra.mxu0 0.0
  %2719 = vmatprep.subr.mxu0 0.0
  %2720 = vmatpush2.msra.mxu0 0.0
  %2721 = vmatprep.subr.mxu0 0.0
  %2722 = vmatpush2.msra.mxu0 0.0
  %2723 = vmatprep.subr.mxu0 0.0
  %2724 = vmatpush2.msra.mxu0 0.0
  %2725 = vmatprep.subr.mxu0 0.0
  %2726 = vmatpush2.msra.mxu0 0.0
  %2727 = vmatprep.subr.mxu0 0.0
  %2728 = vmatpush2.msra.mxu0 0.0
  %2729 = vmatprep.subr.mxu0 0.0
  %2730 = vmatpush2.msra.mxu0 0.0
  %2731 = vmatprep.subr.mxu0 0.0
  %2732 = vmatpush2.msra.mxu0 0.0
  %2733 = vmatprep.subr.mxu0 0.0
  %2734 = vmatpush2.msra.mxu0 0.0
  %2735 = vmatprep.subr.mxu0 0.0
  %2736 = vmatpush2.msra.mxu0 0.0
  %2737 = vmatprep.subr.mxu0 0.0
  %2738 = vmatpush2.msra.mxu0 0.0
  %2739 = vmatprep.subr.mxu0 0.0
  %2740 = vmatpush2.msra.mxu0 0.0
  %2741 = vmatprep.subr.mxu0 0.0
  %2742 = vmatpush2.msra.mxu0 0.0
  %2743 = vmatprep.subr.mxu0 0.0
  %2744 = vmatpush2.msra.mxu0 0.0
  %2745 = vmatprep.subr.mxu0 0.0
  %2746 = vmatpush2.msra.mxu0 0.0
  %2747 = vmatprep.subr.mxu0 0.0
  %2748 = vmatpush2.msra.mxu0 0.0
  %2749 = vmatprep.mubr.f32.mxu0 0.0
  %2750 = vmatmul.mubr.f32.gmra.mxu0 %v2377
  %v2751 = vpop.f32.mrf.mxu0
  %v2752 = vadd.f32 0.0, %v2751
  %v2753 = vpop.f32.mrf.mxu0
  %v2754 = vadd.f32 0.0, %v2753
  %2755 = vdwg.mxu0
  %2756 = vmatprep.subr.mxu0 0.0
  %2757 = vmatpush1.msra.mxu0 0.0
  %2758 = vmatprep.subr.mxu0 0.0
  %2759 = vmatpush1.msra.mxu0 0.0
  %2760 = vmatprep.subr.mxu0 0.0
  %2761 = vmatpush1.msra.mxu0 0.0
  %2762 = vmatprep.subr.mxu0 0.0
  %2763 = vmatpush1.msra.mxu0 0.0
  %2764 = vmatprep.subr.mxu0 0.0
  %2765 = vmatpush1.msra.mxu0 0.0
  %2766 = vmatprep.subr.mxu0 0.0
  %2767 = vmatpush1.msra.mxu0 0.0
  %2768 = vmatprep.subr.mxu0 0.0
  %2769 = vmatpush1.msra.mxu0 0.0
  %2770 = vmatprep.subr.mxu0 0.0
  %2771 = vmatpush1.msra.mxu0 0.0
  %2772 = vmatprep.subr.mxu0 0.0
  %2773 = vmatpush1.msra.mxu0 0.0
  %2774 = vmatprep.subr.mxu0 0.0
  %2775 = vmatpush1.msra.mxu0 0.0
  %2776 = vmatprep.subr.mxu0 0.0
  %2777 = vmatpush1.msra.mxu0 0.0
  %2778 = vmatprep.subr.mxu0 0.0
  %2779 = vmatpush1.msra.mxu0 0.0
  %2780 = vmatprep.subr.mxu0 0.0
  %2781 = vmatpush1.msra.mxu0 %v31
  %2782 = vmatprep.subr.mxu0 0.0
  %2783 = vmatpush1.msra.mxu0 %v28
  %2784 = vmatprep.subr.mxu0 0.0
  %2785 = vmatpush1.msra.mxu0 %v25
  %2786 = vmatprep.subr.mxu0 0.0
  %2787 = vmatpush1.msra.mxu0 %v22
  %2788 = vmatprep.subr.mxu0 0.0
  %2789 = vmatpush2.msra.mxu0 0.0
  %2790 = vmatprep.subr.mxu0 0.0
  %2791 = vmatpush2.msra.mxu0 0.0
  %2792 = vmatprep.subr.mxu0 0.0
  %2793 = vmatpush2.msra.mxu0 0.0
  %2794 = vmatprep.subr.mxu0 0.0
  %2795 = vmatpush2.msra.mxu0 0.0
  %2796 = vmatprep.subr.mxu0 0.0
  %2797 = vmatpush2.msra.mxu0 0.0
  %2798 = vmatprep.subr.mxu0 0.0
  %2799 = vmatpush2.msra.mxu0 0.0
  %2800 = vmatprep.subr.mxu0 0.0
  %2801 = vmatpush2.msra.mxu0 0.0
  %2802 = vmatprep.subr.mxu0 0.0
  %2803 = vmatpush2.msra.mxu0 0.0
  %2804 = vmatprep.subr.mxu0 0.0
  %2805 = vmatpush2.msra.mxu0 0.0
  %2806 = vmatprep.subr.mxu0 0.0
  %2807 = vmatpush2.msra.mxu0 0.0
  %2808 = vmatprep.subr.mxu0 0.0
  %2809 = vmatpush2.msra.mxu0 0.0
  %2810 = vmatprep.subr.mxu0 0.0
  %2811 = vmatpush2.msra.mxu0 0.0
  %2812 = vmatprep.subr.mxu0 0.0
  %2813 = vmatpush2.msra.mxu0 0.0
  %2814 = vmatprep.subr.mxu0 0.0
  %2815 = vmatpush2.msra.mxu0 0.0
  %2816 = vmatprep.subr.mxu0 0.0
  %2817 = vmatpush2.msra.mxu0 0.0
  %2818 = vmatprep.subr.mxu0 0.0
  %2819 = vmatpush2.msra.mxu0 0.0
  %2820 = vmatprep.mubr.f32.mxu0 0.0
  %2821 = vmatmul.mubr.f32.gmra.mxu0 %v2377
  %v2822 = vpop.f32.mrf.mxu0
  %v2823 = vadd.f32 0.0, %v2822
  %v2824 = vpop.f32.mrf.mxu0
  %2825 = vdwg.mxu0
  %v2826 = vadd.f32 %v208, %v2752
  %v2827 = vxor.u32 %v2826, 2147483648
  %v2828 = vmul.f32 %v2827, 1.442695
  %v2829 = vpow.pop %v2828
  %v2830 = vadd.f32 %v2829, 1.0
  %v2831 = vrcp.pop %v2830
  %v2832 = vmul.f32 1.0, %v2831
  %v2833 = vadd.f32 %v210, %v2754
  %v2834 = vxor.u32 %v2833, 2147483648
  %v2835 = vmul.f32 %v2834, 1.442695
  %v2836 = vpow.pop %v2835
  %v2837 = vadd.f32 %v2836, 1.0
  %v2838 = vrcp.pop %v2837
  %v2839 = vmul.f32 1.0, %v2838
  %v2840 = vadd.f32 %v2823, %v57
  %v2841 = vmul.f32 %v2832, %v2840
  %v2842 = vadd.f32 %v316, %v2841
  %v2843 = vtanh.pop %v2842
  %v2844 = vsub.f32 %v2375, %v2843
  %v2845 = vmul.f32 %v2839, %v2844
  %v2846 = vadd.f32 %v2843, %v2845
  %v2848 = vsel %vm329, %v2846, 0
  %2850 = vmatprep.subr.mxu0 0.0
  %2851 = vmatpush1.msra.mxu0 0.0
  %2852 = vmatprep.subr.mxu0 0.0
  %2853 = vmatpush1.msra.mxu0 0.0
  %2854 = vmatprep.subr.mxu0 0.0
  %2855 = vmatpush1.msra.mxu0 0.0
  %2856 = vmatprep.subr.mxu0 0.0
  %2857 = vmatpush1.msra.mxu0 0.0
  %2858 = vmatprep.subr.mxu0 0.0
  %2859 = vmatpush1.msra.mxu0 0.0
  %2860 = vmatprep.subr.mxu0 0.0
  %2861 = vmatpush1.msra.mxu0 0.0
  %2862 = vmatprep.subr.mxu0 0.0
  %2863 = vmatpush1.msra.mxu0 0.0
  %2864 = vmatprep.subr.mxu0 0.0
  %2865 = vmatpush1.msra.mxu0 0.0
  %2866 = vmatprep.subr.mxu0 0.0
  %2867 = vmatpush1.msra.mxu0 0.0
  %2868 = vmatprep.subr.mxu0 0.0
  %2869 = vmatpush1.msra.mxu0 0.0
  %2870 = vmatprep.subr.mxu0 0.0
  %2871 = vmatpush1.msra.mxu0 0.0
  %2872 = vmatprep.subr.mxu0 0.0
  %2873 = vmatpush1.msra.mxu0 0.0
  %2874 = vmatprep.subr.mxu0 %v42
  %2875 = vmatpush1.msra.mxu0 %v41
  %2876 = vmatprep.subr.mxu0 %v39
  %2877 = vmatpush1.msra.mxu0 %v38
  %2878 = vmatprep.subr.mxu0 %v36
  %2879 = vmatpush1.msra.mxu0 %v35
  %2880 = vmatprep.subr.mxu0 %v33
  %2881 = vmatpush1.msra.mxu0 %v32
  %2882 = vmatprep.subr.mxu0 0.0
  %2883 = vmatpush2.msra.mxu0 0.0
  %2884 = vmatprep.subr.mxu0 0.0
  %2885 = vmatpush2.msra.mxu0 0.0
  %2886 = vmatprep.subr.mxu0 0.0
  %2887 = vmatpush2.msra.mxu0 0.0
  %2888 = vmatprep.subr.mxu0 0.0
  %2889 = vmatpush2.msra.mxu0 0.0
  %2890 = vmatprep.subr.mxu0 0.0
  %2891 = vmatpush2.msra.mxu0 0.0
  %2892 = vmatprep.subr.mxu0 0.0
  %2893 = vmatpush2.msra.mxu0 0.0
  %2894 = vmatprep.subr.mxu0 0.0
  %2895 = vmatpush2.msra.mxu0 0.0
  %2896 = vmatprep.subr.mxu0 0.0
  %2897 = vmatpush2.msra.mxu0 0.0
  %2898 = vmatprep.subr.mxu0 0.0
  %2899 = vmatpush2.msra.mxu0 0.0
  %2900 = vmatprep.subr.mxu0 0.0
  %2901 = vmatpush2.msra.mxu0 0.0
  %2902 = vmatprep.subr.mxu0 0.0
  %2903 = vmatpush2.msra.mxu0 0.0
  %2904 = vmatprep.subr.mxu0 0.0
  %2905 = vmatpush2.msra.mxu0 0.0
  %2906 = vmatprep.subr.mxu0 0.0
  %2907 = vmatpush2.msra.mxu0 0.0
  %2908 = vmatprep.subr.mxu0 0.0
  %2909 = vmatpush2.msra.mxu0 0.0
  %2910 = vmatprep.subr.mxu0 0.0
  %2911 = vmatpush2.msra.mxu0 0.0
  %2912 = vmatprep.subr.mxu0 0.0
  %2913 = vmatpush2.msra.mxu0 0.0
  %2914 = vmatprep.mubr.f32.mxu0 0.0
  %2915 = vmatmul.mubr.f32.gmra.mxu0 %v2848
  %v2916 = vpop.f32.mrf.mxu0
  %v2917 = vadd.f32 %v58, %v2916
  %v2918 = vpop.f32.mrf.mxu0
  %v2919 = vadd.f32 %v59, %v2918
  %2920 = vdwg.mxu0
  %2921 = vmatprep.subr.mxu0 0.0
  %2922 = vmatpush1.msra.mxu0 0.0
  %2923 = vmatprep.subr.mxu0 0.0
  %2924 = vmatpush1.msra.mxu0 0.0
  %2925 = vmatprep.subr.mxu0 0.0
  %2926 = vmatpush1.msra.mxu0 0.0
  %2927 = vmatprep.subr.mxu0 0.0
  %2928 = vmatpush1.msra.mxu0 0.0
  %2929 = vmatprep.subr.mxu0 0.0
  %2930 = vmatpush1.msra.mxu0 0.0
  %2931 = vmatprep.subr.mxu0 0.0
  %2932 = vmatpush1.msra.mxu0 0.0
  %2933 = vmatprep.subr.mxu0 0.0
  %2934 = vmatpush1.msra.mxu0 0.0
  %2935 = vmatprep.subr.mxu0 0.0
  %2936 = vmatpush1.msra.mxu0 0.0
  %2937 = vmatprep.subr.mxu0 0.0
  %2938 = vmatpush1.msra.mxu0 0.0
  %2939 = vmatprep.subr.mxu0 0.0
  %2940 = vmatpush1.msra.mxu0 0.0
  %2941 = vmatprep.subr.mxu0 0.0
  %2942 = vmatpush1.msra.mxu0 0.0
  %2943 = vmatprep.subr.mxu0 0.0
  %2944 = vmatpush1.msra.mxu0 0.0
  %2945 = vmatprep.subr.mxu0 0.0
  %2946 = vmatpush1.msra.mxu0 %v43
  %2947 = vmatprep.subr.mxu0 0.0
  %2948 = vmatpush1.msra.mxu0 %v40
  %2949 = vmatprep.subr.mxu0 0.0
  %2950 = vmatpush1.msra.mxu0 %v37
  %2951 = vmatprep.subr.mxu0 0.0
  %2952 = vmatpush1.msra.mxu0 %v34
  %2953 = vmatprep.subr.mxu0 0.0
  %2954 = vmatpush2.msra.mxu0 0.0
  %2955 = vmatprep.subr.mxu0 0.0
  %2956 = vmatpush2.msra.mxu0 0.0
  %2957 = vmatprep.subr.mxu0 0.0
  %2958 = vmatpush2.msra.mxu0 0.0
  %2959 = vmatprep.subr.mxu0 0.0
  %2960 = vmatpush2.msra.mxu0 0.0
  %2961 = vmatprep.subr.mxu0 0.0
  %2962 = vmatpush2.msra.mxu0 0.0
  %2963 = vmatprep.subr.mxu0 0.0
  %2964 = vmatpush2.msra.mxu0 0.0
  %2965 = vmatprep.subr.mxu0 0.0
  %2966 = vmatpush2.msra.mxu0 0.0
  %2967 = vmatprep.subr.mxu0 0.0
  %2968 = vmatpush2.msra.mxu0 0.0
  %2969 = vmatprep.subr.mxu0 0.0
  %2970 = vmatpush2.msra.mxu0 0.0
  %2971 = vmatprep.subr.mxu0 0.0
  %2972 = vmatpush2.msra.mxu0 0.0
  %2973 = vmatprep.subr.mxu0 0.0
  %2974 = vmatpush2.msra.mxu0 0.0
  %2975 = vmatprep.subr.mxu0 0.0
  %2976 = vmatpush2.msra.mxu0 0.0
  %2977 = vmatprep.subr.mxu0 0.0
  %2978 = vmatpush2.msra.mxu0 0.0
  %2979 = vmatprep.subr.mxu0 0.0
  %2980 = vmatpush2.msra.mxu0 0.0
  %2981 = vmatprep.subr.mxu0 0.0
  %2982 = vmatpush2.msra.mxu0 0.0
  %2983 = vmatprep.subr.mxu0 0.0
  %2984 = vmatpush2.msra.mxu0 0.0
  %2985 = vmatprep.mubr.f32.mxu0 0.0
  %2986 = vmatmul.mubr.f32.gmra.mxu0 %v2848
  %v2987 = vpop.f32.mrf.mxu0
  %v2988 = vadd.f32 %v60, %v2987
  %v2989 = vpop.f32.mrf.mxu0
  %2990 = vdwg.mxu0
  %v2992 = vsel %vm329, %v2684, 0
  %2994 = vmatprep.subr.mxu0 0.0
  %2995 = vmatpush1.msra.mxu0 0.0
  %2996 = vmatprep.subr.mxu0 0.0
  %2997 = vmatpush1.msra.mxu0 0.0
  %2998 = vmatprep.subr.mxu0 0.0
  %2999 = vmatpush1.msra.mxu0 0.0
  %3000 = vmatprep.subr.mxu0 0.0
  %3001 = vmatpush1.msra.mxu0 0.0
  %3002 = vmatprep.subr.mxu0 0.0
  %3003 = vmatpush1.msra.mxu0 0.0
  %3004 = vmatprep.subr.mxu0 0.0
  %3005 = vmatpush1.msra.mxu0 0.0
  %3006 = vmatprep.subr.mxu0 0.0
  %3007 = vmatpush1.msra.mxu0 0.0
  %3008 = vmatprep.subr.mxu0 0.0
  %3009 = vmatpush1.msra.mxu0 0.0
  %3010 = vmatprep.subr.mxu0 0.0
  %3011 = vmatpush1.msra.mxu0 0.0
  %3012 = vmatprep.subr.mxu0 0.0
  %3013 = vmatpush1.msra.mxu0 0.0
  %3014 = vmatprep.subr.mxu0 0.0
  %3015 = vmatpush1.msra.mxu0 0.0
  %3016 = vmatprep.subr.mxu0 0.0
  %3017 = vmatpush1.msra.mxu0 0.0
  %3018 = vmatprep.subr.mxu0 %v54
  %3019 = vmatpush1.msra.mxu0 %v53
  %3020 = vmatprep.subr.mxu0 %v51
  %3021 = vmatpush1.msra.mxu0 %v50
  %3022 = vmatprep.subr.mxu0 %v48
  %3023 = vmatpush1.msra.mxu0 %v47
  %3024 = vmatprep.subr.mxu0 %v45
  %3025 = vmatpush1.msra.mxu0 %v44
  %3026 = vmatprep.subr.mxu0 0.0
  %3027 = vmatpush2.msra.mxu0 0.0
  %3028 = vmatprep.subr.mxu0 0.0
  %3029 = vmatpush2.msra.mxu0 0.0
  %3030 = vmatprep.subr.mxu0 0.0
  %3031 = vmatpush2.msra.mxu0 0.0
  %3032 = vmatprep.subr.mxu0 0.0
  %3033 = vmatpush2.msra.mxu0 0.0
  %3034 = vmatprep.subr.mxu0 0.0
  %3035 = vmatpush2.msra.mxu0 0.0
  %3036 = vmatprep.subr.mxu0 0.0
  %3037 = vmatpush2.msra.mxu0 0.0
  %3038 = vmatprep.subr.mxu0 0.0
  %3039 = vmatpush2.msra.mxu0 0.0
  %3040 = vmatprep.subr.mxu0 0.0
  %3041 = vmatpush2.msra.mxu0 0.0
  %3042 = vmatprep.subr.mxu0 0.0
  %3043 = vmatpush2.msra.mxu0 0.0
  %3044 = vmatprep.subr.mxu0 0.0
  %3045 = vmatpush2.msra.mxu0 0.0
  %3046 = vmatprep.subr.mxu0 0.0
  %3047 = vmatpush2.msra.mxu0 0.0
  %3048 = vmatprep.subr.mxu0 0.0
  %3049 = vmatpush2.msra.mxu0 0.0
  %3050 = vmatprep.subr.mxu0 0.0
  %3051 = vmatpush2.msra.mxu0 0.0
  %3052 = vmatprep.subr.mxu0 0.0
  %3053 = vmatpush2.msra.mxu0 0.0
  %3054 = vmatprep.subr.mxu0 0.0
  %3055 = vmatpush2.msra.mxu0 0.0
  %3056 = vmatprep.subr.mxu0 0.0
  %3057 = vmatpush2.msra.mxu0 0.0
  %3058 = vmatprep.mubr.f32.mxu0 0.0
  %3059 = vmatmul.mubr.f32.gmra.mxu0 %v2992
  %v3060 = vpop.f32.mrf.mxu0
  %v3061 = vadd.f32 0.0, %v3060
  %v3062 = vpop.f32.mrf.mxu0
  %v3063 = vadd.f32 0.0, %v3062
  %3064 = vdwg.mxu0
  %3065 = vmatprep.subr.mxu0 0.0
  %3066 = vmatpush1.msra.mxu0 0.0
  %3067 = vmatprep.subr.mxu0 0.0
  %3068 = vmatpush1.msra.mxu0 0.0
  %3069 = vmatprep.subr.mxu0 0.0
  %3070 = vmatpush1.msra.mxu0 0.0
  %3071 = vmatprep.subr.mxu0 0.0
  %3072 = vmatpush1.msra.mxu0 0.0
  %3073 = vmatprep.subr.mxu0 0.0
  %3074 = vmatpush1.msra.mxu0 0.0
  %3075 = vmatprep.subr.mxu0 0.0
  %3076 = vmatpush1.msra.mxu0 0.0
  %3077 = vmatprep.subr.mxu0 0.0
  %3078 = vmatpush1.msra.mxu0 0.0
  %3079 = vmatprep.subr.mxu0 0.0
  %3080 = vmatpush1.msra.mxu0 0.0
  %3081 = vmatprep.subr.mxu0 0.0
  %3082 = vmatpush1.msra.mxu0 0.0
  %3083 = vmatprep.subr.mxu0 0.0
  %3084 = vmatpush1.msra.mxu0 0.0
  %3085 = vmatprep.subr.mxu0 0.0
  %3086 = vmatpush1.msra.mxu0 0.0
  %3087 = vmatprep.subr.mxu0 0.0
  %3088 = vmatpush1.msra.mxu0 0.0
  %3089 = vmatprep.subr.mxu0 0.0
  %3090 = vmatpush1.msra.mxu0 %v55
  %3091 = vmatprep.subr.mxu0 0.0
  %3092 = vmatpush1.msra.mxu0 %v52
  %3093 = vmatprep.subr.mxu0 0.0
  %3094 = vmatpush1.msra.mxu0 %v49
  %3095 = vmatprep.subr.mxu0 0.0
  %3096 = vmatpush1.msra.mxu0 %v46
  %3097 = vmatprep.subr.mxu0 0.0
  %3098 = vmatpush2.msra.mxu0 0.0
  %3099 = vmatprep.subr.mxu0 0.0
  %3100 = vmatpush2.msra.mxu0 0.0
  %3101 = vmatprep.subr.mxu0 0.0
  %3102 = vmatpush2.msra.mxu0 0.0
  %3103 = vmatprep.subr.mxu0 0.0
  %3104 = vmatpush2.msra.mxu0 0.0
  %3105 = vmatprep.subr.mxu0 0.0
  %3106 = vmatpush2.msra.mxu0 0.0
  %3107 = vmatprep.subr.mxu0 0.0
  %3108 = vmatpush2.msra.mxu0 0.0
  %3109 = vmatprep.subr.mxu0 0.0
  %3110 = vmatpush2.msra.mxu0 0.0
  %3111 = vmatprep.subr.mxu0 0.0
  %3112 = vmatpush2.msra.mxu0 0.0
  %3113 = vmatprep.subr.mxu0 0.0
  %3114 = vmatpush2.msra.mxu0 0.0
  %3115 = vmatprep.subr.mxu0 0.0
  %3116 = vmatpush2.msra.mxu0 0.0
  %3117 = vmatprep.subr.mxu0 0.0
  %3118 = vmatpush2.msra.mxu0 0.0
  %3119 = vmatprep.subr.mxu0 0.0
  %3120 = vmatpush2.msra.mxu0 0.0
  %3121 = vmatprep.subr.mxu0 0.0
  %3122 = vmatpush2.msra.mxu0 0.0
  %3123 = vmatprep.subr.mxu0 0.0
  %3124 = vmatpush2.msra.mxu0 0.0
  %3125 = vmatprep.subr.mxu0 0.0
  %3126 = vmatpush2.msra.mxu0 0.0
  %3127 = vmatprep.subr.mxu0 0.0
  %3128 = vmatpush2.msra.mxu0 0.0
  %3129 = vmatprep.mubr.f32.mxu0 0.0
  %3130 = vmatmul.mubr.f32.gmra.mxu0 %v2992
  %v3131 = vpop.f32.mrf.mxu0
  %v3132 = vadd.f32 0.0, %v3131
  %v3133 = vpop.f32.mrf.mxu0
  %3134 = vdwg.mxu0
  %v3135 = vadd.f32 %v2917, %v3061
  %v3136 = vxor.u32 %v3135, 2147483648
  %v3137 = vmul.f32 %v3136, 1.442695
  %v3138 = vpow.pop %v3137
  %v3139 = vadd.f32 %v3138, 1.0
  %v3140 = vrcp.pop %v3139
  %v3141 = vmul.f32 1.0, %v3140
  %v3142 = vadd.f32 %v2919, %v3063
  %v3143 = vxor.u32 %v3142, 2147483648
  %v3144 = vmul.f32 %v3143, 1.442695
  %v3145 = vpow.pop %v3144
  %v3146 = vadd.f32 %v3145, 1.0
  %v3147 = vrcp.pop %v3146
  %v3148 = vmul.f32 1.0, %v3147
  %v3149 = vadd.f32 %v3132, %v61
  %v3150 = vmul.f32 %v3141, %v3149
  %v3151 = vadd.f32 %v2988, %v3150
  %v3152 = vtanh.pop %v3151
  %v3153 = vsub.f32 %v2684, %v3152
  %v3154 = vmul.f32 %v3148, %v3153
  %v3155 = vadd.f32 %v3152, %v3154
  %3156 = vmatprep.subr.mxu0 0.0
  %3157 = vmatpush1.msra.mxu0 0.0
  %3158 = vmatprep.subr.mxu0 0.0
  %3159 = vmatpush1.msra.mxu0 0.0
  %3160 = vmatprep.subr.mxu0 0.0
  %3161 = vmatpush1.msra.mxu0 0.0
  %3162 = vmatprep.subr.mxu0 0.0
  %3163 = vmatpush1.msra.mxu0 0.0
  %3164 = vmatprep.subr.mxu0 0.0
  %3165 = vmatpush1.msra.mxu0 0.0
  %3166 = vmatprep.subr.mxu0 0.0
  %3167 = vmatpush1.msra.mxu0 0.0
  %3168 = vmatprep.subr.mxu0 0.0
  %3169 = vmatpush1.msra.mxu0 0.0
  %3170 = vmatprep.subr.mxu0 0.0
  %3171 = vmatpush1.msra.mxu0 0.0
  %3172 = vmatprep.subr.mxu0 0.0
  %3173 = vmatpush1.msra.mxu0 0.0
  %3174 = vmatprep.subr.mxu0 0.0
  %3175 = vmatpush1.msra.mxu0 0.0
  %3176 = vmatprep.subr.mxu0 0.0
  %3177 = vmatpush1.msra.mxu0 0.0
  %3178 = vmatprep.subr.mxu0 0.0
  %3179 = vmatpush1.msra.mxu0 0.0
  %3180 = vmatprep.subr.mxu0 %v30
  %3181 = vmatpush1.msra.mxu0 %v29
  %3182 = vmatprep.subr.mxu0 %v27
  %3183 = vmatpush1.msra.mxu0 %v26
  %3184 = vmatprep.subr.mxu0 %v24
  %3185 = vmatpush1.msra.mxu0 %v23
  %3186 = vmatprep.subr.mxu0 %v21
  %3187 = vmatpush1.msra.mxu0 %v20
  %3188 = vmatprep.subr.mxu0 0.0
  %3189 = vmatpush2.msra.mxu0 0.0
  %3190 = vmatprep.subr.mxu0 0.0
  %3191 = vmatpush2.msra.mxu0 0.0
  %3192 = vmatprep.subr.mxu0 0.0
  %3193 = vmatpush2.msra.mxu0 0.0
  %3194 = vmatprep.subr.mxu0 0.0
  %3195 = vmatpush2.msra.mxu0 0.0
  %3196 = vmatprep.subr.mxu0 0.0
  %3197 = vmatpush2.msra.mxu0 0.0
  %3198 = vmatprep.subr.mxu0 0.0
  %3199 = vmatpush2.msra.mxu0 0.0
  %3200 = vmatprep.subr.mxu0 0.0
  %3201 = vmatpush2.msra.mxu0 0.0
  %3202 = vmatprep.subr.mxu0 0.0
  %3203 = vmatpush2.msra.mxu0 0.0
  %3204 = vmatprep.subr.mxu0 0.0
  %3205 = vmatpush2.msra.mxu0 0.0
  %3206 = vmatprep.subr.mxu0 0.0
  %3207 = vmatpush2.msra.mxu0 0.0
  %3208 = vmatprep.subr.mxu0 0.0
  %3209 = vmatpush2.msra.mxu0 0.0
  %3210 = vmatprep.subr.mxu0 0.0
  %3211 = vmatpush2.msra.mxu0 0.0
  %3212 = vmatprep.subr.mxu0 0.0
  %3213 = vmatpush2.msra.mxu0 0.0
  %3214 = vmatprep.subr.mxu0 0.0
  %3215 = vmatpush2.msra.mxu0 0.0
  %3216 = vmatprep.subr.mxu0 0.0
  %3217 = vmatpush2.msra.mxu0 0.0
  %3218 = vmatprep.subr.mxu0 0.0
  %3219 = vmatpush2.msra.mxu0 0.0
  %3220 = vmatprep.mubr.f32.mxu0 0.0
  %3221 = vmatmul.mubr.f32.gmra.mxu0 %v2848
  %v3222 = vpop.f32.mrf.mxu0
  %v3223 = vadd.f32 0.0, %v3222
  %v3224 = vpop.f32.mrf.mxu0
  %v3225 = vadd.f32 0.0, %v3224
  %3226 = vdwg.mxu0
  %3227 = vmatprep.subr.mxu0 0.0
  %3228 = vmatpush1.msra.mxu0 0.0
  %3229 = vmatprep.subr.mxu0 0.0
  %3230 = vmatpush1.msra.mxu0 0.0
  %3231 = vmatprep.subr.mxu0 0.0
  %3232 = vmatpush1.msra.mxu0 0.0
  %3233 = vmatprep.subr.mxu0 0.0
  %3234 = vmatpush1.msra.mxu0 0.0
  %3235 = vmatprep.subr.mxu0 0.0
  %3236 = vmatpush1.msra.mxu0 0.0
  %3237 = vmatprep.subr.mxu0 0.0
  %3238 = vmatpush1.msra.mxu0 0.0
  %3239 = vmatprep.subr.mxu0 0.0
  %3240 = vmatpush1.msra.mxu0 0.0
  %3241 = vmatprep.subr.mxu0 0.0
  %3242 = vmatpush1.msra.mxu0 0.0
  %3243 = vmatprep.subr.mxu0 0.0
  %3244 = vmatpush1.msra.mxu0 0.0
  %3245 = vmatprep.subr.mxu0 0.0
  %3246 = vmatpush1.msra.mxu0 0.0
  %3247 = vmatprep.subr.mxu0 0.0
  %3248 = vmatpush1.msra.mxu0 0.0
  %3249 = vmatprep.subr.mxu0 0.0
  %3250 = vmatpush1.msra.mxu0 0.0
  %3251 = vmatprep.subr.mxu0 0.0
  %3252 = vmatpush1.msra.mxu0 %v31
  %3253 = vmatprep.subr.mxu0 0.0
  %3254 = vmatpush1.msra.mxu0 %v28
  %3255 = vmatprep.subr.mxu0 0.0
  %3256 = vmatpush1.msra.mxu0 %v25
  %3257 = vmatprep.subr.mxu0 0.0
  %3258 = vmatpush1.msra.mxu0 %v22
  %3259 = vmatprep.subr.mxu0 0.0
  %3260 = vmatpush2.msra.mxu0 0.0
  %3261 = vmatprep.subr.mxu0 0.0
  %3262 = vmatpush2.msra.mxu0 0.0
  %3263 = vmatprep.subr.mxu0 0.0
  %3264 = vmatpush2.msra.mxu0 0.0
  %3265 = vmatprep.subr.mxu0 0.0
  %3266 = vmatpush2.msra.mxu0 0.0
  %3267 = vmatprep.subr.mxu0 0.0
  %3268 = vmatpush2.msra.mxu0 0.0
  %3269 = vmatprep.subr.mxu0 0.0
  %3270 = vmatpush2.msra.mxu0 0.0
  %3271 = vmatprep.subr.mxu0 0.0
  %3272 = vmatpush2.msra.mxu0 0.0
  %3273 = vmatprep.subr.mxu0 0.0
  %3274 = vmatpush2.msra.mxu0 0.0
  %3275 = vmatprep.subr.mxu0 0.0
  %3276 = vmatpush2.msra.mxu0 0.0
  %3277 = vmatprep.subr.mxu0 0.0
  %3278 = vmatpush2.msra.mxu0 0.0
  %3279 = vmatprep.subr.mxu0 0.0
  %3280 = vmatpush2.msra.mxu0 0.0
  %3281 = vmatprep.subr.mxu0 0.0
  %3282 = vmatpush2.msra.mxu0 0.0
  %3283 = vmatprep.subr.mxu0 0.0
  %3284 = vmatpush2.msra.mxu0 0.0
  %3285 = vmatprep.subr.mxu0 0.0
  %3286 = vmatpush2.msra.mxu0 0.0
  %3287 = vmatprep.subr.mxu0 0.0
  %3288 = vmatpush2.msra.mxu0 0.0
  %3289 = vmatprep.subr.mxu0 0.0
  %3290 = vmatpush2.msra.mxu0 0.0
  %3291 = vmatprep.mubr.f32.mxu0 0.0
  %3292 = vmatmul.mubr.f32.gmra.mxu0 %v2848
  %v3293 = vpop.f32.mrf.mxu0
  %v3294 = vadd.f32 0.0, %v3293
  %v3295 = vpop.f32.mrf.mxu0
  %3296 = vdwg.mxu0
  %v3297 = vadd.f32 %v214, %v3223
  %v3298 = vxor.u32 %v3297, 2147483648
  %v3299 = vmul.f32 %v3298, 1.442695
  %v3300 = vpow.pop %v3299
  %v3301 = vadd.f32 %v3300, 1.0
  %v3302 = vrcp.pop %v3301
  %v3303 = vmul.f32 1.0, %v3302
  %v3304 = vadd.f32 %v216, %v3225
  %v3305 = vxor.u32 %v3304, 2147483648
  %v3306 = vmul.f32 %v3305, 1.442695
  %v3307 = vpow.pop %v3306
  %v3308 = vadd.f32 %v3307, 1.0
  %v3309 = vrcp.pop %v3308
  %v3310 = vmul.f32 1.0, %v3309
  %v3311 = vadd.f32 %v3294, %v57
  %v3312 = vmul.f32 %v3303, %v3311
  %v3313 = vadd.f32 %v321, %v3312
  %v3314 = vtanh.pop %v3313
  %v3315 = vsub.f32 %v2846, %v3314
  %v3316 = vmul.f32 %v3310, %v3315
  %v3317 = vadd.f32 %v3314, %v3316
  %v3319 = vsel %vm329, %v3317, 0
  %3321 = vmatprep.subr.mxu0 0.0
  %3322 = vmatpush1.msra.mxu0 0.0
  %3323 = vmatprep.subr.mxu0 0.0
  %3324 = vmatpush1.msra.mxu0 0.0
  %3325 = vmatprep.subr.mxu0 0.0
  %3326 = vmatpush1.msra.mxu0 0.0
  %3327 = vmatprep.subr.mxu0 0.0
  %3328 = vmatpush1.msra.mxu0 0.0
  %3329 = vmatprep.subr.mxu0 0.0
  %3330 = vmatpush1.msra.mxu0 0.0
  %3331 = vmatprep.subr.mxu0 0.0
  %3332 = vmatpush1.msra.mxu0 0.0
  %3333 = vmatprep.subr.mxu0 0.0
  %3334 = vmatpush1.msra.mxu0 0.0
  %3335 = vmatprep.subr.mxu0 0.0
  %3336 = vmatpush1.msra.mxu0 0.0
  %3337 = vmatprep.subr.mxu0 0.0
  %3338 = vmatpush1.msra.mxu0 0.0
  %3339 = vmatprep.subr.mxu0 0.0
  %3340 = vmatpush1.msra.mxu0 0.0
  %3341 = vmatprep.subr.mxu0 0.0
  %3342 = vmatpush1.msra.mxu0 0.0
  %3343 = vmatprep.subr.mxu0 0.0
  %3344 = vmatpush1.msra.mxu0 0.0
  %3345 = vmatprep.subr.mxu0 %v42
  %3346 = vmatpush1.msra.mxu0 %v41
  %3347 = vmatprep.subr.mxu0 %v39
  %3348 = vmatpush1.msra.mxu0 %v38
  %3349 = vmatprep.subr.mxu0 %v36
  %3350 = vmatpush1.msra.mxu0 %v35
  %3351 = vmatprep.subr.mxu0 %v33
  %3352 = vmatpush1.msra.mxu0 %v32
  %3353 = vmatprep.subr.mxu0 0.0
  %3354 = vmatpush2.msra.mxu0 0.0
  %3355 = vmatprep.subr.mxu0 0.0
  %3356 = vmatpush2.msra.mxu0 0.0
  %3357 = vmatprep.subr.mxu0 0.0
  %3358 = vmatpush2.msra.mxu0 0.0
  %3359 = vmatprep.subr.mxu0 0.0
  %3360 = vmatpush2.msra.mxu0 0.0
  %3361 = vmatprep.subr.mxu0 0.0
  %3362 = vmatpush2.msra.mxu0 0.0
  %3363 = vmatprep.subr.mxu0 0.0
  %3364 = vmatpush2.msra.mxu0 0.0
  %3365 = vmatprep.subr.mxu0 0.0
  %3366 = vmatpush2.msra.mxu0 0.0
  %3367 = vmatprep.subr.mxu0 0.0
  %3368 = vmatpush2.msra.mxu0 0.0
  %3369 = vmatprep.subr.mxu0 0.0
  %3370 = vmatpush2.msra.mxu0 0.0
  %3371 = vmatprep.subr.mxu0 0.0
  %3372 = vmatpush2.msra.mxu0 0.0
  %3373 = vmatprep.subr.mxu0 0.0
  %3374 = vmatpush2.msra.mxu0 0.0
  %3375 = vmatprep.subr.mxu0 0.0
  %3376 = vmatpush2.msra.mxu0 0.0
  %3377 = vmatprep.subr.mxu0 0.0
  %3378 = vmatpush2.msra.mxu0 0.0
  %3379 = vmatprep.subr.mxu0 0.0
  %3380 = vmatpush2.msra.mxu0 0.0
  %3381 = vmatprep.subr.mxu0 0.0
  %3382 = vmatpush2.msra.mxu0 0.0
  %3383 = vmatprep.subr.mxu0 0.0
  %3384 = vmatpush2.msra.mxu0 0.0
  %3385 = vmatprep.mubr.f32.mxu0 0.0
  %3386 = vmatmul.mubr.f32.gmra.mxu0 %v3319
  %v3387 = vpop.f32.mrf.mxu0
  %v3388 = vadd.f32 %v58, %v3387
  %v3389 = vpop.f32.mrf.mxu0
  %v3390 = vadd.f32 %v59, %v3389
  %3391 = vdwg.mxu0
  %3392 = vmatprep.subr.mxu0 0.0
  %3393 = vmatpush1.msra.mxu0 0.0
  %3394 = vmatprep.subr.mxu0 0.0
  %3395 = vmatpush1.msra.mxu0 0.0
  %3396 = vmatprep.subr.mxu0 0.0
  %3397 = vmatpush1.msra.mxu0 0.0
  %3398 = vmatprep.subr.mxu0 0.0
  %3399 = vmatpush1.msra.mxu0 0.0
  %3400 = vmatprep.subr.mxu0 0.0
  %3401 = vmatpush1.msra.mxu0 0.0
  %3402 = vmatprep.subr.mxu0 0.0
  %3403 = vmatpush1.msra.mxu0 0.0
  %3404 = vmatprep.subr.mxu0 0.0
  %3405 = vmatpush1.msra.mxu0 0.0
  %3406 = vmatprep.subr.mxu0 0.0
  %3407 = vmatpush1.msra.mxu0 0.0
  %3408 = vmatprep.subr.mxu0 0.0
  %3409 = vmatpush1.msra.mxu0 0.0
  %3410 = vmatprep.subr.mxu0 0.0
  %3411 = vmatpush1.msra.mxu0 0.0
  %3412 = vmatprep.subr.mxu0 0.0
  %3413 = vmatpush1.msra.mxu0 0.0
  %3414 = vmatprep.subr.mxu0 0.0
  %3415 = vmatpush1.msra.mxu0 0.0
  %3416 = vmatprep.subr.mxu0 0.0
  %3417 = vmatpush1.msra.mxu0 %v43
  %3418 = vmatprep.subr.mxu0 0.0
  %3419 = vmatpush1.msra.mxu0 %v40
  %3420 = vmatprep.subr.mxu0 0.0
  %3421 = vmatpush1.msra.mxu0 %v37
  %3422 = vmatprep.subr.mxu0 0.0
  %3423 = vmatpush1.msra.mxu0 %v34
  %3424 = vmatprep.subr.mxu0 0.0
  %3425 = vmatpush2.msra.mxu0 0.0
  %3426 = vmatprep.subr.mxu0 0.0
  %3427 = vmatpush2.msra.mxu0 0.0
  %3428 = vmatprep.subr.mxu0 0.0
  %3429 = vmatpush2.msra.mxu0 0.0
  %3430 = vmatprep.subr.mxu0 0.0
  %3431 = vmatpush2.msra.mxu0 0.0
  %3432 = vmatprep.subr.mxu0 0.0
  %3433 = vmatpush2.msra.mxu0 0.0
  %3434 = vmatprep.subr.mxu0 0.0
  %3435 = vmatpush2.msra.mxu0 0.0
  %3436 = vmatprep.subr.mxu0 0.0
  %3437 = vmatpush2.msra.mxu0 0.0
  %3438 = vmatprep.subr.mxu0 0.0
  %3439 = vmatpush2.msra.mxu0 0.0
  %3440 = vmatprep.subr.mxu0 0.0
  %3441 = vmatpush2.msra.mxu0 0.0
  %3442 = vmatprep.subr.mxu0 0.0
  %3443 = vmatpush2.msra.mxu0 0.0
  %3444 = vmatprep.subr.mxu0 0.0
  %3445 = vmatpush2.msra.mxu0 0.0
  %3446 = vmatprep.subr.mxu0 0.0
  %3447 = vmatpush2.msra.mxu0 0.0
  %3448 = vmatprep.subr.mxu0 0.0
  %3449 = vmatpush2.msra.mxu0 0.0
  %3450 = vmatprep.subr.mxu0 0.0
  %3451 = vmatpush2.msra.mxu0 0.0
  %3452 = vmatprep.subr.mxu0 0.0
  %3453 = vmatpush2.msra.mxu0 0.0
  %3454 = vmatprep.subr.mxu0 0.0
  %3455 = vmatpush2.msra.mxu0 0.0
  %3456 = vmatprep.mubr.f32.mxu0 0.0
  %3457 = vmatmul.mubr.f32.gmra.mxu0 %v3319
  %v3458 = vpop.f32.mrf.mxu0
  %v3459 = vadd.f32 %v60, %v3458
  %v3460 = vpop.f32.mrf.mxu0
  %3461 = vdwg.mxu0
  %v3463 = vsel %vm329, %v3155, 0
  %3465 = vmatprep.subr.mxu0 0.0
  %3466 = vmatpush1.msra.mxu0 0.0
  %3467 = vmatprep.subr.mxu0 0.0
  %3468 = vmatpush1.msra.mxu0 0.0
  %3469 = vmatprep.subr.mxu0 0.0
  %3470 = vmatpush1.msra.mxu0 0.0
  %3471 = vmatprep.subr.mxu0 0.0
  %3472 = vmatpush1.msra.mxu0 0.0
  %3473 = vmatprep.subr.mxu0 0.0
  %3474 = vmatpush1.msra.mxu0 0.0
  %3475 = vmatprep.subr.mxu0 0.0
  %3476 = vmatpush1.msra.mxu0 0.0
  %3477 = vmatprep.subr.mxu0 0.0
  %3478 = vmatpush1.msra.mxu0 0.0
  %3479 = vmatprep.subr.mxu0 0.0
  %3480 = vmatpush1.msra.mxu0 0.0
  %3481 = vmatprep.subr.mxu0 0.0
  %3482 = vmatpush1.msra.mxu0 0.0
  %3483 = vmatprep.subr.mxu0 0.0
  %3484 = vmatpush1.msra.mxu0 0.0
  %3485 = vmatprep.subr.mxu0 0.0
  %3486 = vmatpush1.msra.mxu0 0.0
  %3487 = vmatprep.subr.mxu0 0.0
  %3488 = vmatpush1.msra.mxu0 0.0
  %3489 = vmatprep.subr.mxu0 %v54
  %3490 = vmatpush1.msra.mxu0 %v53
  %3491 = vmatprep.subr.mxu0 %v51
  %3492 = vmatpush1.msra.mxu0 %v50
  %3493 = vmatprep.subr.mxu0 %v48
  %3494 = vmatpush1.msra.mxu0 %v47
  %3495 = vmatprep.subr.mxu0 %v45
  %3496 = vmatpush1.msra.mxu0 %v44
  %3497 = vmatprep.subr.mxu0 0.0
  %3498 = vmatpush2.msra.mxu0 0.0
  %3499 = vmatprep.subr.mxu0 0.0
  %3500 = vmatpush2.msra.mxu0 0.0
  %3501 = vmatprep.subr.mxu0 0.0
  %3502 = vmatpush2.msra.mxu0 0.0
  %3503 = vmatprep.subr.mxu0 0.0
  %3504 = vmatpush2.msra.mxu0 0.0
  %3505 = vmatprep.subr.mxu0 0.0
  %3506 = vmatpush2.msra.mxu0 0.0
  %3507 = vmatprep.subr.mxu0 0.0
  %3508 = vmatpush2.msra.mxu0 0.0
  %3509 = vmatprep.subr.mxu0 0.0
  %3510 = vmatpush2.msra.mxu0 0.0
  %3511 = vmatprep.subr.mxu0 0.0
  %3512 = vmatpush2.msra.mxu0 0.0
  %3513 = vmatprep.subr.mxu0 0.0
  %3514 = vmatpush2.msra.mxu0 0.0
  %3515 = vmatprep.subr.mxu0 0.0
  %3516 = vmatpush2.msra.mxu0 0.0
  %3517 = vmatprep.subr.mxu0 0.0
  %3518 = vmatpush2.msra.mxu0 0.0
  %3519 = vmatprep.subr.mxu0 0.0
  %3520 = vmatpush2.msra.mxu0 0.0
  %3521 = vmatprep.subr.mxu0 0.0
  %3522 = vmatpush2.msra.mxu0 0.0
  %3523 = vmatprep.subr.mxu0 0.0
  %3524 = vmatpush2.msra.mxu0 0.0
  %3525 = vmatprep.subr.mxu0 0.0
  %3526 = vmatpush2.msra.mxu0 0.0
  %3527 = vmatprep.subr.mxu0 0.0
  %3528 = vmatpush2.msra.mxu0 0.0
  %3529 = vmatprep.mubr.f32.mxu0 0.0
  %3530 = vmatmul.mubr.f32.gmra.mxu0 %v3463
  %v3531 = vpop.f32.mrf.mxu0
  %v3532 = vadd.f32 0.0, %v3531
  %v3533 = vpop.f32.mrf.mxu0
  %v3534 = vadd.f32 0.0, %v3533
  %3535 = vdwg.mxu0
  %3536 = vmatprep.subr.mxu0 0.0
  %3537 = vmatpush1.msra.mxu0 0.0
  %3538 = vmatprep.subr.mxu0 0.0
  %3539 = vmatpush1.msra.mxu0 0.0
  %3540 = vmatprep.subr.mxu0 0.0
  %3541 = vmatpush1.msra.mxu0 0.0
  %3542 = vmatprep.subr.mxu0 0.0
  %3543 = vmatpush1.msra.mxu0 0.0
  %3544 = vmatprep.subr.mxu0 0.0
  %3545 = vmatpush1.msra.mxu0 0.0
  %3546 = vmatprep.subr.mxu0 0.0
  %3547 = vmatpush1.msra.mxu0 0.0
  %3548 = vmatprep.subr.mxu0 0.0
  %3549 = vmatpush1.msra.mxu0 0.0
  %3550 = vmatprep.subr.mxu0 0.0
  %3551 = vmatpush1.msra.mxu0 0.0
  %3552 = vmatprep.subr.mxu0 0.0
  %3553 = vmatpush1.msra.mxu0 0.0
  %3554 = vmatprep.subr.mxu0 0.0
  %3555 = vmatpush1.msra.mxu0 0.0
  %3556 = vmatprep.subr.mxu0 0.0
  %3557 = vmatpush1.msra.mxu0 0.0
  %3558 = vmatprep.subr.mxu0 0.0
  %3559 = vmatpush1.msra.mxu0 0.0
  %3560 = vmatprep.subr.mxu0 0.0
  %3561 = vmatpush1.msra.mxu0 %v55
  %3562 = vmatprep.subr.mxu0 0.0
  %3563 = vmatpush1.msra.mxu0 %v52
  %3564 = vmatprep.subr.mxu0 0.0
  %3565 = vmatpush1.msra.mxu0 %v49
  %3566 = vmatprep.subr.mxu0 0.0
  %3567 = vmatpush1.msra.mxu0 %v46
  %3568 = vmatprep.subr.mxu0 0.0
  %3569 = vmatpush2.msra.mxu0 0.0
  %3570 = vmatprep.subr.mxu0 0.0
  %3571 = vmatpush2.msra.mxu0 0.0
  %3572 = vmatprep.subr.mxu0 0.0
  %3573 = vmatpush2.msra.mxu0 0.0
  %3574 = vmatprep.subr.mxu0 0.0
  %3575 = vmatpush2.msra.mxu0 0.0
  %3576 = vmatprep.subr.mxu0 0.0
  %3577 = vmatpush2.msra.mxu0 0.0
  %3578 = vmatprep.subr.mxu0 0.0
  %3579 = vmatpush2.msra.mxu0 0.0
  %3580 = vmatprep.subr.mxu0 0.0
  %3581 = vmatpush2.msra.mxu0 0.0
  %3582 = vmatprep.subr.mxu0 0.0
  %3583 = vmatpush2.msra.mxu0 0.0
  %3584 = vmatprep.subr.mxu0 0.0
  %3585 = vmatpush2.msra.mxu0 0.0
  %3586 = vmatprep.subr.mxu0 0.0
  %3587 = vmatpush2.msra.mxu0 0.0
  %3588 = vmatprep.subr.mxu0 0.0
  %3589 = vmatpush2.msra.mxu0 0.0
  %3590 = vmatprep.subr.mxu0 0.0
  %3591 = vmatpush2.msra.mxu0 0.0
  %3592 = vmatprep.subr.mxu0 0.0
  %3593 = vmatpush2.msra.mxu0 0.0
  %3594 = vmatprep.subr.mxu0 0.0
  %3595 = vmatpush2.msra.mxu0 0.0
  %3596 = vmatprep.subr.mxu0 0.0
  %3597 = vmatpush2.msra.mxu0 0.0
  %3598 = vmatprep.subr.mxu0 0.0
  %3599 = vmatpush2.msra.mxu0 0.0
  %3600 = vmatprep.mubr.f32.mxu0 0.0
  %3601 = vmatmul.mubr.f32.gmra.mxu0 %v3463
  %v3602 = vpop.f32.mrf.mxu0
  %v3603 = vadd.f32 0.0, %v3602
  %v3604 = vpop.f32.mrf.mxu0
  %3605 = vdwg.mxu0
  %v3606 = vadd.f32 %v3388, %v3532
  %v3607 = vxor.u32 %v3606, 2147483648
  %v3608 = vmul.f32 %v3607, 1.442695
  %v3609 = vpow.pop %v3608
  %v3610 = vadd.f32 %v3609, 1.0
  %v3611 = vrcp.pop %v3610
  %v3612 = vmul.f32 1.0, %v3611
  %v3613 = vadd.f32 %v3390, %v3534
  %v3614 = vxor.u32 %v3613, 2147483648
  %v3615 = vmul.f32 %v3614, 1.442695
  %v3616 = vpow.pop %v3615
  %v3617 = vadd.f32 %v3616, 1.0
  %v3618 = vrcp.pop %v3617
  %v3619 = vmul.f32 1.0, %v3618
  %v3620 = vadd.f32 %v3603, %v61
  %v3621 = vmul.f32 %v3612, %v3620
  %v3622 = vadd.f32 %v3459, %v3621
  %v3623 = vtanh.pop %v3622
  %v3624 = vsub.f32 %v3155, %v3623
  %v3625 = vmul.f32 %v3619, %v3624
  %v3626 = vadd.f32 %v3623, %v3625
  %3627 = vmatprep.subr.mxu0 0.0
  %3628 = vmatpush1.msra.mxu0 0.0
  %3629 = vmatprep.subr.mxu0 0.0
  %3630 = vmatpush1.msra.mxu0 0.0
  %3631 = vmatprep.subr.mxu0 0.0
  %3632 = vmatpush1.msra.mxu0 0.0
  %3633 = vmatprep.subr.mxu0 0.0
  %3634 = vmatpush1.msra.mxu0 0.0
  %3635 = vmatprep.subr.mxu0 0.0
  %3636 = vmatpush1.msra.mxu0 0.0
  %3637 = vmatprep.subr.mxu0 0.0
  %3638 = vmatpush1.msra.mxu0 0.0
  %3639 = vmatprep.subr.mxu0 0.0
  %3640 = vmatpush1.msra.mxu0 0.0
  %3641 = vmatprep.subr.mxu0 0.0
  %3642 = vmatpush1.msra.mxu0 0.0
  %3643 = vmatprep.subr.mxu0 0.0
  %3644 = vmatpush1.msra.mxu0 0.0
  %3645 = vmatprep.subr.mxu0 0.0
  %3646 = vmatpush1.msra.mxu0 0.0
  %3647 = vmatprep.subr.mxu0 0.0
  %3648 = vmatpush1.msra.mxu0 0.0
  %3649 = vmatprep.subr.mxu0 0.0
  %3650 = vmatpush1.msra.mxu0 0.0
  %3651 = vmatprep.subr.mxu0 %v30
  %3652 = vmatpush1.msra.mxu0 %v29
  %3653 = vmatprep.subr.mxu0 %v27
  %3654 = vmatpush1.msra.mxu0 %v26
  %3655 = vmatprep.subr.mxu0 %v24
  %3656 = vmatpush1.msra.mxu0 %v23
  %3657 = vmatprep.subr.mxu0 %v21
  %3658 = vmatpush1.msra.mxu0 %v20
  %3659 = vmatprep.subr.mxu0 0.0
  %3660 = vmatpush2.msra.mxu0 0.0
  %3661 = vmatprep.subr.mxu0 0.0
  %3662 = vmatpush2.msra.mxu0 0.0
  %3663 = vmatprep.subr.mxu0 0.0
  %3664 = vmatpush2.msra.mxu0 0.0
  %3665 = vmatprep.subr.mxu0 0.0
  %3666 = vmatpush2.msra.mxu0 0.0
  %3667 = vmatprep.subr.mxu0 0.0
  %3668 = vmatpush2.msra.mxu0 0.0
  %3669 = vmatprep.subr.mxu0 0.0
  %3670 = vmatpush2.msra.mxu0 0.0
  %3671 = vmatprep.subr.mxu0 0.0
  %3672 = vmatpush2.msra.mxu0 0.0
  %3673 = vmatprep.subr.mxu0 0.0
  %3674 = vmatpush2.msra.mxu0 0.0
  %3675 = vmatprep.subr.mxu0 0.0
  %3676 = vmatpush2.msra.mxu0 0.0
  %3677 = vmatprep.subr.mxu0 0.0
  %3678 = vmatpush2.msra.mxu0 0.0
  %3679 = vmatprep.subr.mxu0 0.0
  %3680 = vmatpush2.msra.mxu0 0.0
  %3681 = vmatprep.subr.mxu0 0.0
  %3682 = vmatpush2.msra.mxu0 0.0
  %3683 = vmatprep.subr.mxu0 0.0
  %3684 = vmatpush2.msra.mxu0 0.0
  %3685 = vmatprep.subr.mxu0 0.0
  %3686 = vmatpush2.msra.mxu0 0.0
  %3687 = vmatprep.subr.mxu0 0.0
  %3688 = vmatpush2.msra.mxu0 0.0
  %3689 = vmatprep.subr.mxu0 0.0
  %3690 = vmatpush2.msra.mxu0 0.0
  %3691 = vmatprep.mubr.f32.mxu0 0.0
  %3692 = vmatmul.mubr.f32.gmra.mxu0 %v3319
  %v3693 = vpop.f32.mrf.mxu0
  %v3694 = vadd.f32 0.0, %v3693
  %v3695 = vpop.f32.mrf.mxu0
  %v3696 = vadd.f32 0.0, %v3695
  %3697 = vdwg.mxu0
  %3698 = vmatprep.subr.mxu0 0.0
  %3699 = vmatpush1.msra.mxu0 0.0
  %3700 = vmatprep.subr.mxu0 0.0
  %3701 = vmatpush1.msra.mxu0 0.0
  %3702 = vmatprep.subr.mxu0 0.0
  %3703 = vmatpush1.msra.mxu0 0.0
  %3704 = vmatprep.subr.mxu0 0.0
  %3705 = vmatpush1.msra.mxu0 0.0
  %3706 = vmatprep.subr.mxu0 0.0
  %3707 = vmatpush1.msra.mxu0 0.0
  %3708 = vmatprep.subr.mxu0 0.0
  %3709 = vmatpush1.msra.mxu0 0.0
  %3710 = vmatprep.subr.mxu0 0.0
  %3711 = vmatpush1.msra.mxu0 0.0
  %3712 = vmatprep.subr.mxu0 0.0
  %3713 = vmatpush1.msra.mxu0 0.0
  %3714 = vmatprep.subr.mxu0 0.0
  %3715 = vmatpush1.msra.mxu0 0.0
  %3716 = vmatprep.subr.mxu0 0.0
  %3717 = vmatpush1.msra.mxu0 0.0
  %3718 = vmatprep.subr.mxu0 0.0
  %3719 = vmatpush1.msra.mxu0 0.0
  %3720 = vmatprep.subr.mxu0 0.0
  %3721 = vmatpush1.msra.mxu0 0.0
  %3722 = vmatprep.subr.mxu0 0.0
  %3723 = vmatpush1.msra.mxu0 %v31
  %3724 = vmatprep.subr.mxu0 0.0
  %3725 = vmatpush1.msra.mxu0 %v28
  %3726 = vmatprep.subr.mxu0 0.0
  %3727 = vmatpush1.msra.mxu0 %v25
  %3728 = vmatprep.subr.mxu0 0.0
  %3729 = vmatpush1.msra.mxu0 %v22
  %3730 = vmatprep.subr.mxu0 0.0
  %3731 = vmatpush2.msra.mxu0 0.0
  %3732 = vmatprep.subr.mxu0 0.0
  %3733 = vmatpush2.msra.mxu0 0.0
  %3734 = vmatprep.subr.mxu0 0.0
  %3735 = vmatpush2.msra.mxu0 0.0
  %3736 = vmatprep.subr.mxu0 0.0
  %3737 = vmatpush2.msra.mxu0 0.0
  %3738 = vmatprep.subr.mxu0 0.0
  %3739 = vmatpush2.msra.mxu0 0.0
  %3740 = vmatprep.subr.mxu0 0.0
  %3741 = vmatpush2.msra.mxu0 0.0
  %3742 = vmatprep.subr.mxu0 0.0
  %3743 = vmatpush2.msra.mxu0 0.0
  %3744 = vmatprep.subr.mxu0 0.0
  %3745 = vmatpush2.msra.mxu0 0.0
  %3746 = vmatprep.subr.mxu0 0.0
  %3747 = vmatpush2.msra.mxu0 0.0
  %3748 = vmatprep.subr.mxu0 0.0
  %3749 = vmatpush2.msra.mxu0 0.0
  %3750 = vmatprep.subr.mxu0 0.0
  %3751 = vmatpush2.msra.mxu0 0.0
  %3752 = vmatprep.subr.mxu0 0.0
  %3753 = vmatpush2.msra.mxu0 0.0
  %3754 = vmatprep.subr.mxu0 0.0
  %3755 = vmatpush2.msra.mxu0 0.0
  %3756 = vmatprep.subr.mxu0 0.0
  %3757 = vmatpush2.msra.mxu0 0.0
  %3758 = vmatprep.subr.mxu0 0.0
  %3759 = vmatpush2.msra.mxu0 0.0
  %3760 = vmatprep.subr.mxu0 0.0
  %3761 = vmatpush2.msra.mxu0 0.0
  %3762 = vmatprep.mubr.f32.mxu0 0.0
  %3763 = vmatmul.mubr.f32.gmra.mxu0 %v3319
  %v3764 = vpop.f32.mrf.mxu0
  %v3765 = vadd.f32 0.0, %v3764
  %v3766 = vpop.f32.mrf.mxu0
  %3767 = vdwg.mxu0
  %v3768 = vadd.f32 %v220, %v3694
  %v3769 = vxor.u32 %v3768, 2147483648
  %v3770 = vmul.f32 %v3769, 1.442695
  %v3771 = vpow.pop %v3770
  %v3772 = vadd.f32 %v3771, 1.0
  %v3773 = vrcp.pop %v3772
  %v3774 = vmul.f32 1.0, %v3773
  %v3775 = vadd.f32 %v222, %v3696
  %v3776 = vxor.u32 %v3775, 2147483648
  %v3777 = vmul.f32 %v3776, 1.442695
  %v3778 = vpow.pop %v3777
  %v3779 = vadd.f32 %v3778, 1.0
  %v3780 = vrcp.pop %v3779
  %v3781 = vmul.f32 1.0, %v3780
  %v3782 = vadd.f32 %v3765, %v57
  %v3783 = vmul.f32 %v3774, %v3782
  %v3784 = vadd.f32 %v326, %v3783
  %v3785 = vtanh.pop %v3784
  %v3786 = vsub.f32 %v3317, %v3785
  %v3787 = vmul.f32 %v3781, %v3786
  %v3788 = vadd.f32 %v3785, %v3787
  %v3790 = vsel %vm329, %v3788, 0
  %3792 = vmatprep.subr.mxu0 0.0
  %3793 = vmatpush1.msra.mxu0 0.0
  %3794 = vmatprep.subr.mxu0 0.0
  %3795 = vmatpush1.msra.mxu0 0.0
  %3796 = vmatprep.subr.mxu0 0.0
  %3797 = vmatpush1.msra.mxu0 0.0
  %3798 = vmatprep.subr.mxu0 0.0
  %3799 = vmatpush1.msra.mxu0 0.0
  %3800 = vmatprep.subr.mxu0 0.0
  %3801 = vmatpush1.msra.mxu0 0.0
  %3802 = vmatprep.subr.mxu0 0.0
  %3803 = vmatpush1.msra.mxu0 0.0
  %3804 = vmatprep.subr.mxu0 0.0
  %3805 = vmatpush1.msra.mxu0 0.0
  %3806 = vmatprep.subr.mxu0 0.0
  %3807 = vmatpush1.msra.mxu0 0.0
  %3808 = vmatprep.subr.mxu0 0.0
  %3809 = vmatpush1.msra.mxu0 0.0
  %3810 = vmatprep.subr.mxu0 0.0
  %3811 = vmatpush1.msra.mxu0 0.0
  %3812 = vmatprep.subr.mxu0 0.0
  %3813 = vmatpush1.msra.mxu0 0.0
  %3814 = vmatprep.subr.mxu0 0.0
  %3815 = vmatpush1.msra.mxu0 0.0
  %3816 = vmatprep.subr.mxu0 %v42
  %3817 = vmatpush1.msra.mxu0 %v41
  %3818 = vmatprep.subr.mxu0 %v39
  %3819 = vmatpush1.msra.mxu0 %v38
  %3820 = vmatprep.subr.mxu0 %v36
  %3821 = vmatpush1.msra.mxu0 %v35
  %3822 = vmatprep.subr.mxu0 %v33
  %3823 = vmatpush1.msra.mxu0 %v32
  %3824 = vmatprep.subr.mxu0 0.0
  %3825 = vmatpush2.msra.mxu0 0.0
  %3826 = vmatprep.subr.mxu0 0.0
  %3827 = vmatpush2.msra.mxu0 0.0
  %3828 = vmatprep.subr.mxu0 0.0
  %3829 = vmatpush2.msra.mxu0 0.0
  %3830 = vmatprep.subr.mxu0 0.0
  %3831 = vmatpush2.msra.mxu0 0.0
  %3832 = vmatprep.subr.mxu0 0.0
  %3833 = vmatpush2.msra.mxu0 0.0
  %3834 = vmatprep.subr.mxu0 0.0
  %3835 = vmatpush2.msra.mxu0 0.0
  %3836 = vmatprep.subr.mxu0 0.0
  %3837 = vmatpush2.msra.mxu0 0.0
  %3838 = vmatprep.subr.mxu0 0.0
  %3839 = vmatpush2.msra.mxu0 0.0
  %3840 = vmatprep.subr.mxu0 0.0
  %3841 = vmatpush2.msra.mxu0 0.0
  %3842 = vmatprep.subr.mxu0 0.0
  %3843 = vmatpush2.msra.mxu0 0.0
  %3844 = vmatprep.subr.mxu0 0.0
  %3845 = vmatpush2.msra.mxu0 0.0
  %3846 = vmatprep.subr.mxu0 0.0
  %3847 = vmatpush2.msra.mxu0 0.0
  %3848 = vmatprep.subr.mxu0 0.0
  %3849 = vmatpush2.msra.mxu0 0.0
  %3850 = vmatprep.subr.mxu0 0.0
  %3851 = vmatpush2.msra.mxu0 0.0
  %3852 = vmatprep.subr.mxu0 0.0
  %3853 = vmatpush2.msra.mxu0 0.0
  %3854 = vmatprep.subr.mxu0 0.0
  %3855 = vmatpush2.msra.mxu0 0.0
  %3856 = vmatprep.mubr.f32.mxu0 0.0
  %3857 = vmatmul.mubr.f32.gmra.mxu0 %v3790
  %v3858 = vpop.f32.mrf.mxu0
  %v3859 = vadd.f32 %v58, %v3858
  %v3860 = vpop.f32.mrf.mxu0
  %v3861 = vadd.f32 %v59, %v3860
  %3862 = vdwg.mxu0
  %3863 = vmatprep.subr.mxu0 0.0
  %3864 = vmatpush1.msra.mxu0 0.0
  %3865 = vmatprep.subr.mxu0 0.0
  %3866 = vmatpush1.msra.mxu0 0.0
  %3867 = vmatprep.subr.mxu0 0.0
  %3868 = vmatpush1.msra.mxu0 0.0
  %3869 = vmatprep.subr.mxu0 0.0
  %3870 = vmatpush1.msra.mxu0 0.0
  %3871 = vmatprep.subr.mxu0 0.0
  %3872 = vmatpush1.msra.mxu0 0.0
  %3873 = vmatprep.subr.mxu0 0.0
  %3874 = vmatpush1.msra.mxu0 0.0
  %3875 = vmatprep.subr.mxu0 0.0
  %3876 = vmatpush1.msra.mxu0 0.0
  %3877 = vmatprep.subr.mxu0 0.0
  %3878 = vmatpush1.msra.mxu0 0.0
  %3879 = vmatprep.subr.mxu0 0.0
  %3880 = vmatpush1.msra.mxu0 0.0
  %3881 = vmatprep.subr.mxu0 0.0
  %3882 = vmatpush1.msra.mxu0 0.0
  %3883 = vmatprep.subr.mxu0 0.0
  %3884 = vmatpush1.msra.mxu0 0.0
  %3885 = vmatprep.subr.mxu0 0.0
  %3886 = vmatpush1.msra.mxu0 0.0
  %3887 = vmatprep.subr.mxu0 0.0
  %3888 = vmatpush1.msra.mxu0 %v43
  %3889 = vmatprep.subr.mxu0 0.0
  %3890 = vmatpush1.msra.mxu0 %v40
  %3891 = vmatprep.subr.mxu0 0.0
  %3892 = vmatpush1.msra.mxu0 %v37
  %3893 = vmatprep.subr.mxu0 0.0
  %3894 = vmatpush1.msra.mxu0 %v34
  %3895 = vmatprep.subr.mxu0 0.0
  %3896 = vmatpush2.msra.mxu0 0.0
  %3897 = vmatprep.subr.mxu0 0.0
  %3898 = vmatpush2.msra.mxu0 0.0
  %3899 = vmatprep.subr.mxu0 0.0
  %3900 = vmatpush2.msra.mxu0 0.0
  %3901 = vmatprep.subr.mxu0 0.0
  %3902 = vmatpush2.msra.mxu0 0.0
  %3903 = vmatprep.subr.mxu0 0.0
  %3904 = vmatpush2.msra.mxu0 0.0
  %3905 = vmatprep.subr.mxu0 0.0
  %3906 = vmatpush2.msra.mxu0 0.0
  %3907 = vmatprep.subr.mxu0 0.0
  %3908 = vmatpush2.msra.mxu0 0.0
  %3909 = vmatprep.subr.mxu0 0.0
  %3910 = vmatpush2.msra.mxu0 0.0
  %3911 = vmatprep.subr.mxu0 0.0
  %3912 = vmatpush2.msra.mxu0 0.0
  %3913 = vmatprep.subr.mxu0 0.0
  %3914 = vmatpush2.msra.mxu0 0.0
  %3915 = vmatprep.subr.mxu0 0.0
  %3916 = vmatpush2.msra.mxu0 0.0
  %3917 = vmatprep.subr.mxu0 0.0
  %3918 = vmatpush2.msra.mxu0 0.0
  %3919 = vmatprep.subr.mxu0 0.0
  %3920 = vmatpush2.msra.mxu0 0.0
  %3921 = vmatprep.subr.mxu0 0.0
  %3922 = vmatpush2.msra.mxu0 0.0
  %3923 = vmatprep.subr.mxu0 0.0
  %3924 = vmatpush2.msra.mxu0 0.0
  %3925 = vmatprep.subr.mxu0 0.0
  %3926 = vmatpush2.msra.mxu0 0.0
  %3927 = vmatprep.mubr.f32.mxu0 0.0
  %3928 = vmatmul.mubr.f32.gmra.mxu0 %v3790
  %v3929 = vpop.f32.mrf.mxu0
  %v3930 = vadd.f32 %v60, %v3929
  %v3931 = vpop.f32.mrf.mxu0
  %3932 = vdwg.mxu0
  %v3934 = vsel %vm329, %v3626, 0
  %3936 = vmatprep.subr.mxu0 0.0
  %3937 = vmatpush1.msra.mxu0 0.0
  %3938 = vmatprep.subr.mxu0 0.0
  %3939 = vmatpush1.msra.mxu0 0.0
  %3940 = vmatprep.subr.mxu0 0.0
  %3941 = vmatpush1.msra.mxu0 0.0
  %3942 = vmatprep.subr.mxu0 0.0
  %3943 = vmatpush1.msra.mxu0 0.0
  %3944 = vmatprep.subr.mxu0 0.0
  %3945 = vmatpush1.msra.mxu0 0.0
  %3946 = vmatprep.subr.mxu0 0.0
  %3947 = vmatpush1.msra.mxu0 0.0
  %3948 = vmatprep.subr.mxu0 0.0
  %3949 = vmatpush1.msra.mxu0 0.0
  %3950 = vmatprep.subr.mxu0 0.0
  %3951 = vmatpush1.msra.mxu0 0.0
  %3952 = vmatprep.subr.mxu0 0.0
  %3953 = vmatpush1.msra.mxu0 0.0
  %3954 = vmatprep.subr.mxu0 0.0
  %3955 = vmatpush1.msra.mxu0 0.0
  %3956 = vmatprep.subr.mxu0 0.0
  %3957 = vmatpush1.msra.mxu0 0.0
  %3958 = vmatprep.subr.mxu0 0.0
  %3959 = vmatpush1.msra.mxu0 0.0
  %3960 = vmatprep.subr.mxu0 %v54
  %3961 = vmatpush1.msra.mxu0 %v53
  %3962 = vmatprep.subr.mxu0 %v51
  %3963 = vmatpush1.msra.mxu0 %v50
  %3964 = vmatprep.subr.mxu0 %v48
  %3965 = vmatpush1.msra.mxu0 %v47
  %3966 = vmatprep.subr.mxu0 %v45
  %3967 = vmatpush1.msra.mxu0 %v44
  %3968 = vmatprep.subr.mxu0 0.0
  %3969 = vmatpush2.msra.mxu0 0.0
  %3970 = vmatprep.subr.mxu0 0.0
  %3971 = vmatpush2.msra.mxu0 0.0
  %3972 = vmatprep.subr.mxu0 0.0
  %3973 = vmatpush2.msra.mxu0 0.0
  %3974 = vmatprep.subr.mxu0 0.0
  %3975 = vmatpush2.msra.mxu0 0.0
  %3976 = vmatprep.subr.mxu0 0.0
  %3977 = vmatpush2.msra.mxu0 0.0
  %3978 = vmatprep.subr.mxu0 0.0
  %3979 = vmatpush2.msra.mxu0 0.0
  %3980 = vmatprep.subr.mxu0 0.0
  %3981 = vmatpush2.msra.mxu0 0.0
  %3982 = vmatprep.subr.mxu0 0.0
  %3983 = vmatpush2.msra.mxu0 0.0
  %3984 = vmatprep.subr.mxu0 0.0
  %3985 = vmatpush2.msra.mxu0 0.0
  %3986 = vmatprep.subr.mxu0 0.0
  %3987 = vmatpush2.msra.mxu0 0.0
  %3988 = vmatprep.subr.mxu0 0.0
  %3989 = vmatpush2.msra.mxu0 0.0
  %3990 = vmatprep.subr.mxu0 0.0
  %3991 = vmatpush2.msra.mxu0 0.0
  %3992 = vmatprep.subr.mxu0 0.0
  %3993 = vmatpush2.msra.mxu0 0.0
  %3994 = vmatprep.subr.mxu0 0.0
  %3995 = vmatpush2.msra.mxu0 0.0
  %3996 = vmatprep.subr.mxu0 0.0
  %3997 = vmatpush2.msra.mxu0 0.0
  %3998 = vmatprep.subr.mxu0 0.0
  %3999 = vmatpush2.msra.mxu0 0.0
  %4000 = vmatprep.mubr.f32.mxu0 0.0
  %4001 = vmatmul.mubr.f32.gmra.mxu0 %v3934
  %v4002 = vpop.f32.mrf.mxu0
  %v4003 = vadd.f32 0.0, %v4002
  %v4004 = vpop.f32.mrf.mxu0
  %v4005 = vadd.f32 0.0, %v4004
  %4006 = vdwg.mxu0
  %4007 = vmatprep.subr.mxu0 0.0
  %4008 = vmatpush1.msra.mxu0 0.0
  %4009 = vmatprep.subr.mxu0 0.0
  %4010 = vmatpush1.msra.mxu0 0.0
  %4011 = vmatprep.subr.mxu0 0.0
  %4012 = vmatpush1.msra.mxu0 0.0
  %4013 = vmatprep.subr.mxu0 0.0
  %4014 = vmatpush1.msra.mxu0 0.0
  %4015 = vmatprep.subr.mxu0 0.0
  %4016 = vmatpush1.msra.mxu0 0.0
  %4017 = vmatprep.subr.mxu0 0.0
  %4018 = vmatpush1.msra.mxu0 0.0
  %4019 = vmatprep.subr.mxu0 0.0
  %4020 = vmatpush1.msra.mxu0 0.0
  %4021 = vmatprep.subr.mxu0 0.0
  %4022 = vmatpush1.msra.mxu0 0.0
  %4023 = vmatprep.subr.mxu0 0.0
  %4024 = vmatpush1.msra.mxu0 0.0
  %4025 = vmatprep.subr.mxu0 0.0
  %4026 = vmatpush1.msra.mxu0 0.0
  %4027 = vmatprep.subr.mxu0 0.0
  %4028 = vmatpush1.msra.mxu0 0.0
  %4029 = vmatprep.subr.mxu0 0.0
  %4030 = vmatpush1.msra.mxu0 0.0
  %4031 = vmatprep.subr.mxu0 0.0
  %4032 = vmatpush1.msra.mxu0 %v55
  %4033 = vmatprep.subr.mxu0 0.0
  %4034 = vmatpush1.msra.mxu0 %v52
  %4035 = vmatprep.subr.mxu0 0.0
  %4036 = vmatpush1.msra.mxu0 %v49
  %4037 = vmatprep.subr.mxu0 0.0
  %4038 = vmatpush1.msra.mxu0 %v46
  %4039 = vmatprep.subr.mxu0 0.0
  %4040 = vmatpush2.msra.mxu0 0.0
  %4041 = vmatprep.subr.mxu0 0.0
  %4042 = vmatpush2.msra.mxu0 0.0
  %4043 = vmatprep.subr.mxu0 0.0
  %4044 = vmatpush2.msra.mxu0 0.0
  %4045 = vmatprep.subr.mxu0 0.0
  %4046 = vmatpush2.msra.mxu0 0.0
  %4047 = vmatprep.subr.mxu0 0.0
  %4048 = vmatpush2.msra.mxu0 0.0
  %4049 = vmatprep.subr.mxu0 0.0
  %4050 = vmatpush2.msra.mxu0 0.0
  %4051 = vmatprep.subr.mxu0 0.0
  %4052 = vmatpush2.msra.mxu0 0.0
  %4053 = vmatprep.subr.mxu0 0.0
  %4054 = vmatpush2.msra.mxu0 0.0
  %4055 = vmatprep.subr.mxu0 0.0
  %4056 = vmatpush2.msra.mxu0 0.0
  %4057 = vmatprep.subr.mxu0 0.0
  %4058 = vmatpush2.msra.mxu0 0.0
  %4059 = vmatprep.subr.mxu0 0.0
  %4060 = vmatpush2.msra.mxu0 0.0
  %4061 = vmatprep.subr.mxu0 0.0
  %4062 = vmatpush2.msra.mxu0 0.0
  %4063 = vmatprep.subr.mxu0 0.0
  %4064 = vmatpush2.msra.mxu0 0.0
  %4065 = vmatprep.subr.mxu0 0.0
  %4066 = vmatpush2.msra.mxu0 0.0
  %4067 = vmatprep.subr.mxu0 0.0
  %4068 = vmatpush2.msra.mxu0 0.0
  %4069 = vmatprep.subr.mxu0 0.0
  %4070 = vmatpush2.msra.mxu0 0.0
  %4071 = vmatprep.mubr.f32.mxu0 0.0
  %4072 = vmatmul.mubr.f32.gmra.mxu0 %v3934
  %v4073 = vpop.f32.mrf.mxu0
  %v4074 = vadd.f32 0.0, %v4073
  %v4075 = vpop.f32.mrf.mxu0
  %4076 = vdwg.mxu0
  %v4077 = vadd.f32 %v3859, %v4003
  %v4078 = vxor.u32 %v4077, 2147483648
  %v4079 = vmul.f32 %v4078, 1.442695
  %v4080 = vpow.pop %v4079
  %v4081 = vadd.f32 %v4080, 1.0
  %v4082 = vrcp.pop %v4081
  %v4083 = vmul.f32 1.0, %v4082
  %v4084 = vadd.f32 %v3861, %v4005
  %v4085 = vxor.u32 %v4084, 2147483648
  %v4086 = vmul.f32 %v4085, 1.442695
  %v4087 = vpow.pop %v4086
  %v4088 = vadd.f32 %v4087, 1.0
  %v4089 = vrcp.pop %v4088
  %v4090 = vmul.f32 1.0, %v4089
  %v4091 = vadd.f32 %v4074, %v61
  %v4092 = vmul.f32 %v4083, %v4091
  %v4093 = vadd.f32 %v3930, %v4092
  %v4094 = vtanh.pop %v4093
  %v4095 = vsub.f32 %v3626, %v4094
  %v4096 = vmul.f32 %v4090, %v4095
  %v4097 = vadd.f32 %v4094, %v4096
  %v4098 = vld [vmem:[%s3] sm:$0xff]
  %v4099 = vld [vmem:[%s3 + $0x8] sm:$0xff]
  %v4100 = vld [vmem:[%s3 + $0x10] sm:$0xff]
  %v4101 = vld [vmem:[%s3 + $0x18] sm:$0xff]
  %v4102 = vld [vmem:[%s3 + $0x20] sm:$0xff]
  %v4103 = vld [vmem:[%s3 + $0x28] sm:$0xff]
  %v4104 = vld [vmem:[%s3 + $0x30] sm:$0xff]
  %v4105 = vld [vmem:[%s3 + $0x38] sm:$0xff]
  %v4106 = vld [vmem:[%s3 + $0x40] sm:$0xff]
  %v4107 = vld [vmem:[%s3 + $0x48] sm:$0xff]
  %v4108 = vld [vmem:[%s3 + $0x50] sm:$0xff]
  %v4109 = vld [vmem:[%s3 + $0x58] sm:$0xff]
  %v4110 = vld [vmem:[%s3 + $0x60] sm:$0xff]
  %v4111 = vld [vmem:[%s3 + $0x68] sm:$0xff]
  %v4112 = vld [vmem:[%s3 + $0x70] sm:$0xff]
  %v4113 = vld [vmem:[%s3 + $0x78] sm:$0xff]
  %v4114 = vld [vmem:[%s3 + $0x80] sm:$0xff]
  %v4115 = vld [vmem:[%s3 + $0x88] sm:$0xff]
  %v4116 = vld [vmem:[%s3 + $0x90] sm:$0x3]
  %v4117 = vld [vmem:[%s3 + $0x98] sm:$0xff]
  %v4118 = vld [vmem:[%s3 + $0xa0] sm:$0xff]
  %v4119 = vld [vmem:[%s3 + $0xa8] sm:$0xff]
  %v4121 = vsel %vm86, %v4099, 0
  %4123 = vmatprep.subr.mxu0 0.0
  %4124 = vmatpush1.msra.mxu0 0.0
  %4125 = vmatprep.subr.mxu0 0.0
  %4126 = vmatpush1.msra.mxu0 0.0
  %4127 = vmatprep.subr.mxu0 0.0
  %4128 = vmatpush1.msra.mxu0 0.0
  %4129 = vmatprep.subr.mxu0 0.0
  %4130 = vmatpush1.msra.mxu0 0.0
  %4131 = vmatprep.subr.mxu0 0.0
  %4132 = vmatpush1.msra.mxu0 0.0
  %4133 = vmatprep.subr.mxu0 0.0
  %4134 = vmatpush1.msra.mxu0 0.0
  %4135 = vmatprep.subr.mxu0 0.0
  %4136 = vmatpush1.msra.mxu0 0.0
  %4137 = vmatprep.subr.mxu0 0.0
  %4138 = vmatpush1.msra.mxu0 0.0
  %4139 = vmatprep.subr.mxu0 0.0
  %4140 = vmatpush1.msra.mxu0 0.0
  %4141 = vmatprep.subr.mxu0 0.0
  %4142 = vmatpush1.msra.mxu0 0.0
  %4143 = vmatprep.subr.mxu0 0.0
  %4144 = vmatpush1.msra.mxu0 0.0
  %4145 = vmatprep.subr.mxu0 0.0
  %4146 = vmatpush1.msra.mxu0 0.0
  %4147 = vmatprep.subr.mxu0 0.0
  %4148 = vmatpush1.msra.mxu0 0.0
  %4149 = vmatprep.subr.mxu0 0.0
  %4150 = vmatpush1.msra.mxu0 0.0
  %4151 = vmatprep.subr.mxu0 0.0
  %4152 = vmatpush1.msra.mxu0 0.0
  %4153 = vmatprep.subr.mxu0 0.0
  %4154 = vmatpush1.msra.mxu0 %v4097
  %4155 = vmatprep.subr.mxu0 0.0
  %4156 = vmatpush2.msra.mxu0 0.0
  %4157 = vmatprep.subr.mxu0 0.0
  %4158 = vmatpush2.msra.mxu0 0.0
  %4159 = vmatprep.subr.mxu0 0.0
  %4160 = vmatpush2.msra.mxu0 0.0
  %4161 = vmatprep.subr.mxu0 0.0
  %4162 = vmatpush2.msra.mxu0 0.0
  %4163 = vmatprep.subr.mxu0 0.0
  %4164 = vmatpush2.msra.mxu0 0.0
  %4165 = vmatprep.subr.mxu0 0.0
  %4166 = vmatpush2.msra.mxu0 0.0
  %4167 = vmatprep.subr.mxu0 0.0
  %4168 = vmatpush2.msra.mxu0 0.0
  %4169 = vmatprep.subr.mxu0 0.0
  %4170 = vmatpush2.msra.mxu0 0.0
  %4171 = vmatprep.subr.mxu0 0.0
  %4172 = vmatpush2.msra.mxu0 0.0
  %4173 = vmatprep.subr.mxu0 0.0
  %4174 = vmatpush2.msra.mxu0 0.0
  %4175 = vmatprep.subr.mxu0 0.0
  %4176 = vmatpush2.msra.mxu0 0.0
  %4177 = vmatprep.subr.mxu0 0.0
  %4178 = vmatpush2.msra.mxu0 0.0
  %4179 = vmatprep.subr.mxu0 0.0
  %4180 = vmatpush2.msra.mxu0 0.0
  %4181 = vmatprep.subr.mxu0 0.0
  %4182 = vmatpush2.msra.mxu0 0.0
  %4183 = vmatprep.subr.mxu0 0.0
  %4184 = vmatpush2.msra.mxu0 0.0
  %4185 = vmatprep.subr.mxu0 0.0
  %4186 = vmatpush2.msra.mxu0 0.0
  %4187 = vmatprep.mubr.f32.mxu0 0.0
  %4188 = vmatmul.mubr.f32.gmra.mxu0 %v4121
  %v4189 = vpop.f32.mrf.mxu0
  %v4190 = vadd.f32 0.0, %v4189
  %v4191 = vpop.f32.mrf.mxu0
  %4192 = vdwg.mxu0
  %v4194 = vsel %vm86, %v4098, 0
  %4196 = vmatprep.subr.mxu0 0.0
  %4197 = vmatpush1.msra.mxu0 0.0
  %4198 = vmatprep.subr.mxu0 0.0
  %4199 = vmatpush1.msra.mxu0 0.0
  %4200 = vmatprep.subr.mxu0 0.0
  %4201 = vmatpush1.msra.mxu0 0.0
  %4202 = vmatprep.subr.mxu0 0.0
  %4203 = vmatpush1.msra.mxu0 0.0
  %4204 = vmatprep.subr.mxu0 0.0
  %4205 = vmatpush1.msra.mxu0 0.0
  %4206 = vmatprep.subr.mxu0 0.0
  %4207 = vmatpush1.msra.mxu0 0.0
  %4208 = vmatprep.subr.mxu0 0.0
  %4209 = vmatpush1.msra.mxu0 0.0
  %4210 = vmatprep.subr.mxu0 0.0
  %4211 = vmatpush1.msra.mxu0 0.0
  %4212 = vmatprep.subr.mxu0 0.0
  %4213 = vmatpush1.msra.mxu0 0.0
  %4214 = vmatprep.subr.mxu0 0.0
  %4215 = vmatpush1.msra.mxu0 0.0
  %4216 = vmatprep.subr.mxu0 0.0
  %4217 = vmatpush1.msra.mxu0 0.0
  %4218 = vmatprep.subr.mxu0 0.0
  %4219 = vmatpush1.msra.mxu0 0.0
  %4220 = vmatprep.subr.mxu0 0.0
  %4221 = vmatpush1.msra.mxu0 0.0
  %4222 = vmatprep.subr.mxu0 0.0
  %4223 = vmatpush1.msra.mxu0 0.0
  %4224 = vmatprep.subr.mxu0 0.0
  %4225 = vmatpush1.msra.mxu0 0.0
  %4226 = vmatprep.subr.mxu0 0.0
  %4227 = vmatpush1.msra.mxu0 %v3788
  %4228 = vmatprep.subr.mxu0 0.0
  %4229 = vmatpush2.msra.mxu0 0.0
  %4230 = vmatprep.subr.mxu0 0.0
  %4231 = vmatpush2.msra.mxu0 0.0
  %4232 = vmatprep.subr.mxu0 0.0
  %4233 = vmatpush2.msra.mxu0 0.0
  %4234 = vmatprep.subr.mxu0 0.0
  %4235 = vmatpush2.msra.mxu0 0.0
  %4236 = vmatprep.subr.mxu0 0.0
  %4237 = vmatpush2.msra.mxu0 0.0
  %4238 = vmatprep.subr.mxu0 0.0
  %4239 = vmatpush2.msra.mxu0 0.0
  %4240 = vmatprep.subr.mxu0 0.0
  %4241 = vmatpush2.msra.mxu0 0.0
  %4242 = vmatprep.subr.mxu0 0.0
  %4243 = vmatpush2.msra.mxu0 0.0
  %4244 = vmatprep.subr.mxu0 0.0
  %4245 = vmatpush2.msra.mxu0 0.0
  %4246 = vmatprep.subr.mxu0 0.0
  %4247 = vmatpush2.msra.mxu0 0.0
  %4248 = vmatprep.subr.mxu0 0.0
  %4249 = vmatpush2.msra.mxu0 0.0
  %4250 = vmatprep.subr.mxu0 0.0
  %4251 = vmatpush2.msra.mxu0 0.0
  %4252 = vmatprep.subr.mxu0 0.0
  %4253 = vmatpush2.msra.mxu0 0.0
  %4254 = vmatprep.subr.mxu0 0.0
  %4255 = vmatpush2.msra.mxu0 0.0
  %4256 = vmatprep.subr.mxu0 0.0
  %4257 = vmatpush2.msra.mxu0 0.0
  %4258 = vmatprep.subr.mxu0 0.0
  %4259 = vmatpush2.msra.mxu0 0.0
  %4260 = vmatprep.mubr.f32.mxu0 0.0
  %4261 = vmatmul.mubr.f32.gmra.mxu0 %v4194
  %v4262 = vpop.f32.mrf.mxu0
  %v4263 = vadd.f32 %v4190, %v4262
  %v4264 = vpop.f32.mrf.mxu0
  %4265 = vdwg.mxu0
  %v4267 = vsel %vm86, %v4101, 0
  %4269 = vmatprep.subr.mxu0 0.0
  %4270 = vmatpush1.msra.mxu0 0.0
  %4271 = vmatprep.subr.mxu0 0.0
  %4272 = vmatpush1.msra.mxu0 0.0
  %4273 = vmatprep.subr.mxu0 0.0
  %4274 = vmatpush1.msra.mxu0 0.0
  %4275 = vmatprep.subr.mxu0 0.0
  %4276 = vmatpush1.msra.mxu0 0.0
  %4277 = vmatprep.subr.mxu0 0.0
  %4278 = vmatpush1.msra.mxu0 0.0
  %4279 = vmatprep.subr.mxu0 0.0
  %4280 = vmatpush1.msra.mxu0 0.0
  %4281 = vmatprep.subr.mxu0 0.0
  %4282 = vmatpush1.msra.mxu0 0.0
  %4283 = vmatprep.subr.mxu0 0.0
  %4284 = vmatpush1.msra.mxu0 0.0
  %4285 = vmatprep.subr.mxu0 0.0
  %4286 = vmatpush1.msra.mxu0 0.0
  %4287 = vmatprep.subr.mxu0 0.0
  %4288 = vmatpush1.msra.mxu0 0.0
  %4289 = vmatprep.subr.mxu0 0.0
  %4290 = vmatpush1.msra.mxu0 0.0
  %4291 = vmatprep.subr.mxu0 0.0
  %4292 = vmatpush1.msra.mxu0 0.0
  %4293 = vmatprep.subr.mxu0 0.0
  %4294 = vmatpush1.msra.mxu0 0.0
  %4295 = vmatprep.subr.mxu0 0.0
  %4296 = vmatpush1.msra.mxu0 0.0
  %4297 = vmatprep.subr.mxu0 0.0
  %4298 = vmatpush1.msra.mxu0 0.0
  %4299 = vmatprep.subr.mxu0 0.0
  %4300 = vmatpush1.msra.mxu0 %v4097
  %4301 = vmatprep.subr.mxu0 0.0
  %4302 = vmatpush2.msra.mxu0 0.0
  %4303 = vmatprep.subr.mxu0 0.0
  %4304 = vmatpush2.msra.mxu0 0.0
  %4305 = vmatprep.subr.mxu0 0.0
  %4306 = vmatpush2.msra.mxu0 0.0
  %4307 = vmatprep.subr.mxu0 0.0
  %4308 = vmatpush2.msra.mxu0 0.0
  %4309 = vmatprep.subr.mxu0 0.0
  %4310 = vmatpush2.msra.mxu0 0.0
  %4311 = vmatprep.subr.mxu0 0.0
  %4312 = vmatpush2.msra.mxu0 0.0
  %4313 = vmatprep.subr.mxu0 0.0
  %4314 = vmatpush2.msra.mxu0 0.0
  %4315 = vmatprep.subr.mxu0 0.0
  %4316 = vmatpush2.msra.mxu0 0.0
  %4317 = vmatprep.subr.mxu0 0.0
  %4318 = vmatpush2.msra.mxu0 0.0
  %4319 = vmatprep.subr.mxu0 0.0
  %4320 = vmatpush2.msra.mxu0 0.0
  %4321 = vmatprep.subr.mxu0 0.0
  %4322 = vmatpush2.msra.mxu0 0.0
  %4323 = vmatprep.subr.mxu0 0.0
  %4324 = vmatpush2.msra.mxu0 0.0
  %4325 = vmatprep.subr.mxu0 0.0
  %4326 = vmatpush2.msra.mxu0 0.0
  %4327 = vmatprep.subr.mxu0 0.0
  %4328 = vmatpush2.msra.mxu0 0.0
  %4329 = vmatprep.subr.mxu0 0.0
  %4330 = vmatpush2.msra.mxu0 0.0
  %4331 = vmatprep.subr.mxu0 0.0
  %4332 = vmatpush2.msra.mxu0 0.0
  %4333 = vmatprep.mubr.f32.mxu0 0.0
  %4334 = vmatmul.mubr.f32.gmra.mxu0 %v4267
  %v4335 = vpop.f32.mrf.mxu0
  %v4336 = vadd.f32 0.0, %v4335
  %v4337 = vpop.f32.mrf.mxu0
  %4338 = vdwg.mxu0
  %v4340 = vsel %vm86, %v4100, 0
  %4342 = vmatprep.subr.mxu0 0.0
  %4343 = vmatpush1.msra.mxu0 0.0
  %4344 = vmatprep.subr.mxu0 0.0
  %4345 = vmatpush1.msra.mxu0 0.0
  %4346 = vmatprep.subr.mxu0 0.0
  %4347 = vmatpush1.msra.mxu0 0.0
  %4348 = vmatprep.subr.mxu0 0.0
  %4349 = vmatpush1.msra.mxu0 0.0
  %4350 = vmatprep.subr.mxu0 0.0
  %4351 = vmatpush1.msra.mxu0 0.0
  %4352 = vmatprep.subr.mxu0 0.0
  %4353 = vmatpush1.msra.mxu0 0.0
  %4354 = vmatprep.subr.mxu0 0.0
  %4355 = vmatpush1.msra.mxu0 0.0
  %4356 = vmatprep.subr.mxu0 0.0
  %4357 = vmatpush1.msra.mxu0 0.0
  %4358 = vmatprep.subr.mxu0 0.0
  %4359 = vmatpush1.msra.mxu0 0.0
  %4360 = vmatprep.subr.mxu0 0.0
  %4361 = vmatpush1.msra.mxu0 0.0
  %4362 = vmatprep.subr.mxu0 0.0
  %4363 = vmatpush1.msra.mxu0 0.0
  %4364 = vmatprep.subr.mxu0 0.0
  %4365 = vmatpush1.msra.mxu0 0.0
  %4366 = vmatprep.subr.mxu0 0.0
  %4367 = vmatpush1.msra.mxu0 0.0
  %4368 = vmatprep.subr.mxu0 0.0
  %4369 = vmatpush1.msra.mxu0 0.0
  %4370 = vmatprep.subr.mxu0 0.0
  %4371 = vmatpush1.msra.mxu0 0.0
  %4372 = vmatprep.subr.mxu0 0.0
  %4373 = vmatpush1.msra.mxu0 %v3788
  %4374 = vmatprep.subr.mxu0 0.0
  %4375 = vmatpush2.msra.mxu0 0.0
  %4376 = vmatprep.subr.mxu0 0.0
  %4377 = vmatpush2.msra.mxu0 0.0
  %4378 = vmatprep.subr.mxu0 0.0
  %4379 = vmatpush2.msra.mxu0 0.0
  %4380 = vmatprep.subr.mxu0 0.0
  %4381 = vmatpush2.msra.mxu0 0.0
  %4382 = vmatprep.subr.mxu0 0.0
  %4383 = vmatpush2.msra.mxu0 0.0
  %4384 = vmatprep.subr.mxu0 0.0
  %4385 = vmatpush2.msra.mxu0 0.0
  %4386 = vmatprep.subr.mxu0 0.0
  %4387 = vmatpush2.msra.mxu0 0.0
  %4388 = vmatprep.subr.mxu0 0.0
  %4389 = vmatpush2.msra.mxu0 0.0
  %4390 = vmatprep.subr.mxu0 0.0
  %4391 = vmatpush2.msra.mxu0 0.0
  %4392 = vmatprep.subr.mxu0 0.0
  %4393 = vmatpush2.msra.mxu0 0.0
  %4394 = vmatprep.subr.mxu0 0.0
  %4395 = vmatpush2.msra.mxu0 0.0
  %4396 = vmatprep.subr.mxu0 0.0
  %4397 = vmatpush2.msra.mxu0 0.0
  %4398 = vmatprep.subr.mxu0 0.0
  %4399 = vmatpush2.msra.mxu0 0.0
  %4400 = vmatprep.subr.mxu0 0.0
  %4401 = vmatpush2.msra.mxu0 0.0
  %4402 = vmatprep.subr.mxu0 0.0
  %4403 = vmatpush2.msra.mxu0 0.0
  %4404 = vmatprep.subr.mxu0 0.0
  %4405 = vmatpush2.msra.mxu0 0.0
  %4406 = vmatprep.mubr.f32.mxu0 0.0
  %4407 = vmatmul.mubr.f32.gmra.mxu0 %v4340
  %v4408 = vpop.f32.mrf.mxu0
  %v4409 = vadd.f32 %v4336, %v4408
  %v4410 = vpop.f32.mrf.mxu0
  %4411 = vdwg.mxu0
  %v4413 = vsel %vm329, %v4409, 0
  %4415 = vmatprep.subr.mxu0 0.0
  %4416 = vmatpush1.msra.mxu0 0.0
  %4417 = vmatprep.subr.mxu0 0.0
  %4418 = vmatpush1.msra.mxu0 0.0
  %4419 = vmatprep.subr.mxu0 0.0
  %4420 = vmatpush1.msra.mxu0 0.0
  %4421 = vmatprep.subr.mxu0 0.0
  %4422 = vmatpush1.msra.mxu0 0.0
  %4423 = vmatprep.subr.mxu0 0.0
  %4424 = vmatpush1.msra.mxu0 0.0
  %4425 = vmatprep.subr.mxu0 0.0
  %4426 = vmatpush1.msra.mxu0 0.0
  %4427 = vmatprep.subr.mxu0 0.0
  %4428 = vmatpush1.msra.mxu0 0.0
  %4429 = vmatprep.subr.mxu0 0.0
  %4430 = vmatpush1.msra.mxu0 0.0
  %4431 = vmatprep.subr.mxu0 0.0
  %4432 = vmatpush1.msra.mxu0 0.0
  %4433 = vmatprep.subr.mxu0 0.0
  %4434 = vmatpush1.msra.mxu0 0.0
  %4435 = vmatprep.subr.mxu0 0.0
  %4436 = vmatpush1.msra.mxu0 0.0
  %4437 = vmatprep.subr.mxu0 0.0
  %4438 = vmatpush1.msra.mxu0 0.0
  %4439 = vmatprep.subr.mxu0 0.0
  %4440 = vmatpush1.msra.mxu0 %v4109
  %4441 = vmatprep.subr.mxu0 0.0
  %4442 = vmatpush1.msra.mxu0 %v4108
  %4443 = vmatprep.subr.mxu0 0.0
  %4444 = vmatpush1.msra.mxu0 %v4107
  %4445 = vmatprep.subr.mxu0 0.0
  %4446 = vmatpush1.msra.mxu0 %v4106
  %4447 = vmatprep.subr.mxu0 0.0
  %4448 = vmatpush2.msra.mxu0 0.0
  %4449 = vmatprep.subr.mxu0 0.0
  %4450 = vmatpush2.msra.mxu0 0.0
  %4451 = vmatprep.subr.mxu0 0.0
  %4452 = vmatpush2.msra.mxu0 0.0
  %4453 = vmatprep.subr.mxu0 0.0
  %4454 = vmatpush2.msra.mxu0 0.0
  %4455 = vmatprep.subr.mxu0 0.0
  %4456 = vmatpush2.msra.mxu0 0.0
  %4457 = vmatprep.subr.mxu0 0.0
  %4458 = vmatpush2.msra.mxu0 0.0
  %4459 = vmatprep.subr.mxu0 0.0
  %4460 = vmatpush2.msra.mxu0 0.0
  %4461 = vmatprep.subr.mxu0 0.0
  %4462 = vmatpush2.msra.mxu0 0.0
  %4463 = vmatprep.subr.mxu0 0.0
  %4464 = vmatpush2.msra.mxu0 0.0
  %4465 = vmatprep.subr.mxu0 0.0
  %4466 = vmatpush2.msra.mxu0 0.0
  %4467 = vmatprep.subr.mxu0 0.0
  %4468 = vmatpush2.msra.mxu0 0.0
  %4469 = vmatprep.subr.mxu0 0.0
  %4470 = vmatpush2.msra.mxu0 0.0
  %4471 = vmatprep.subr.mxu0 0.0
  %4472 = vmatpush2.msra.mxu0 0.0
  %4473 = vmatprep.subr.mxu0 0.0
  %4474 = vmatpush2.msra.mxu0 0.0
  %4475 = vmatprep.subr.mxu0 0.0
  %4476 = vmatpush2.msra.mxu0 0.0
  %4477 = vmatprep.subr.mxu0 0.0
  %4478 = vmatpush2.msra.mxu0 0.0
  %4479 = vmatprep.mubr.f32.mxu0 0.0
  %4480 = vmatmul.mubr.f32.gmra.mxu0 %v4413
  %v4481 = vpop.f32.mrf.mxu0
  %v4482 = vadd.f32 0.0, %v4481
  %v4483 = vpop.f32.mrf.mxu0
  %4484 = vdwg.mxu0
  %v4486 = vsel %vm329, %v4263, 0
  %4488 = vmatprep.subr.mxu0 0.0
  %4489 = vmatpush1.msra.mxu0 0.0
  %4490 = vmatprep.subr.mxu0 0.0
  %4491 = vmatpush1.msra.mxu0 0.0
  %4492 = vmatprep.subr.mxu0 0.0
  %4493 = vmatpush1.msra.mxu0 0.0
  %4494 = vmatprep.subr.mxu0 0.0
  %4495 = vmatpush1.msra.mxu0 0.0
  %4496 = vmatprep.subr.mxu0 0.0
  %4497 = vmatpush1.msra.mxu0 0.0
  %4498 = vmatprep.subr.mxu0 0.0
  %4499 = vmatpush1.msra.mxu0 0.0
  %4500 = vmatprep.subr.mxu0 0.0
  %4501 = vmatpush1.msra.mxu0 0.0
  %4502 = vmatprep.subr.mxu0 0.0
  %4503 = vmatpush1.msra.mxu0 0.0
  %4504 = vmatprep.subr.mxu0 0.0
  %4505 = vmatpush1.msra.mxu0 0.0
  %4506 = vmatprep.subr.mxu0 0.0
  %4507 = vmatpush1.msra.mxu0 0.0
  %4508 = vmatprep.subr.mxu0 0.0
  %4509 = vmatpush1.msra.mxu0 0.0
  %4510 = vmatprep.subr.mxu0 0.0
  %4511 = vmatpush1.msra.mxu0 0.0
  %4512 = vmatprep.subr.mxu0 0.0
  %4513 = vmatpush1.msra.mxu0 %v4105
  %4514 = vmatprep.subr.mxu0 0.0
  %4515 = vmatpush1.msra.mxu0 %v4104
  %4516 = vmatprep.subr.mxu0 0.0
  %4517 = vmatpush1.msra.mxu0 %v4103
  %4518 = vmatprep.subr.mxu0 0.0
  %4519 = vmatpush1.msra.mxu0 %v4102
  %4520 = vmatprep.subr.mxu0 0.0
  %4521 = vmatpush2.msra.mxu0 0.0
  %4522 = vmatprep.subr.mxu0 0.0
  %4523 = vmatpush2.msra.mxu0 0.0
  %4524 = vmatprep.subr.mxu0 0.0
  %4525 = vmatpush2.msra.mxu0 0.0
  %4526 = vmatprep.subr.mxu0 0.0
  %4527 = vmatpush2.msra.mxu0 0.0
  %4528 = vmatprep.subr.mxu0 0.0
  %4529 = vmatpush2.msra.mxu0 0.0
  %4530 = vmatprep.subr.mxu0 0.0
  %4531 = vmatpush2.msra.mxu0 0.0
  %4532 = vmatprep.subr.mxu0 0.0
  %4533 = vmatpush2.msra.mxu0 0.0
  %4534 = vmatprep.subr.mxu0 0.0
  %4535 = vmatpush2.msra.mxu0 0.0
  %4536 = vmatprep.subr.mxu0 0.0
  %4537 = vmatpush2.msra.mxu0 0.0
  %4538 = vmatprep.subr.mxu0 0.0
  %4539 = vmatpush2.msra.mxu0 0.0
  %4540 = vmatprep.subr.mxu0 0.0
  %4541 = vmatpush2.msra.mxu0 0.0
  %4542 = vmatprep.subr.mxu0 0.0
  %4543 = vmatpush2.msra.mxu0 0.0
  %4544 = vmatprep.subr.mxu0 0.0
  %4545 = vmatpush2.msra.mxu0 0.0
  %4546 = vmatprep.subr.mxu0 0.0
  %4547 = vmatpush2.msra.mxu0 0.0
  %4548 = vmatprep.subr.mxu0 0.0
  %4549 = vmatpush2.msra.mxu0 0.0
  %4550 = vmatprep.subr.mxu0 0.0
  %4551 = vmatpush2.msra.mxu0 0.0
  %4552 = vmatprep.mubr.f32.mxu0 0.0
  %4553 = vmatmul.mubr.f32.gmra.mxu0 %v4486
  %v4554 = vpop.f32.mrf.mxu0
  %v4555 = vadd.f32 %v4482, %v4554
  %v4556 = vpop.f32.mrf.mxu0
  %4557 = vdwg.mxu0
  %v4558 = vadd.f32 %v4555, %v4117
  %v4559 = vmax.f32 %v4558, 0.0
  %v4561 = vsel %vm329, %v4559, 0
  %4563 = vmatprep.subr.mxu0 0.0
  %4564 = vmatpush1.msra.mxu0 0.0
  %4565 = vmatprep.subr.mxu0 0.0
  %4566 = vmatpush1.msra.mxu0 0.0
  %4567 = vmatprep.subr.mxu0 0.0
  %4568 = vmatpush1.msra.mxu0 0.0
  %4569 = vmatprep.subr.mxu0 0.0
  %4570 = vmatpush1.msra.mxu0 0.0
  %4571 = vmatprep.subr.mxu0 0.0
  %4572 = vmatpush1.msra.mxu0 0.0
  %4573 = vmatprep.subr.mxu0 0.0
  %4574 = vmatpush1.msra.mxu0 0.0
  %4575 = vmatprep.subr.mxu0 0.0
  %4576 = vmatpush1.msra.mxu0 0.0
  %4577 = vmatprep.subr.mxu0 0.0
  %4578 = vmatpush1.msra.mxu0 0.0
  %4579 = vmatprep.subr.mxu0 0.0
  %4580 = vmatpush1.msra.mxu0 0.0
  %4581 = vmatprep.subr.mxu0 0.0
  %4582 = vmatpush1.msra.mxu0 0.0
  %4583 = vmatprep.subr.mxu0 0.0
  %4584 = vmatpush1.msra.mxu0 0.0
  %4585 = vmatprep.subr.mxu0 0.0
  %4586 = vmatpush1.msra.mxu0 0.0
  %4587 = vmatprep.subr.mxu0 0.0
  %4588 = vmatpush1.msra.mxu0 %v4113
  %4589 = vmatprep.subr.mxu0 0.0
  %4590 = vmatpush1.msra.mxu0 %v4112
  %4591 = vmatprep.subr.mxu0 0.0
  %4592 = vmatpush1.msra.mxu0 %v4111
  %4593 = vmatprep.subr.mxu0 0.0
  %4594 = vmatpush1.msra.mxu0 %v4110
  %4595 = vmatprep.subr.mxu0 0.0
  %4596 = vmatpush2.msra.mxu0 0.0
  %4597 = vmatprep.subr.mxu0 0.0
  %4598 = vmatpush2.msra.mxu0 0.0
  %4599 = vmatprep.subr.mxu0 0.0
  %4600 = vmatpush2.msra.mxu0 0.0
  %4601 = vmatprep.subr.mxu0 0.0
  %4602 = vmatpush2.msra.mxu0 0.0
  %4603 = vmatprep.subr.mxu0 0.0
  %4604 = vmatpush2.msra.mxu0 0.0
  %4605 = vmatprep.subr.mxu0 0.0
  %4606 = vmatpush2.msra.mxu0 0.0
  %4607 = vmatprep.subr.mxu0 0.0
  %4608 = vmatpush2.msra.mxu0 0.0
  %4609 = vmatprep.subr.mxu0 0.0
  %4610 = vmatpush2.msra.mxu0 0.0
  %4611 = vmatprep.subr.mxu0 0.0
  %4612 = vmatpush2.msra.mxu0 0.0
  %4613 = vmatprep.subr.mxu0 0.0
  %4614 = vmatpush2.msra.mxu0 0.0
  %4615 = vmatprep.subr.mxu0 0.0
  %4616 = vmatpush2.msra.mxu0 0.0
  %4617 = vmatprep.subr.mxu0 0.0
  %4618 = vmatpush2.msra.mxu0 0.0
  %4619 = vmatprep.subr.mxu0 0.0
  %4620 = vmatpush2.msra.mxu0 0.0
  %4621 = vmatprep.subr.mxu0 0.0
  %4622 = vmatpush2.msra.mxu0 0.0
  %4623 = vmatprep.subr.mxu0 0.0
  %4624 = vmatpush2.msra.mxu0 0.0
  %4625 = vmatprep.subr.mxu0 0.0
  %4626 = vmatpush2.msra.mxu0 0.0
  %4627 = vmatprep.mubr.f32.mxu0 0.0
  %4628 = vmatmul.mubr.f32.gmra.mxu0 %v4561
  %v4629 = vpop.f32.mrf.mxu0
  %v4630 = vadd.f32 %v4118, %v4629
  %v4631 = vpop.f32.mrf.mxu0
  %4632 = vdwg.mxu0
  %v4633 = vmax.f32 %v4630, 0.0
  %vm4634 = vcmask 146432
  %v4636 = vsel %vm4634, %v4633, 0
  %vm4638 = vcmask 1041408
  %v4640 = vsel %vm4638, %v4116, 0
  %4642 = vmatprep.subr.mxu0 0.0
  %4643 = vmatpush1.msra.mxu0 0.0
  %4644 = vmatprep.subr.mxu0 0.0
  %4645 = vmatpush1.msra.mxu0 0.0
  %4646 = vmatprep.subr.mxu0 0.0
  %4647 = vmatpush1.msra.mxu0 0.0
  %4648 = vmatprep.subr.mxu0 0.0
  %4649 = vmatpush1.msra.mxu0 0.0
  %4650 = vmatprep.subr.mxu0 0.0
  %4651 = vmatpush1.msra.mxu0 0.0
  %4652 = vmatprep.subr.mxu0 0.0
  %4653 = vmatpush1.msra.mxu0 0.0
  %4654 = vmatprep.subr.mxu0 0.0
  %4655 = vmatpush1.msra.mxu0 0.0
  %4656 = vmatprep.subr.mxu0 0.0
  %4657 = vmatpush1.msra.mxu0 0.0
  %4658 = vmatprep.subr.mxu0 0.0
  %4659 = vmatpush1.msra.mxu0 0.0
  %4660 = vmatprep.subr.mxu0 0.0
  %4661 = vmatpush1.msra.mxu0 0.0
  %4662 = vmatprep.subr.mxu0 0.0
  %4663 = vmatpush1.msra.mxu0 0.0
  %4664 = vmatprep.subr.mxu0 0.0
  %4665 = vmatpush1.msra.mxu0 0.0
  %4666 = vmatprep.subr.mxu0 0.0
  %4667 = vmatpush1.msra.mxu0 0.0
  %4668 = vmatprep.subr.mxu0 0.0
  %4669 = vmatpush1.msra.mxu0 %v4640
  %4670 = vmatprep.subr.mxu0 0.0
  %4671 = vmatpush1.msra.mxu0 %v4115
  %4672 = vmatprep.subr.mxu0 0.0
  %4673 = vmatpush1.msra.mxu0 %v4114
  %4674 = vmatprep.subr.mxu0 0.0
  %4675 = vmatpush2.msra.mxu0 0.0
  %4676 = vmatprep.subr.mxu0 0.0
  %4677 = vmatpush2.msra.mxu0 0.0
  %4678 = vmatprep.subr.mxu0 0.0
  %4679 = vmatpush2.msra.mxu0 0.0
  %4680 = vmatprep.subr.mxu0 0.0
  %4681 = vmatpush2.msra.mxu0 0.0
  %4682 = vmatprep.subr.mxu0 0.0
  %4683 = vmatpush2.msra.mxu0 0.0
  %4684 = vmatprep.subr.mxu0 0.0
  %4685 = vmatpush2.msra.mxu0 0.0
  %4686 = vmatprep.subr.mxu0 0.0
  %4687 = vmatpush2.msra.mxu0 0.0
  %4688 = vmatprep.subr.mxu0 0.0
  %4689 = vmatpush2.msra.mxu0 0.0
  %4690 = vmatprep.subr.mxu0 0.0
  %4691 = vmatpush2.msra.mxu0 0.0
  %4692 = vmatprep.subr.mxu0 0.0
  %4693 = vmatpush2.msra.mxu0 0.0
  %4694 = vmatprep.subr.mxu0 0.0
  %4695 = vmatpush2.msra.mxu0 0.0
  %4696 = vmatprep.subr.mxu0 0.0
  %4697 = vmatpush2.msra.mxu0 0.0
  %4698 = vmatprep.subr.mxu0 0.0
  %4699 = vmatpush2.msra.mxu0 0.0
  %4700 = vmatprep.subr.mxu0 0.0
  %4701 = vmatpush2.msra.mxu0 0.0
  %4702 = vmatprep.subr.mxu0 0.0
  %4703 = vmatpush2.msra.mxu0 0.0
  %4704 = vmatprep.subr.mxu0 0.0
  %4705 = vmatpush2.msra.mxu0 0.0
  %4706 = vmatprep.mubr.f32.mxu0 0.0
  %4707 = vmatmul.mubr.f32.gmra.mxu0 %v4636
  %v4708 = vpop.f32.mrf.mxu0
  %v4709 = vadd.f32 %v4119, %v4708
  %v4710 = vpop.f32.mrf.mxu0
  %4711 = vdwg.mxu0
  %4712 = vst [vmem:[%s4] sm:$0xff] %v4709
  // Predicated region
  $region18: #{birnn_forward.1} parent=0 // pred_check
    _
  $region19: #{birnn_forward.1} parent=0 // pred_check_branch
    %4714 = sbr.rel (0) target = $region21
  $region20: #{birnn_forward.1} parent=0 // pred_region
    _
  $region21: #{birnn_forward.1} parent=0 // pred_fallthru
    _
  // Predicated region
  $region22: #{birnn_forward.1} parent=0 // pred_check
    _
  $region23: #{birnn_forward.1} parent=0 // pred_check_branch
    %4716 = sbr.rel (0) target = $region25
  $region24: #{birnn_forward.1} parent=0 // pred_region
    _
  $region25: #{birnn_forward.1} parent=0 // pred_fallthru
    _

</llo_original>
